<compile_context>
chip_gen: v7x
topology: tpu7x:2x2x1
jax: 0.10.0
libtpu: 0.0.40
codegen_flags: <defaults>
</compile_context>

<pallas_src>
import math

import jax
import jax.numpy as jnp
import numpy as np
from jax.experimental import pallas as pl
from jax.experimental.pallas import tpu as pltpu


# ---------------------------------------------------------------------------
# Fused kernel: both spectral directions + bias for one batch tile.
#   x_ref   : [TB, I, H, W]
#   gy_ref  : [I, W, O*W]    composed (rDFT_W -> mix -> irDFT_W), cols ordered (o, w_out)
#   gxt_ref : [O*H, I*H]     composed (rDFT_H -> mix -> irDFT_H), rows (o, h_out), cols (i, h_in)
#   b_ref   : [O, H, W]      bias, pre-broadcast (tiny)
#   o_ref   : [TB, O, H, W]
# ---------------------------------------------------------------------------
def _ffno_kernel(x_ref, gy_ref, gxt_ref, b_ref, o_ref):
    TB, I, H, W = x_ref.shape
    O = o_ref.shape[1]
    x4 = x_ref[...]
    gy = gy_ref[...]                                      # VMEM-resident across grid steps

    # ---- spectral path along W: rows (b, h), contract (i, w'), cols (o, w_out) ----
    ty = jnp.zeros((TB * H, O * W), dtype=jnp.float32)
    for i in range(I):                                    # I is small -> unrolled 2-D MXU dots
        ty = ty + jnp.dot(x4[:, i, :, :].reshape(TB * H, W), gy[i],
                          preferred_element_type=jnp.float32)
    ty4 = ty.reshape(TB, H, O, W)

    # ---- spectral path along H: per-sample [O*H, I*H] @ [I*H, W], batched over the tile ----
    gxt = gxt_ref[...]
    gxb = jnp.broadcast_to(gxt, (TB,) + gxt.shape)        # [TB, O*H, I*H]
    x3 = x4.reshape(TB, I * H, W)                         # rows flatten as (i, h_in)
    tx = jax.lax.dot_general(gxb, x3, (((2,), (1,)), ((0,), (0,))),
                             preferred_element_type=jnp.float32)      # [TB, O*H, W]
    tx4 = tx.reshape(TB, O, H, W)

    bias = b_ref[...]                                     # [O, H, W]
    # (h, o) -> (o, h) reorder of the W-path result fused into per-o stores (O is small).
    for o in range(O):
        o_ref[:, o, :, :] = ty4[:, :, o, :] + tx4[:, o, :, :] + bias[o]


# ---------------------------------------------------------------------------
# Host-side operator construction (weight-sized; traced once per compile).
# ---------------------------------------------------------------------------
def _truncated_dft_ops(N, nm):
    """Forward truncated rDFT [N, nm] and inverse (Hermitian-reconstructing) [nm, N],
    both norm='ortho'.  Imag parts of DC / Nyquist bins are discarded exactly like
    torch.fft.irfft / jnp.fft.irfft do (the sin column is identically zero there)."""
    n = np.arange(N, dtype=np.float64)[:, None]
    m = np.arange(nm, dtype=np.float64)[None, :]
    ang = 2.0 * np.pi * n * m / N
    fwd = np.exp(-1j * ang) / np.sqrt(N)                         # [N, nm]
    coef = np.full((nm,), 2.0)
    coef[0] = 1.0
    if N % 2 == 0 and nm == N // 2 + 1:                          # Nyquist bin included
        coef[-1] = 1.0
    inv = coef[:, None] * np.exp(1j * ang).T / np.sqrt(N)        # [nm, N]
    return (jnp.asarray(fwd.astype(np.complex64)),
            jnp.asarray(inv.astype(np.complex64)))


def _composed_spectral_op(w, N):
    """w [I, O, nm, 2] (torch fourier_weight layout) -> real operator [I, N_in, O, N_out]."""
    nm = w.shape[2]
    wc = (w[..., 0] + 1j * w[..., 1]).astype(jnp.complex64)
    fwd, inv = _truncated_dft_ops(N, nm)
    g = jnp.einsum('nm,iom,mv->inov', fwd, wc, inv)
    return jnp.real(g).astype(jnp.float32)


# ---------------------------------------------------------------------------
# Forward pass:  SimpleSpectralConv2d(version='ffno')
#   x    : [batch, seq, in_ch, H, W]  float32
#   w0,w1: [in_ch, out_ch, nm, 2]     (real/imag stacked, like torch fourier_weight)
#   bias : [out_ch]                   (torch bias is [out_ch,1,1]; broadcast equal)
# returns [batch, seq, out_ch, H, W]
# ---------------------------------------------------------------------------
def simple_spectral_conv2d(x, w0, w1, bias):
    B, S, I, H, W = x.shape
    O = w0.shape[1]
    nm = w0.shape[2]
    assert nm <= W // 2 + 1 and nm <= H // 2 + 1, "n_modes exceeds available Fourier bins"
    Bp = B * S
    xb = x.reshape(Bp, I, H, W)                           # seq_op fold -> NCHW (free reshape)

    gy = _composed_spectral_op(w0, W).reshape(I, W, O * W)
    gx = _composed_spectral_op(w1, H)                                  # [I, H_in, O, H_out]
    gxt = jnp.transpose(gx, (2, 3, 0, 1)).reshape(O * H, I * H)
    bias_b = jnp.broadcast_to(bias.reshape(O, 1, 1).astype(jnp.float32), (O, H, W))

    # Batch-tile size from a conservative VMEM budget (v7x-safe); last tile is masked, so the
    # tile never collapses for awkward batch sizes.
    lane = 128
    per_sample = (I + 3 * O) * H * max(W, lane) * 4 * 2   # in + out + temps, double-buffered
    tb = int(min(Bp, max(1, (8 << 20) // per_sample)))
    grid = (pl.cdiv(Bp, tb),)

    out = pl.pallas_call(
        _ffno_kernel,
        grid=grid,
        in_specs=[
            pl.BlockSpec((tb, I, H, W), lambda b: (b, 0, 0, 0)),
            pl.BlockSpec((I, W, O * W), lambda b: (0, 0, 0)),   # operators stay VMEM-resident
            pl.BlockSpec((O * H, I * H), lambda b: (0, 0)),
            pl.BlockSpec((O, H, W), lambda b: (0, 0, 0)),
        ],
        out_specs=pl.BlockSpec((tb, O, H, W), lambda b: (b, 0, 0, 0)),
        out_shape=jax.ShapeDtypeStruct((Bp, O, H, W), jnp.float32),
        compiler_params=pltpu.CompilerParams(dimension_semantics=("parallel",)),
    )(xb, gy, gxt, bias_b)
    return out.reshape(B, S, O, H, W)


# ---------------------------------------------------------------------------
# Pure-JAX reference (mirrors the torch forward exactly) for validation.
# ---------------------------------------------------------------------------
def reference(x, w0, w1, bias):
    B, S, I, H, W = x.shape
    O = w0.shape[1]
    nm = w0.shape[2]
    xb = x.reshape(B * S, I, H, W)
    w0c = w0[..., 0] + 1j * w0[..., 1]
    w1c = w1[..., 0] + 1j * w1[..., 1]

    x_fty = jnp.fft.rfft(xb, axis=-1, norm='ortho')
    out_ft = jnp.zeros((B * S, O, H, W // 2 + 1), jnp.complex64)
    out_ft = out_ft.at[..., :nm].set(
        jnp.einsum('bixy,ioy->boxy', x_fty[..., :nm], w0c))
    xy = jnp.fft.irfft(out_ft, n=W, axis=-1, norm='ortho')

    x_ftx = jnp.fft.rfft(xb, axis=-2, norm='ortho')
    out_ft2 = jnp.zeros((B * S, O, H // 2 + 1, W), jnp.complex64)
    out_ft2 = out_ft2.at[:, :, :nm, :].set(
        jnp.einsum('bixy,iox->boxy', x_ftx[:, :, :nm, :], w1c))
    xx = jnp.fft.irfft(out_ft2, n=H, axis=-2, norm='ortho')

    out = xx + xy + bias.reshape(1, O, 1, 1)
    return out.reshape(B, S, O, H, W)


if __name__ == "__main__":
    batch, seq, in_ch, out_ch, Hdim, Wdim = 2, 3, 4, 4, 16, 16
    n_modes = 8                       # ffno branch uses n_modes // 2 = 4 modes per axis
    nm = n_modes // 2

    key = jax.random.PRNGKey(0)
    k1, k2, k3, k4 = jax.random.split(key, 4)

    # xavier_normal_ on tensor of shape (in, out, nm, 2):
    #   fan_in = out*nm*2, fan_out = in*nm*2  -> std = sqrt(2 / ((in+out)*nm*2))
    std = math.sqrt(2.0 / ((in_ch + out_ch) * nm * 2))
    w0 = std * jax.random.normal(k1, (in_ch, out_ch, nm, 2), jnp.float32)
    w1 = std * jax.random.normal(k2, (in_ch, out_ch, nm, 2), jnp.float32)

    stdv = 1.0 / math.sqrt(in_ch)     # bias ~ U(-1/sqrt(in_ch), 1/sqrt(in_ch))
    bias = jax.random.uniform(k3, (out_ch,), jnp.float32, -stdv, stdv)

    x = jax.random.normal(k4, (batch, seq, in_ch, Hdim, Wdim), jnp.float32)

    out = jax.jit(simple_spectral_conv2d)(x, w0, w1, bias)
    out = jax.block_until_ready(out)

    ref = reference(x, w0, w1, bias)
    assert out.shape == (batch, seq, out_ch, Hdim, Wdim)
    np.testing.assert_allclose(np.asarray(out), np.asarray(ref), atol=2e-3, rtol=2e-3)

    print("KERNEL_OK")
</pallas_src>

<mosaic_0001>
module attributes {stable_mosaic.version = 11 : i64} {
  func.func @_ffno_kernel(%arg0: i32, %arg1: memref<6x4x16x16xf32, #tpu.memory_space<vmem>>, %arg2: memref<4x16x64xf32, #tpu.memory_space<vmem>>, %arg3: memref<64x64xf32, #tpu.memory_space<vmem>>, %arg4: memref<4x16x16xf32, #tpu.memory_space<vmem>>, %arg5: memref<6x4x16x16xf32, #tpu.memory_space<vmem>>) attributes {dimension_semantics = [#tpu.dimension_semantics<parallel>], iteration_bounds = array<i64: 1>, scalar_prefetch = 0 : i64, scratch_operands = 0 : i64, tpu.core_type = #tpu.core_type<tc>, window_params = [{transform_indices = @transform_0, window_bounds = array<i64: 6, 4, 16, 16>}, {pipeline_mode = #tpu.pipeline_mode<synchronous>, transform_indices = @transform_1, window_bounds = array<i64: 4, 16, 64>}, {pipeline_mode = #tpu.pipeline_mode<synchronous>, transform_indices = @transform_2, window_bounds = array<i64: 64, 64>}, {pipeline_mode = #tpu.pipeline_mode<synchronous>, transform_indices = @transform_3, window_bounds = array<i64: 4, 16, 16>}, {transform_indices = @transform_4, window_bounds = array<i64: 6, 4, 16, 16>}]} {
    %c0 = arith.constant 0 : index
    %c0_0 = arith.constant 0 : index
    %c0_1 = arith.constant 0 : index
    %c0_2 = arith.constant 0 : index
    %0 = vector.load %arg1[%c0, %c0_0, %c0_1, %c0_2] : memref<6x4x16x16xf32, #tpu.memory_space<vmem>>, vector<6x4x16x16xf32>
    %c0_3 = arith.constant 0 : index
    %c0_4 = arith.constant 0 : index
    %c0_5 = arith.constant 0 : index
    %1 = vector.load %arg2[%c0_3, %c0_4, %c0_5] : memref<4x16x64xf32, #tpu.memory_space<vmem>>, vector<4x16x64xf32>
    %cst = arith.constant 0.000000e+00 : f32
    %2 = vector.broadcast %cst : f32 to vector<96x64xf32>
    %3 = vector.extract_strided_slice %0 {offsets = [0, 0, 0, 0], sizes = [6, 1, 16, 16], strides = [1, 1, 1, 1]} : vector<6x4x16x16xf32> to vector<6x1x16x16xf32>
    %4 = vector.shape_cast %3 : vector<6x1x16x16xf32> to vector<6x16x16xf32>
    %5 = vector.shape_cast %4 : vector<6x16x16xf32> to vector<96x16xf32>
    %6 = vector.extract_strided_slice %1 {offsets = [0, 0, 0], sizes = [1, 16, 64], strides = [1, 1, 1]} : vector<4x16x64xf32> to vector<1x16x64xf32>
    %7 = vector.shape_cast %6 : vector<1x16x64xf32> to vector<16x64xf32>
    %cst_6 = arith.constant dense<0.000000e+00> : vector<96x64xf32>
    %8 = tpu.matmul %5, %7, %cst_6 {dimension_numbers = #tpu.dot_dimension_numbers<[1], [0], [0], [1], [0, 0, 1, 1], [], []>} : vector<96x16xf32>, vector<16x64xf32>, vector<96x64xf32> -> vector<96x64xf32>
    %9 = arith.addf %2, %8 : vector<96x64xf32>
    %10 = vector.extract_strided_slice %0 {offsets = [0, 1, 0, 0], sizes = [6, 1, 16, 16], strides = [1, 1, 1, 1]} : vector<6x4x16x16xf32> to vector<6x1x16x16xf32>
    %11 = vector.shape_cast %10 : vector<6x1x16x16xf32> to vector<6x16x16xf32>
    %12 = vector.shape_cast %11 : vector<6x16x16xf32> to vector<96x16xf32>
    %13 = vector.extract_strided_slice %1 {offsets = [1, 0, 0], sizes = [1, 16, 64], strides = [1, 1, 1]} : vector<4x16x64xf32> to vector<1x16x64xf32>
    %14 = vector.shape_cast %13 : vector<1x16x64xf32> to vector<16x64xf32>
    %cst_7 = arith.constant dense<0.000000e+00> : vector<96x64xf32>
    %15 = tpu.matmul %12, %14, %cst_7 {dimension_numbers = #tpu.dot_dimension_numbers<[1], [0], [0], [1], [0, 0, 1, 1], [], []>} : vector<96x16xf32>, vector<16x64xf32>, vector<96x64xf32> -> vector<96x64xf32>
    %16 = arith.addf %9, %15 : vector<96x64xf32>
    %17 = vector.extract_strided_slice %0 {offsets = [0, 2, 0, 0], sizes = [6, 1, 16, 16], strides = [1, 1, 1, 1]} : vector<6x4x16x16xf32> to vector<6x1x16x16xf32>
    %18 = vector.shape_cast %17 : vector<6x1x16x16xf32> to vector<6x16x16xf32>
    %19 = vector.shape_cast %18 : vector<6x16x16xf32> to vector<96x16xf32>
    %20 = vector.extract_strided_slice %1 {offsets = [2, 0, 0], sizes = [1, 16, 64], strides = [1, 1, 1]} : vector<4x16x64xf32> to vector<1x16x64xf32>
    %21 = vector.shape_cast %20 : vector<1x16x64xf32> to vector<16x64xf32>
    %cst_8 = arith.constant dense<0.000000e+00> : vector<96x64xf32>
    %22 = tpu.matmul %19, %21, %cst_8 {dimension_numbers = #tpu.dot_dimension_numbers<[1], [0], [0], [1], [0, 0, 1, 1], [], []>} : vector<96x16xf32>, vector<16x64xf32>, vector<96x64xf32> -> vector<96x64xf32>
    %23 = arith.addf %16, %22 : vector<96x64xf32>
    %24 = vector.extract_strided_slice %0 {offsets = [0, 3, 0, 0], sizes = [6, 1, 16, 16], strides = [1, 1, 1, 1]} : vector<6x4x16x16xf32> to vector<6x1x16x16xf32>
    %25 = vector.shape_cast %24 : vector<6x1x16x16xf32> to vector<6x16x16xf32>
    %26 = vector.shape_cast %25 : vector<6x16x16xf32> to vector<96x16xf32>
    %27 = vector.extract_strided_slice %1 {offsets = [3, 0, 0], sizes = [1, 16, 64], strides = [1, 1, 1]} : vector<4x16x64xf32> to vector<1x16x64xf32>
    %28 = vector.shape_cast %27 : vector<1x16x64xf32> to vector<16x64xf32>
    %cst_9 = arith.constant dense<0.000000e+00> : vector<96x64xf32>
    %29 = tpu.matmul %26, %28, %cst_9 {dimension_numbers = #tpu.dot_dimension_numbers<[1], [0], [0], [1], [0, 0, 1, 1], [], []>} : vector<96x16xf32>, vector<16x64xf32>, vector<96x64xf32> -> vector<96x64xf32>
    %30 = arith.addf %23, %29 : vector<96x64xf32>
    %31 = vector.shape_cast %30 : vector<96x64xf32> to vector<6x16x4x16xf32>
    %c0_10 = arith.constant 0 : index
    %c0_11 = arith.constant 0 : index
    %32 = vector.load %arg3[%c0_10, %c0_11] : memref<64x64xf32, #tpu.memory_space<vmem>>, vector<64x64xf32>
    %33 = vector.shape_cast %32 : vector<64x64xf32> to vector<1x64x64xf32>
    %34 = vector.broadcast %33 : vector<1x64x64xf32> to vector<6x64x64xf32>
    %35 = vector.shape_cast %0 : vector<6x4x16x16xf32> to vector<6x64x16xf32>
    %cst_12 = arith.constant dense<0.000000e+00> : vector<6x64x16xf32>
    %36 = tpu.matmul %34, %35, %cst_12 {dimension_numbers = #tpu.dot_dimension_numbers<[2], [1], [1], [2], [0, 0, 0, 1, 1, 2], [0], [0]>} : vector<6x64x64xf32>, vector<6x64x16xf32>, vector<6x64x16xf32> -> vector<6x64x16xf32>
    %37 = vector.shape_cast %36 : vector<6x64x16xf32> to vector<6x4x16x16xf32>
    %c0_13 = arith.constant 0 : index
    %c0_14 = arith.constant 0 : index
    %c0_15 = arith.constant 0 : index
    %38 = vector.load %arg4[%c0_13, %c0_14, %c0_15] : memref<4x16x16xf32, #tpu.memory_space<vmem>>, vector<4x16x16xf32>
    %39 = vector.extract_strided_slice %31 {offsets = [0, 0, 0, 0], sizes = [6, 16, 1, 16], strides = [1, 1, 1, 1]} : vector<6x16x4x16xf32> to vector<6x16x1x16xf32>
    %40 = vector.shape_cast %39 : vector<6x16x1x16xf32> to vector<6x16x16xf32>
    %41 = vector.extract_strided_slice %37 {offsets = [0, 0, 0, 0], sizes = [6, 1, 16, 16], strides = [1, 1, 1, 1]} : vector<6x4x16x16xf32> to vector<6x1x16x16xf32>
    %42 = vector.shape_cast %41 : vector<6x1x16x16xf32> to vector<6x16x16xf32>
    %43 = arith.addf %40, %42 : vector<6x16x16xf32>
    %44 = vector.extract_strided_slice %38 {offsets = [0, 0, 0], sizes = [1, 16, 16], strides = [1, 1, 1]} : vector<4x16x16xf32> to vector<1x16x16xf32>
    %45 = vector.shape_cast %44 : vector<1x16x16xf32> to vector<16x16xf32>
    %46 = vector.shape_cast %45 : vector<16x16xf32> to vector<1x16x16xf32>
    %47 = vector.broadcast %46 : vector<1x16x16xf32> to vector<6x16x16xf32>
    %48 = arith.addf %43, %47 : vector<6x16x16xf32>
    %c0_16 = arith.constant 0 : index
    %c0_17 = arith.constant 0 : index
    %c0_18 = arith.constant 0 : index
    %c0_19 = arith.constant 0 : index
    %49 = vector.load %arg5[%c0_16, %c0_17, %c0_18, %c0_19] : memref<6x4x16x16xf32, #tpu.memory_space<vmem>>, vector<6x1x16x16xf32>
    %50 = vector.shape_cast %49 : vector<6x1x16x16xf32> to vector<6x16x16xf32>
    %51 = vector.shape_cast %48 : vector<6x16x16xf32> to vector<6x1x16x16xf32>
    tpu.vector_store %arg5[%c0_16, %c0_17, %c0_18, %c0_19], %51 {strides = array<i32>} : memref<6x4x16x16xf32, #tpu.memory_space<vmem>>, vector<6x1x16x16xf32>,
    %52 = vector.extract_strided_slice %31 {offsets = [0, 0, 1, 0], sizes = [6, 16, 1, 16], strides = [1, 1, 1, 1]} : vector<6x16x4x16xf32> to vector<6x16x1x16xf32>
    %53 = vector.shape_cast %52 : vector<6x16x1x16xf32> to vector<6x16x16xf32>
    %54 = vector.extract_strided_slice %37 {offsets = [0, 1, 0, 0], sizes = [6, 1, 16, 16], strides = [1, 1, 1, 1]} : vector<6x4x16x16xf32> to vector<6x1x16x16xf32>
    %55 = vector.shape_cast %54 : vector<6x1x16x16xf32> to vector<6x16x16xf32>
    %56 = arith.addf %53, %55 : vector<6x16x16xf32>
    %57 = vector.extract_strided_slice %38 {offsets = [1, 0, 0], sizes = [1, 16, 16], strides = [1, 1, 1]} : vector<4x16x16xf32> to vector<1x16x16xf32>
    %58 = vector.shape_cast %57 : vector<1x16x16xf32> to vector<16x16xf32>
    %59 = vector.shape_cast %58 : vector<16x16xf32> to vector<1x16x16xf32>
    %60 = vector.broadcast %59 : vector<1x16x16xf32> to vector<6x16x16xf32>
    %61 = arith.addf %56, %60 : vector<6x16x16xf32>
    %c0_20 = arith.constant 0 : index
    %c1 = arith.constant 1 : index
    %c0_21 = arith.constant 0 : index
    %c0_22 = arith.constant 0 : index
    %62 = vector.load %arg5[%c0_20, %c1, %c0_21, %c0_22] : memref<6x4x16x16xf32, #tpu.memory_space<vmem>>, vector<6x1x16x16xf32>
    %63 = vector.shape_cast %62 : vector<6x1x16x16xf32> to vector<6x16x16xf32>
    %64 = vector.shape_cast %61 : vector<6x16x16xf32> to vector<6x1x16x16xf32>
    tpu.vector_store %arg5[%c0_20, %c1, %c0_21, %c0_22], %64 {strides = array<i32>} : memref<6x4x16x16xf32, #tpu.memory_space<vmem>>, vector<6x1x16x16xf32>,
    %65 = vector.extract_strided_slice %31 {offsets = [0, 0, 2, 0], sizes = [6, 16, 1, 16], strides = [1, 1, 1, 1]} : vector<6x16x4x16xf32> to vector<6x16x1x16xf32>
    %66 = vector.shape_cast %65 : vector<6x16x1x16xf32> to vector<6x16x16xf32>
    %67 = vector.extract_strided_slice %37 {offsets = [0, 2, 0, 0], sizes = [6, 1, 16, 16], strides = [1, 1, 1, 1]} : vector<6x4x16x16xf32> to vector<6x1x16x16xf32>
    %68 = vector.shape_cast %67 : vector<6x1x16x16xf32> to vector<6x16x16xf32>
    %69 = arith.addf %66, %68 : vector<6x16x16xf32>
    %70 = vector.extract_strided_slice %38 {offsets = [2, 0, 0], sizes = [1, 16, 16], strides = [1, 1, 1]} : vector<4x16x16xf32> to vector<1x16x16xf32>
    %71 = vector.shape_cast %70 : vector<1x16x16xf32> to vector<16x16xf32>
    %72 = vector.shape_cast %71 : vector<16x16xf32> to vector<1x16x16xf32>
    %73 = vector.broadcast %72 : vector<1x16x16xf32> to vector<6x16x16xf32>
    %74 = arith.addf %69, %73 : vector<6x16x16xf32>
    %c0_23 = arith.constant 0 : index
    %c2 = arith.constant 2 : index
    %c0_24 = arith.constant 0 : index
    %c0_25 = arith.constant 0 : index
    %75 = vector.load %arg5[%c0_23, %c2, %c0_24, %c0_25] : memref<6x4x16x16xf32, #tpu.memory_space<vmem>>, vector<6x1x16x16xf32>
    %76 = vector.shape_cast %75 : vector<6x1x16x16xf32> to vector<6x16x16xf32>
    %77 = vector.shape_cast %74 : vector<6x16x16xf32> to vector<6x1x16x16xf32>
    tpu.vector_store %arg5[%c0_23, %c2, %c0_24, %c0_25], %77 {strides = array<i32>} : memref<6x4x16x16xf32, #tpu.memory_space<vmem>>, vector<6x1x16x16xf32>,
    %78 = vector.extract_strided_slice %31 {offsets = [0, 0, 3, 0], sizes = [6, 16, 1, 16], strides = [1, 1, 1, 1]} : vector<6x16x4x16xf32> to vector<6x16x1x16xf32>
    %79 = vector.shape_cast %78 : vector<6x16x1x16xf32> to vector<6x16x16xf32>
    %80 = vector.extract_strided_slice %37 {offsets = [0, 3, 0, 0], sizes = [6, 1, 16, 16], strides = [1, 1, 1, 1]} : vector<6x4x16x16xf32> to vector<6x1x16x16xf32>
    %81 = vector.shape_cast %80 : vector<6x1x16x16xf32> to vector<6x16x16xf32>
    %82 = arith.addf %79, %81 : vector<6x16x16xf32>
    %83 = vector.extract_strided_slice %38 {offsets = [3, 0, 0], sizes = [1, 16, 16], strides = [1, 1, 1]} : vector<4x16x16xf32> to vector<1x16x16xf32>
    %84 = vector.shape_cast %83 : vector<1x16x16xf32> to vector<16x16xf32>
    %85 = vector.shape_cast %84 : vector<16x16xf32> to vector<1x16x16xf32>
    %86 = vector.broadcast %85 : vector<1x16x16xf32> to vector<6x16x16xf32>
    %87 = arith.addf %82, %86 : vector<6x16x16xf32>
    %c0_26 = arith.constant 0 : index
    %c3 = arith.constant 3 : index
    %c0_27 = arith.constant 0 : index
    %c0_28 = arith.constant 0 : index
    %88 = vector.load %arg5[%c0_26, %c3, %c0_27, %c0_28] : memref<6x4x16x16xf32, #tpu.memory_space<vmem>>, vector<6x1x16x16xf32>
    %89 = vector.shape_cast %88 : vector<6x1x16x16xf32> to vector<6x16x16xf32>
    %90 = vector.shape_cast %87 : vector<6x16x16xf32> to vector<6x1x16x16xf32>
    tpu.vector_store %arg5[%c0_26, %c3, %c0_27, %c0_28], %90 {strides = array<i32>} : memref<6x4x16x16xf32, #tpu.memory_space<vmem>>, vector<6x1x16x16xf32>,
    return
  }
  func.func @transform_0(%arg0: i32) -> (i32, i32, i32, i32) {
    %c0_i32 = arith.constant 0 : i32
    %c0_i32_0 = arith.constant 0 : i32
    %c0_i32_1 = arith.constant 0 : i32
    %c0_i32_2 = arith.constant 0 : i32
    return %arg0, %c0_i32, %c0_i32_0, %c0_i32_1 : i32, i32, i32, i32
  }
  func.func @transform_1(%arg0: i32) -> (i32, i32, i32) {
    %c0_i32 = arith.constant 0 : i32
    %c0_i32_0 = arith.constant 0 : i32
    %c0_i32_1 = arith.constant 0 : i32
    %c0_i32_2 = arith.constant 0 : i32
    return %c0_i32, %c0_i32_0, %c0_i32_1 : i32, i32, i32
  }
  func.func @transform_2(%arg0: i32) -> (i32, i32) {
    %c0_i32 = arith.constant 0 : i32
    %c0_i32_0 = arith.constant 0 : i32
    %c0_i32_1 = arith.constant 0 : i32
    return %c0_i32, %c0_i32_0 : i32, i32
  }
  func.func @transform_3(%arg0: i32) -> (i32, i32, i32) {
    %c0_i32 = arith.constant 0 : i32
    %c0_i32_0 = arith.constant 0 : i32
    %c0_i32_1 = arith.constant 0 : i32
    %c0_i32_2 = arith.constant 0 : i32
    return %c0_i32, %c0_i32_0, %c0_i32_1 : i32, i32, i32
  }
  func.func @transform_4(%arg0: i32) -> (i32, i32, i32, i32) {
    %c0_i32 = arith.constant 0 : i32
    %c0_i32_0 = arith.constant 0 : i32
    %c0_i32_1 = arith.constant 0 : i32
    %c0_i32_2 = arith.constant 0 : i32
    return %arg0, %c0_i32, %c0_i32_0, %c0_i32_1 : i32, i32, i32, i32
  }
}

</mosaic_0001>

<llo_original>
// kernel: simple_spectral_conv2d.1
$region0: #{simple_spectral_conv2d.1}
  #allocation0 [shape = 'u32[]', space=smem, size = 0x4, offset = 0x4, fixed_abs, tag = 'smem constant byte address 0x4 - core index']
  #allocation1 [shape = 'u32[144,128]{1,0:T(1,128)}', space=vmem, size = 0x12000, scoped, tag = 'internal scratch']
  %s0 = inlined_call_operand.vmem [shape: f32[6,4,16,16], index: 0, kind: input, shape index: {}]
  %s1 = inlined_call_operand.vmem [shape: f32[4,16,64], index: 1, kind: input, shape index: {}]
  %s2 = inlined_call_operand.vmem [shape: f32[64,64], index: 2, kind: input, shape index: {}]
  %s3 = inlined_call_operand.vmem [shape: f32[4,16,16], index: 3, kind: input, shape index: {}]
  %s4 = inlined_call_operand.hbm [shape: f32[6,4,16,16], index: 4, kind: output, shape index: {}]
  %s5 = sld [smem:[#allocation0]]
  $region26: #{simple_spectral_conv2d.1} parent=0
    _
  %s7 = ssub.s32 1, %s5
  %s8 = scalar_select 0, %s7, %s5
  $region1: #{simple_spectral_conv2d.1} parent=0
    #allocation2 [shape = 'u8[196608]{0}', space=vmem, size = 0x30000, scoped, tag = 'output window, operand 0, single buffered']
    #allocation3 [shape = 's32[1]{0}', space=sflag, size = 0x4, scoped, tag = 'scoped memory for simple_spectral_conv2d.1']
    %9 = vsyncpa [#allocation3], 0
    // Predicated region
    $region2: #{simple_spectral_conv2d.1} parent=1 // pred_check
      _
    $region3: #{simple_spectral_conv2d.1} parent=1 // pred_check_branch
      %11 = sbr.rel (0) target = $region5
    $region4: #{simple_spectral_conv2d.1} parent=1 // pred_region
      _
    $region5: #{simple_spectral_conv2d.1} parent=1 // pred_fallthru
      _
    // Predicated region
    $region6: #{simple_spectral_conv2d.1} parent=1 // pred_check
      _
    $region7: #{simple_spectral_conv2d.1} parent=1 // pred_check_branch
      %13 = sbr.rel (0) target = $region9
    $region8: #{simple_spectral_conv2d.1} parent=1 // pred_region
      _
    $region9: #{simple_spectral_conv2d.1} parent=1 // pred_fallthru
      _
    // Predicated region
    $region10: #{simple_spectral_conv2d.1} parent=1 // pred_check
      _
    $region11: #{simple_spectral_conv2d.1} parent=1 // pred_check_branch
      %15 = sbr.rel (0) target = $region13
    $region12: #{simple_spectral_conv2d.1} parent=1 // pred_region
      _
    $region13: #{simple_spectral_conv2d.1} parent=1 // pred_fallthru
      _
    // Predicated region
    $region14: #{simple_spectral_conv2d.1} parent=1 // pred_check
      _
    $region15: #{simple_spectral_conv2d.1} parent=1 // pred_check_branch
      %17 = sbr.rel (0) target = $region17
    $region16: #{simple_spectral_conv2d.1} parent=1 // pred_region
      _
    $region17: #{simple_spectral_conv2d.1} parent=1 // pred_fallthru
      _
    %v18 = vld [vmem:[%s0] sm:$0xff]
    %v19 = vld [vmem:[%s0 + $0x8] sm:$0xff]
    %v20 = vld [vmem:[%s0 + $0x10] sm:$0xff]
    %v21 = vld [vmem:[%s0 + $0x18] sm:$0xff]
    %v22 = vld [vmem:[%s0 + $0x20] sm:$0xff]
    %v23 = vld [vmem:[%s0 + $0x28] sm:$0xff]
    %v24 = vld [vmem:[%s0 + $0x30] sm:$0xff]
    %v25 = vld [vmem:[%s0 + $0x38] sm:$0xff]
    %v26 = vld [vmem:[%s0 + $0x40] sm:$0xff]
    %v27 = vld [vmem:[%s0 + $0x48] sm:$0xff]
    %v28 = vld [vmem:[%s0 + $0x50] sm:$0xff]
    %v29 = vld [vmem:[%s0 + $0x58] sm:$0xff]
    %v30 = vld [vmem:[%s0 + $0x60] sm:$0xff]
    %v31 = vld [vmem:[%s0 + $0x68] sm:$0xff]
    %v32 = vld [vmem:[%s0 + $0x70] sm:$0xff]
    %v33 = vld [vmem:[%s0 + $0x78] sm:$0xff]
    %v34 = vld [vmem:[%s0 + $0x80] sm:$0xff]
    %v35 = vld [vmem:[%s0 + $0x88] sm:$0xff]
    %v36 = vld [vmem:[%s0 + $0x90] sm:$0xff]
    %v37 = vld [vmem:[%s0 + $0x98] sm:$0xff]
    %v38 = vld [vmem:[%s0 + $0xa0] sm:$0xff]
    %v39 = vld [vmem:[%s0 + $0xa8] sm:$0xff]
    %v40 = vld [vmem:[%s0 + $0xb0] sm:$0xff]
    %v41 = vld [vmem:[%s0 + $0xb8] sm:$0xff]
    %v42 = vld [vmem:[%s0 + $0xc0] sm:$0xff]
    %v43 = vld [vmem:[%s0 + $0xc8] sm:$0xff]
    %v44 = vld [vmem:[%s0 + $0xd0] sm:$0xff]
    %v45 = vld [vmem:[%s0 + $0xd8] sm:$0xff]
    %v46 = vld [vmem:[%s0 + $0xe0] sm:$0xff]
    %v47 = vld [vmem:[%s0 + $0xe8] sm:$0xff]
    %v48 = vld [vmem:[%s0 + $0xf0] sm:$0xff]
    %v49 = vld [vmem:[%s0 + $0xf8] sm:$0xff]
    %v50 = vld [vmem:[%s0 + $0x100] sm:$0xff]
    %v51 = vld [vmem:[%s0 + $0x108] sm:$0xff]
    %v52 = vld [vmem:[%s0 + $0x110] sm:$0xff]
    %v53 = vld [vmem:[%s0 + $0x118] sm:$0xff]
    %v54 = vld [vmem:[%s0 + $0x120] sm:$0xff]
    %v55 = vld [vmem:[%s0 + $0x128] sm:$0xff]
    %v56 = vld [vmem:[%s0 + $0x130] sm:$0xff]
    %v57 = vld [vmem:[%s0 + $0x138] sm:$0xff]
    %v58 = vld [vmem:[%s0 + $0x140] sm:$0xff]
    %v59 = vld [vmem:[%s0 + $0x148] sm:$0xff]
    %v60 = vld [vmem:[%s0 + $0x150] sm:$0xff]
    %v61 = vld [vmem:[%s0 + $0x158] sm:$0xff]
    %v62 = vld [vmem:[%s0 + $0x160] sm:$0xff]
    %v63 = vld [vmem:[%s0 + $0x168] sm:$0xff]
    %v64 = vld [vmem:[%s0 + $0x170] sm:$0xff]
    %v65 = vld [vmem:[%s0 + $0x178] sm:$0xff]
    %v66 = vld [vmem:[%s1] sm:$0xff]
    %v67 = vld [vmem:[%s1 + $0x8] sm:$0xff]
    %v68 = vld [vmem:[%s1 + $0x10] sm:$0xff]
    %v69 = vld [vmem:[%s1 + $0x18] sm:$0xff]
    %v70 = vld [vmem:[%s1 + $0x20] sm:$0xff]
    %v71 = vld [vmem:[%s1 + $0x28] sm:$0xff]
    %v72 = vld [vmem:[%s1 + $0x30] sm:$0xff]
    %v73 = vld [vmem:[%s1 + $0x38] sm:$0xff]
    %vm74 = vcmask 130048
    %v76 = vsel %vm74, %v20, 0
    %v79 = vsel %vm74, %v21, 0
    %v82 = vsel %vm74, %v28, 0
    %v85 = vsel %vm74, %v29, 0
    %v88 = vsel %vm74, %v36, 0
    %v91 = vsel %vm74, %v37, 0
    %v94 = vsel %vm74, %v44, 0
    %v97 = vsel %vm74, %v45, 0
    %v100 = vsel %vm74, %v52, 0
    %v103 = vsel %vm74, %v53, 0
    %v106 = vsel %vm74, %v60, 0
    %v109 = vsel %vm74, %v61, 0
    %111 = vmatprep.subr.mxu0 0.0
    %112 = vmatpush1.msra.mxu0 %v68
    %113 = vmatprep.subr.mxu0 0.0
    %114 = vmatpush1.msra.mxu0 %v69
    %115 = vmatprep.subr.mxu0 0.0
    %116 = vmatpush1.msra.mxu0 0.0
    %117 = vmatprep.subr.mxu0 0.0
    %118 = vmatpush1.msra.mxu0 0.0
    %119 = vmatprep.subr.mxu0 0.0
    %120 = vmatpush1.msra.mxu0 0.0
    %121 = vmatprep.subr.mxu0 0.0
    %122 = vmatpush1.msra.mxu0 0.0
    %123 = vmatprep.subr.mxu0 0.0
    %124 = vmatpush1.msra.mxu0 0.0
    %125 = vmatprep.subr.mxu0 0.0
    %126 = vmatpush1.msra.mxu0 0.0
    %127 = vmatprep.subr.mxu0 0.0
    %128 = vmatpush1.msra.mxu0 0.0
    %129 = vmatprep.subr.mxu0 0.0
    %130 = vmatpush1.msra.mxu0 0.0
    %131 = vmatprep.subr.mxu0 0.0
    %132 = vmatpush1.msra.mxu0 0.0
    %133 = vmatprep.subr.mxu0 0.0
    %134 = vmatpush1.msra.mxu0 0.0
    %135 = vmatprep.subr.mxu0 0.0
    %136 = vmatpush1.msra.mxu0 0.0
    %137 = vmatprep.subr.mxu0 0.0
    %138 = vmatpush1.msra.mxu0 0.0
    %139 = vmatprep.subr.mxu0 0.0
    %140 = vmatpush1.msra.mxu0 0.0
    %141 = vmatprep.subr.mxu0 0.0
    %142 = vmatpush1.msra.mxu0 0.0
    %143 = vmatprep.subr.mxu0 0.0
    %144 = vmatpush1.msra.mxu0 0.0
    %145 = vmatprep.subr.mxu0 0.0
    %146 = vmatpush1.msra.mxu0 0.0
    %147 = vmatprep.subr.mxu0 0.0
    %148 = vmatpush1.msra.mxu0 0.0
    %149 = vmatprep.subr.mxu0 0.0
    %150 = vmatpush1.msra.mxu0 0.0
    %151 = vmatprep.subr.mxu0 0.0
    %152 = vmatpush1.msra.mxu0 0.0
    %153 = vmatprep.subr.mxu0 0.0
    %154 = vmatpush1.msra.mxu0 0.0
    %155 = vmatprep.subr.mxu0 0.0
    %156 = vmatpush1.msra.mxu0 0.0
    %157 = vmatprep.subr.mxu0 0.0
    %158 = vmatpush1.msra.mxu0 0.0
    %159 = vmatprep.subr.mxu0 0.0
    %160 = vmatpush1.msra.mxu0 0.0
    %161 = vmatprep.subr.mxu0 0.0
    %162 = vmatpush1.msra.mxu0 0.0
    %163 = vmatprep.subr.mxu0 0.0
    %164 = vmatpush1.msra.mxu0 0.0
    %165 = vmatprep.subr.mxu0 0.0
    %166 = vmatpush1.msra.mxu0 0.0
    %167 = vmatprep.subr.mxu0 0.0
    %168 = vmatpush1.msra.mxu0 0.0
    %169 = vmatprep.subr.mxu0 0.0
    %170 = vmatpush1.msra.mxu0 0.0
    %171 = vmatprep.subr.mxu0 0.0
    %172 = vmatpush1.msra.mxu0 0.0
    %173 = vmatprep.subr.mxu0 0.0
    %174 = vmatpush1.msra.mxu0 0.0
    %175 = vmatprep.mubr.f32.mxu0 0.0
    %176 = vmatmul.mubr.f32.gmra.mrb[0].mxu0 %v76
    %v177 = vpop.f32.mrb[0].mxu0
    %v178 = vadd.f32 0.0, %v177
    %v179 = vpop.f32.mrb[0].mxu0
    %180 = vmatprep.mubr.f32.mxu0 0.0
    %181 = vmatmul.mubr.f32.gmra.mrb[0].mxu0 %v79
    %v182 = vpop.f32.mrb[0].mxu0
    %v183 = vadd.f32 0.0, %v182
    %v184 = vpop.f32.mrb[0].mxu0
    %185 = vmatprep.mubr.f32.mxu0 0.0
    %186 = vmatmul.mubr.f32.gmra.mrb[0].mxu0 %v82
    %v187 = vpop.f32.mrb[0].mxu0
    %v188 = vadd.f32 0.0, %v187
    %v189 = vpop.f32.mrb[0].mxu0
    %190 = vmatprep.mubr.f32.mxu0 0.0
    %191 = vmatmul.mubr.f32.gmra.mrb[0].mxu0 %v85
    %v192 = vpop.f32.mrb[0].mxu0
    %v193 = vadd.f32 0.0, %v192
    %v194 = vpop.f32.mrb[0].mxu0
    %195 = vmatprep.mubr.f32.mxu0 0.0
    %196 = vmatmul.mubr.f32.gmra.mrb[0].mxu0 %v88
    %v197 = vpop.f32.mrb[0].mxu0
    %v198 = vadd.f32 0.0, %v197
    %v199 = vpop.f32.mrb[0].mxu0
    %200 = vmatprep.mubr.f32.mxu0 0.0
    %201 = vmatmul.mubr.f32.gmra.mrb[0].mxu0 %v91
    %v202 = vpop.f32.mrb[0].mxu0
    %v203 = vadd.f32 0.0, %v202
    %v204 = vpop.f32.mrb[0].mxu0
    %205 = vmatprep.mubr.f32.mxu0 0.0
    %206 = vmatmul.mubr.f32.gmra.mrb[0].mxu0 %v94
    %v207 = vpop.f32.mrb[0].mxu0
    %v208 = vadd.f32 0.0, %v207
    %v209 = vpop.f32.mrb[0].mxu0
    %210 = vmatprep.mubr.f32.mxu0 0.0
    %211 = vmatmul.mubr.f32.gmra.mrb[0].mxu0 %v97
    %v212 = vpop.f32.mrb[0].mxu0
    %v213 = vadd.f32 0.0, %v212
    %v214 = vpop.f32.mrb[0].mxu0
    %215 = vmatprep.mubr.f32.mxu0 0.0
    %216 = vmatmul.mubr.f32.gmra.mrb[0].mxu0 %v100
    %v217 = vpop.f32.mrb[0].mxu0
    %v218 = vadd.f32 0.0, %v217
    %v219 = vpop.f32.mrb[0].mxu0
    %220 = vmatprep.mubr.f32.mxu0 0.0
    %221 = vmatmul.mubr.f32.gmra.mrb[0].mxu0 %v103
    %v222 = vpop.f32.mrb[0].mxu0
    %v223 = vadd.f32 0.0, %v222
    %v224 = vpop.f32.mrb[0].mxu0
    %225 = vmatprep.mubr.f32.mxu0 0.0
    %226 = vmatmul.mubr.f32.gmra.mrb[0].mxu0 %v106
    %v227 = vpop.f32.mrb[0].mxu0
    %v228 = vadd.f32 0.0, %v227
    %v229 = vpop.f32.mrb[0].mxu0
    %230 = vmatprep.mubr.f32.mxu0 0.0
    %231 = vmatmul.mubr.f32.gmra.mrb[0].mxu0 %v109
    %v232 = vpop.f32.mrb[0].mxu0
    %v233 = vadd.f32 0.0, %v232
    %v234 = vpop.f32.mrb[0].mxu0
    %235 = vdwg.mxu0
    %v237 = vsel %vm74, %v18, 0
    %v240 = vsel %vm74, %v19, 0
    %v243 = vsel %vm74, %v26, 0
    %v246 = vsel %vm74, %v27, 0
    %v249 = vsel %vm74, %v34, 0
    %v252 = vsel %vm74, %v35, 0
    %v255 = vsel %vm74, %v42, 0
    %v258 = vsel %vm74, %v43, 0
    %v261 = vsel %vm74, %v50, 0
    %v264 = vsel %vm74, %v51, 0
    %v267 = vsel %vm74, %v58, 0
    %v270 = vsel %vm74, %v59, 0
    %272 = vmatprep.subr.mxu0 0.0
    %273 = vmatpush1.msra.mxu0 %v66
    %274 = vmatprep.subr.mxu0 0.0
    %275 = vmatpush1.msra.mxu0 %v67
    %276 = vmatprep.subr.mxu0 0.0
    %277 = vmatpush1.msra.mxu0 0.0
    %278 = vmatprep.subr.mxu0 0.0
    %279 = vmatpush1.msra.mxu0 0.0
    %280 = vmatprep.subr.mxu0 0.0
    %281 = vmatpush1.msra.mxu0 0.0
    %282 = vmatprep.subr.mxu0 0.0
    %283 = vmatpush1.msra.mxu0 0.0
    %284 = vmatprep.subr.mxu0 0.0
    %285 = vmatpush1.msra.mxu0 0.0
    %286 = vmatprep.subr.mxu0 0.0
    %287 = vmatpush1.msra.mxu0 0.0
    %288 = vmatprep.subr.mxu0 0.0
    %289 = vmatpush1.msra.mxu0 0.0
    %290 = vmatprep.subr.mxu0 0.0
    %291 = vmatpush1.msra.mxu0 0.0
    %292 = vmatprep.subr.mxu0 0.0
    %293 = vmatpush1.msra.mxu0 0.0
    %294 = vmatprep.subr.mxu0 0.0
    %295 = vmatpush1.msra.mxu0 0.0
    %296 = vmatprep.subr.mxu0 0.0
    %297 = vmatpush1.msra.mxu0 0.0
    %298 = vmatprep.subr.mxu0 0.0
    %299 = vmatpush1.msra.mxu0 0.0
    %300 = vmatprep.subr.mxu0 0.0
    %301 = vmatpush1.msra.mxu0 0.0
    %302 = vmatprep.subr.mxu0 0.0
    %303 = vmatpush1.msra.mxu0 0.0
    %304 = vmatprep.subr.mxu0 0.0
    %305 = vmatpush1.msra.mxu0 0.0
    %306 = vmatprep.subr.mxu0 0.0
    %307 = vmatpush1.msra.mxu0 0.0
    %308 = vmatprep.subr.mxu0 0.0
    %309 = vmatpush1.msra.mxu0 0.0
    %310 = vmatprep.subr.mxu0 0.0
    %311 = vmatpush1.msra.mxu0 0.0
    %312 = vmatprep.subr.mxu0 0.0
    %313 = vmatpush1.msra.mxu0 0.0
    %314 = vmatprep.subr.mxu0 0.0
    %315 = vmatpush1.msra.mxu0 0.0
    %316 = vmatprep.subr.mxu0 0.0
    %317 = vmatpush1.msra.mxu0 0.0
    %318 = vmatprep.subr.mxu0 0.0
    %319 = vmatpush1.msra.mxu0 0.0
    %320 = vmatprep.subr.mxu0 0.0
    %321 = vmatpush1.msra.mxu0 0.0
    %322 = vmatprep.subr.mxu0 0.0
    %323 = vmatpush1.msra.mxu0 0.0
    %324 = vmatprep.subr.mxu0 0.0
    %325 = vmatpush1.msra.mxu0 0.0
    %326 = vmatprep.subr.mxu0 0.0
    %327 = vmatpush1.msra.mxu0 0.0
    %328 = vmatprep.subr.mxu0 0.0
    %329 = vmatpush1.msra.mxu0 0.0
    %330 = vmatprep.subr.mxu0 0.0
    %331 = vmatpush1.msra.mxu0 0.0
    %332 = vmatprep.subr.mxu0 0.0
    %333 = vmatpush1.msra.mxu0 0.0
    %334 = vmatprep.subr.mxu0 0.0
    %335 = vmatpush1.msra.mxu0 0.0
    %336 = vmatprep.mubr.f32.mxu0 0.0
    %337 = vmatmul.mubr.f32.gmra.mrb[0].mxu0 %v237
    %v338 = vpop.f32.mrb[0].mxu0
    %v339 = vadd.f32 %v178, %v338
    %v340 = vpop.f32.mrb[0].mxu0
    %341 = vmatprep.mubr.f32.mxu0 0.0
    %342 = vmatmul.mubr.f32.gmra.mrb[0].mxu0 %v240
    %v343 = vpop.f32.mrb[0].mxu0
    %v344 = vadd.f32 %v183, %v343
    %v345 = vpop.f32.mrb[0].mxu0
    %346 = vmatprep.mubr.f32.mxu0 0.0
    %347 = vmatmul.mubr.f32.gmra.mrb[0].mxu0 %v243
    %v348 = vpop.f32.mrb[0].mxu0
    %v349 = vadd.f32 %v188, %v348
    %v350 = vpop.f32.mrb[0].mxu0
    %351 = vmatprep.mubr.f32.mxu0 0.0
    %352 = vmatmul.mubr.f32.gmra.mrb[0].mxu0 %v246
    %v353 = vpop.f32.mrb[0].mxu0
    %v354 = vadd.f32 %v193, %v353
    %v355 = vpop.f32.mrb[0].mxu0
    %356 = vmatprep.mubr.f32.mxu0 0.0
    %357 = vmatmul.mubr.f32.gmra.mrb[0].mxu0 %v249
    %v358 = vpop.f32.mrb[0].mxu0
    %v359 = vadd.f32 %v198, %v358
    %v360 = vpop.f32.mrb[0].mxu0
    %361 = vmatprep.mubr.f32.mxu0 0.0
    %362 = vmatmul.mubr.f32.gmra.mrb[0].mxu0 %v252
    %v363 = vpop.f32.mrb[0].mxu0
    %v364 = vadd.f32 %v203, %v363
    %v365 = vpop.f32.mrb[0].mxu0
    %366 = vmatprep.mubr.f32.mxu0 0.0
    %367 = vmatmul.mubr.f32.gmra.mrb[0].mxu0 %v255
    %v368 = vpop.f32.mrb[0].mxu0
    %v369 = vadd.f32 %v208, %v368
    %v370 = vpop.f32.mrb[0].mxu0
    %371 = vmatprep.mubr.f32.mxu0 0.0
    %372 = vmatmul.mubr.f32.gmra.mrb[0].mxu0 %v258
    %v373 = vpop.f32.mrb[0].mxu0
    %v374 = vadd.f32 %v213, %v373
    %v375 = vpop.f32.mrb[0].mxu0
    %376 = vmatprep.mubr.f32.mxu0 0.0
    %377 = vmatmul.mubr.f32.gmra.mrb[0].mxu0 %v261
    %v378 = vpop.f32.mrb[0].mxu0
    %v379 = vadd.f32 %v218, %v378
    %v380 = vpop.f32.mrb[0].mxu0
    %381 = vmatprep.mubr.f32.mxu0 0.0
    %382 = vmatmul.mubr.f32.gmra.mrb[0].mxu0 %v264
    %v383 = vpop.f32.mrb[0].mxu0
    %v384 = vadd.f32 %v223, %v383
    %v385 = vpop.f32.mrb[0].mxu0
    %386 = vmatprep.mubr.f32.mxu0 0.0
    %387 = vmatmul.mubr.f32.gmra.mrb[0].mxu0 %v267
    %v388 = vpop.f32.mrb[0].mxu0
    %v389 = vadd.f32 %v228, %v388
    %v390 = vpop.f32.mrb[0].mxu0
    %391 = vmatprep.mubr.f32.mxu0 0.0
    %392 = vmatmul.mubr.f32.gmra.mrb[0].mxu0 %v270
    %v393 = vpop.f32.mrb[0].mxu0
    %v394 = vadd.f32 %v233, %v393
    %v395 = vpop.f32.mrb[0].mxu0
    %396 = vdwg.mxu0
    %v398 = vsel %vm74, %v22, 0
    %v401 = vsel %vm74, %v23, 0
    %v404 = vsel %vm74, %v30, 0
    %v407 = vsel %vm74, %v31, 0
    %v410 = vsel %vm74, %v38, 0
    %v413 = vsel %vm74, %v39, 0
    %v416 = vsel %vm74, %v46, 0
    %v419 = vsel %vm74, %v47, 0
    %v422 = vsel %vm74, %v54, 0
    %v425 = vsel %vm74, %v55, 0
    %v428 = vsel %vm74, %v62, 0
    %v431 = vsel %vm74, %v63, 0
    %433 = vmatprep.subr.mxu0 0.0
    %434 = vmatpush1.msra.mxu0 %v70
    %435 = vmatprep.subr.mxu0 0.0
    %436 = vmatpush1.msra.mxu0 %v71
    %437 = vmatprep.subr.mxu0 0.0
    %438 = vmatpush1.msra.mxu0 0.0
    %439 = vmatprep.subr.mxu0 0.0
    %440 = vmatpush1.msra.mxu0 0.0
    %441 = vmatprep.subr.mxu0 0.0
    %442 = vmatpush1.msra.mxu0 0.0
    %443 = vmatprep.subr.mxu0 0.0
    %444 = vmatpush1.msra.mxu0 0.0
    %445 = vmatprep.subr.mxu0 0.0
    %446 = vmatpush1.msra.mxu0 0.0
    %447 = vmatprep.subr.mxu0 0.0
    %448 = vmatpush1.msra.mxu0 0.0
    %449 = vmatprep.subr.mxu0 0.0
    %450 = vmatpush1.msra.mxu0 0.0
    %451 = vmatprep.subr.mxu0 0.0
    %452 = vmatpush1.msra.mxu0 0.0
    %453 = vmatprep.subr.mxu0 0.0
    %454 = vmatpush1.msra.mxu0 0.0
    %455 = vmatprep.subr.mxu0 0.0
    %456 = vmatpush1.msra.mxu0 0.0
    %457 = vmatprep.subr.mxu0 0.0
    %458 = vmatpush1.msra.mxu0 0.0
    %459 = vmatprep.subr.mxu0 0.0
    %460 = vmatpush1.msra.mxu0 0.0
    %461 = vmatprep.subr.mxu0 0.0
    %462 = vmatpush1.msra.mxu0 0.0
    %463 = vmatprep.subr.mxu0 0.0
    %464 = vmatpush1.msra.mxu0 0.0
    %465 = vmatprep.subr.mxu0 0.0
    %466 = vmatpush1.msra.mxu0 0.0
    %467 = vmatprep.subr.mxu0 0.0
    %468 = vmatpush1.msra.mxu0 0.0
    %469 = vmatprep.subr.mxu0 0.0
    %470 = vmatpush1.msra.mxu0 0.0
    %471 = vmatprep.subr.mxu0 0.0
    %472 = vmatpush1.msra.mxu0 0.0
    %473 = vmatprep.subr.mxu0 0.0
    %474 = vmatpush1.msra.mxu0 0.0
    %475 = vmatprep.subr.mxu0 0.0
    %476 = vmatpush1.msra.mxu0 0.0
    %477 = vmatprep.subr.mxu0 0.0
    %478 = vmatpush1.msra.mxu0 0.0
    %479 = vmatprep.subr.mxu0 0.0
    %480 = vmatpush1.msra.mxu0 0.0
    %481 = vmatprep.subr.mxu0 0.0
    %482 = vmatpush1.msra.mxu0 0.0
    %483 = vmatprep.subr.mxu0 0.0
    %484 = vmatpush1.msra.mxu0 0.0
    %485 = vmatprep.subr.mxu0 0.0
    %486 = vmatpush1.msra.mxu0 0.0
    %487 = vmatprep.subr.mxu0 0.0
    %488 = vmatpush1.msra.mxu0 0.0
    %489 = vmatprep.subr.mxu0 0.0
    %490 = vmatpush1.msra.mxu0 0.0
    %491 = vmatprep.subr.mxu0 0.0
    %492 = vmatpush1.msra.mxu0 0.0
    %493 = vmatprep.subr.mxu0 0.0
    %494 = vmatpush1.msra.mxu0 0.0
    %495 = vmatprep.subr.mxu0 0.0
    %496 = vmatpush1.msra.mxu0 0.0
    %497 = vmatprep.mubr.f32.mxu0 0.0
    %498 = vmatmul.mubr.f32.gmra.mrb[0].mxu0 %v398
    %v499 = vpop.f32.mrb[0].mxu0
    %v500 = vadd.f32 0.0, %v499
    %v501 = vpop.f32.mrb[0].mxu0
    %502 = vmatprep.mubr.f32.mxu0 0.0
    %503 = vmatmul.mubr.f32.gmra.mrb[0].mxu0 %v401
    %v504 = vpop.f32.mrb[0].mxu0
    %v505 = vadd.f32 0.0, %v504
    %v506 = vpop.f32.mrb[0].mxu0
    %507 = vmatprep.mubr.f32.mxu0 0.0
    %508 = vmatmul.mubr.f32.gmra.mrb[0].mxu0 %v404
    %v509 = vpop.f32.mrb[0].mxu0
    %v510 = vadd.f32 0.0, %v509
    %v511 = vpop.f32.mrb[0].mxu0
    %512 = vmatprep.mubr.f32.mxu0 0.0
    %513 = vmatmul.mubr.f32.gmra.mrb[0].mxu0 %v407
    %v514 = vpop.f32.mrb[0].mxu0
    %v515 = vadd.f32 0.0, %v514
    %v516 = vpop.f32.mrb[0].mxu0
    %517 = vmatprep.mubr.f32.mxu0 0.0
    %518 = vmatmul.mubr.f32.gmra.mrb[0].mxu0 %v410
    %v519 = vpop.f32.mrb[0].mxu0
    %v520 = vadd.f32 0.0, %v519
    %v521 = vpop.f32.mrb[0].mxu0
    %522 = vmatprep.mubr.f32.mxu0 0.0
    %523 = vmatmul.mubr.f32.gmra.mrb[0].mxu0 %v413
    %v524 = vpop.f32.mrb[0].mxu0
    %v525 = vadd.f32 0.0, %v524
    %v526 = vpop.f32.mrb[0].mxu0
    %527 = vmatprep.mubr.f32.mxu0 0.0
    %528 = vmatmul.mubr.f32.gmra.mrb[0].mxu0 %v416
    %v529 = vpop.f32.mrb[0].mxu0
    %v530 = vadd.f32 0.0, %v529
    %v531 = vpop.f32.mrb[0].mxu0
    %532 = vmatprep.mubr.f32.mxu0 0.0
    %533 = vmatmul.mubr.f32.gmra.mrb[0].mxu0 %v419
    %v534 = vpop.f32.mrb[0].mxu0
    %v535 = vadd.f32 0.0, %v534
    %v536 = vpop.f32.mrb[0].mxu0
    %537 = vmatprep.mubr.f32.mxu0 0.0
    %538 = vmatmul.mubr.f32.gmra.mrb[0].mxu0 %v422
    %v539 = vpop.f32.mrb[0].mxu0
    %v540 = vadd.f32 0.0, %v539
    %v541 = vpop.f32.mrb[0].mxu0
    %542 = vmatprep.mubr.f32.mxu0 0.0
    %543 = vmatmul.mubr.f32.gmra.mrb[0].mxu0 %v425
    %v544 = vpop.f32.mrb[0].mxu0
    %v545 = vadd.f32 0.0, %v544
    %v546 = vpop.f32.mrb[0].mxu0
    %547 = vmatprep.mubr.f32.mxu0 0.0
    %548 = vmatmul.mubr.f32.gmra.mrb[0].mxu0 %v428
    %v549 = vpop.f32.mrb[0].mxu0
    %v550 = vadd.f32 0.0, %v549
    %v551 = vpop.f32.mrb[0].mxu0
    %552 = vmatprep.mubr.f32.mxu0 0.0
    %553 = vmatmul.mubr.f32.gmra.mrb[0].mxu0 %v431
    %v554 = vpop.f32.mrb[0].mxu0
    %v555 = vadd.f32 0.0, %v554
    %v556 = vpop.f32.mrb[0].mxu0
    %557 = vdwg.mxu0
    %v558 = vadd.f32 %v339, %v500
    %v559 = vadd.f32 %v344, %v505
    %v560 = vadd.f32 %v349, %v510
    %v561 = vadd.f32 %v354, %v515
    %v562 = vadd.f32 %v359, %v520
    %v563 = vadd.f32 %v364, %v525
    %v564 = vadd.f32 %v369, %v530
    %v565 = vadd.f32 %v374, %v535
    %v566 = vadd.f32 %v379, %v540
    %v567 = vadd.f32 %v384, %v545
    %v568 = vadd.f32 %v389, %v550
    %v569 = vadd.f32 %v394, %v555
    %v571 = vsel %vm74, %v24, 0
    %v574 = vsel %vm74, %v25, 0
    %v577 = vsel %vm74, %v32, 0
    %v580 = vsel %vm74, %v33, 0
    %v583 = vsel %vm74, %v40, 0
    %v586 = vsel %vm74, %v41, 0
    %v589 = vsel %vm74, %v48, 0
    %v592 = vsel %vm74, %v49, 0
    %v595 = vsel %vm74, %v56, 0
    %v598 = vsel %vm74, %v57, 0
    %v601 = vsel %vm74, %v64, 0
    %v604 = vsel %vm74, %v65, 0
    %606 = vmatprep.subr.mxu0 0.0
    %607 = vmatpush1.msra.mxu0 %v72
    %608 = vmatprep.subr.mxu0 0.0
    %609 = vmatpush1.msra.mxu0 %v73
    %610 = vmatprep.subr.mxu0 0.0
    %611 = vmatpush1.msra.mxu0 0.0
    %612 = vmatprep.subr.mxu0 0.0
    %613 = vmatpush1.msra.mxu0 0.0
    %614 = vmatprep.subr.mxu0 0.0
    %615 = vmatpush1.msra.mxu0 0.0
    %616 = vmatprep.subr.mxu0 0.0
    %617 = vmatpush1.msra.mxu0 0.0
    %618 = vmatprep.subr.mxu0 0.0
    %619 = vmatpush1.msra.mxu0 0.0
    %620 = vmatprep.subr.mxu0 0.0
    %621 = vmatpush1.msra.mxu0 0.0
    %622 = vmatprep.subr.mxu0 0.0
    %623 = vmatpush1.msra.mxu0 0.0
    %624 = vmatprep.subr.mxu0 0.0
    %625 = vmatpush1.msra.mxu0 0.0
    %626 = vmatprep.subr.mxu0 0.0
    %627 = vmatpush1.msra.mxu0 0.0
    %628 = vmatprep.subr.mxu0 0.0
    %629 = vmatpush1.msra.mxu0 0.0
    %630 = vmatprep.subr.mxu0 0.0
    %631 = vmatpush1.msra.mxu0 0.0
    %632 = vmatprep.subr.mxu0 0.0
    %633 = vmatpush1.msra.mxu0 0.0
    %634 = vmatprep.subr.mxu0 0.0
    %635 = vmatpush1.msra.mxu0 0.0
    %636 = vmatprep.subr.mxu0 0.0
    %637 = vmatpush1.msra.mxu0 0.0
    %638 = vmatprep.subr.mxu0 0.0
    %639 = vmatpush1.msra.mxu0 0.0
    %640 = vmatprep.subr.mxu0 0.0
    %641 = vmatpush1.msra.mxu0 0.0
    %642 = vmatprep.subr.mxu0 0.0
    %643 = vmatpush1.msra.mxu0 0.0
    %644 = vmatprep.subr.mxu0 0.0
    %645 = vmatpush1.msra.mxu0 0.0
    %646 = vmatprep.subr.mxu0 0.0
    %647 = vmatpush1.msra.mxu0 0.0
    %648 = vmatprep.subr.mxu0 0.0
    %649 = vmatpush1.msra.mxu0 0.0
    %650 = vmatprep.subr.mxu0 0.0
    %651 = vmatpush1.msra.mxu0 0.0
    %652 = vmatprep.subr.mxu0 0.0
    %653 = vmatpush1.msra.mxu0 0.0
    %654 = vmatprep.subr.mxu0 0.0
    %655 = vmatpush1.msra.mxu0 0.0
    %656 = vmatprep.subr.mxu0 0.0
    %657 = vmatpush1.msra.mxu0 0.0
    %658 = vmatprep.subr.mxu0 0.0
    %659 = vmatpush1.msra.mxu0 0.0
    %660 = vmatprep.subr.mxu0 0.0
    %661 = vmatpush1.msra.mxu0 0.0
    %662 = vmatprep.subr.mxu0 0.0
    %663 = vmatpush1.msra.mxu0 0.0
    %664 = vmatprep.subr.mxu0 0.0
    %665 = vmatpush1.msra.mxu0 0.0
    %666 = vmatprep.subr.mxu0 0.0
    %667 = vmatpush1.msra.mxu0 0.0
    %668 = vmatprep.subr.mxu0 0.0
    %669 = vmatpush1.msra.mxu0 0.0
    %670 = vmatprep.mubr.f32.mxu0 0.0
    %671 = vmatmul.mubr.f32.gmra.mrb[0].mxu0 %v571
    %v672 = vpop.f32.mrb[0].mxu0
    %v673 = vadd.f32 0.0, %v672
    %v674 = vpop.f32.mrb[0].mxu0
    %675 = vmatprep.mubr.f32.mxu0 0.0
    %676 = vmatmul.mubr.f32.gmra.mrb[0].mxu0 %v574
    %v677 = vpop.f32.mrb[0].mxu0
    %v678 = vadd.f32 0.0, %v677
    %v679 = vpop.f32.mrb[0].mxu0
    %680 = vmatprep.mubr.f32.mxu0 0.0
    %681 = vmatmul.mubr.f32.gmra.mrb[0].mxu0 %v577
    %v682 = vpop.f32.mrb[0].mxu0
    %v683 = vadd.f32 0.0, %v682
    %v684 = vpop.f32.mrb[0].mxu0
    %685 = vmatprep.mubr.f32.mxu0 0.0
    %686 = vmatmul.mubr.f32.gmra.mrb[0].mxu0 %v580
    %v687 = vpop.f32.mrb[0].mxu0
    %v688 = vadd.f32 0.0, %v687
    %v689 = vpop.f32.mrb[0].mxu0
    %690 = vmatprep.mubr.f32.mxu0 0.0
    %691 = vmatmul.mubr.f32.gmra.mrb[0].mxu0 %v583
    %v692 = vpop.f32.mrb[0].mxu0
    %v693 = vadd.f32 0.0, %v692
    %v694 = vpop.f32.mrb[0].mxu0
    %695 = vmatprep.mubr.f32.mxu0 0.0
    %696 = vmatmul.mubr.f32.gmra.mrb[0].mxu0 %v586
    %v697 = vpop.f32.mrb[0].mxu0
    %v698 = vadd.f32 0.0, %v697
    %v699 = vpop.f32.mrb[0].mxu0
    %700 = vmatprep.mubr.f32.mxu0 0.0
    %701 = vmatmul.mubr.f32.gmra.mrb[0].mxu0 %v589
    %v702 = vpop.f32.mrb[0].mxu0
    %v703 = vadd.f32 0.0, %v702
    %v704 = vpop.f32.mrb[0].mxu0
    %705 = vmatprep.mubr.f32.mxu0 0.0
    %706 = vmatmul.mubr.f32.gmra.mrb[0].mxu0 %v592
    %v707 = vpop.f32.mrb[0].mxu0
    %v708 = vadd.f32 0.0, %v707
    %v709 = vpop.f32.mrb[0].mxu0
    %710 = vmatprep.mubr.f32.mxu0 0.0
    %711 = vmatmul.mubr.f32.gmra.mrb[0].mxu0 %v595
    %v712 = vpop.f32.mrb[0].mxu0
    %v713 = vadd.f32 0.0, %v712
    %v714 = vpop.f32.mrb[0].mxu0
    %715 = vmatprep.mubr.f32.mxu0 0.0
    %716 = vmatmul.mubr.f32.gmra.mrb[0].mxu0 %v598
    %v717 = vpop.f32.mrb[0].mxu0
    %v718 = vadd.f32 0.0, %v717
    %v719 = vpop.f32.mrb[0].mxu0
    %720 = vmatprep.mubr.f32.mxu0 0.0
    %721 = vmatmul.mubr.f32.gmra.mrb[0].mxu0 %v601
    %v722 = vpop.f32.mrb[0].mxu0
    %v723 = vadd.f32 0.0, %v722
    %v724 = vpop.f32.mrb[0].mxu0
    %725 = vmatprep.mubr.f32.mxu0 0.0
    %726 = vmatmul.mubr.f32.gmra.mrb[0].mxu0 %v604
    %v727 = vpop.f32.mrb[0].mxu0
    %v728 = vadd.f32 0.0, %v727
    %v729 = vpop.f32.mrb[0].mxu0
    %730 = vdwg.mxu0
    %v731 = vadd.f32 %v558, %v673
    %v732 = vadd.f32 %v559, %v678
    %v733 = vadd.f32 %v560, %v683
    %v734 = vadd.f32 %v561, %v688
    %v735 = vadd.f32 %v562, %v693
    %v736 = vadd.f32 %v563, %v698
    %v737 = vadd.f32 %v564, %v703
    %v738 = vadd.f32 %v565, %v708
    %v739 = vadd.f32 %v566, %v713
    %v740 = vadd.f32 %v567, %v718
    %v741 = vadd.f32 %v568, %v723
    %v742 = vadd.f32 %v569, %v728
    %755 = vrot.lane.b32.xlu0 %v731, 112
    %v756 = vpop.permute.xlu0 %755
    %757 = vrot.lane.b32.xlu0 %v732, 112
    %v758 = vpop.permute.xlu0 %757
    %759 = vrot.lane.b32.xlu0 %v733, 112
    %v760 = vpop.permute.xlu0 %759
    %761 = vrot.lane.b32.xlu0 %v734, 112
    %v762 = vpop.permute.xlu0 %761
    %763 = vrot.lane.b32.xlu0 %v735, 112
    %v764 = vpop.permute.xlu0 %763
    %765 = vrot.lane.b32.xlu0 %v736, 112
    %v766 = vpop.permute.xlu0 %765
    %767 = vrot.lane.b32.xlu0 %v737, 112
    %v768 = vpop.permute.xlu0 %767
    %769 = vrot.lane.b32.xlu0 %v738, 112
    %v770 = vpop.permute.xlu0 %769
    %771 = vrot.lane.b32.xlu0 %v739, 112
    %v772 = vpop.permute.xlu0 %771
    %773 = vrot.lane.b32.xlu0 %v740, 112
    %v774 = vpop.permute.xlu0 %773
    %775 = vrot.lane.b32.xlu0 %v741, 112
    %v776 = vpop.permute.xlu0 %775
    %777 = vrot.lane.b32.xlu0 %v742, 112
    %v778 = vpop.permute.xlu0 %777
    %791 = vrot.lane.b32.xlu0 %v731, 96
    %v792 = vpop.permute.xlu0 %791
    %793 = vrot.lane.b32.xlu0 %v732, 96
    %v794 = vpop.permute.xlu0 %793
    %795 = vrot.lane.b32.xlu0 %v733, 96
    %v796 = vpop.permute.xlu0 %795
    %797 = vrot.lane.b32.xlu0 %v734, 96
    %v798 = vpop.permute.xlu0 %797
    %799 = vrot.lane.b32.xlu0 %v735, 96
    %v800 = vpop.permute.xlu0 %799
    %801 = vrot.lane.b32.xlu0 %v736, 96
    %v802 = vpop.permute.xlu0 %801
    %803 = vrot.lane.b32.xlu0 %v737, 96
    %v804 = vpop.permute.xlu0 %803
    %805 = vrot.lane.b32.xlu0 %v738, 96
    %v806 = vpop.permute.xlu0 %805
    %807 = vrot.lane.b32.xlu0 %v739, 96
    %v808 = vpop.permute.xlu0 %807
    %809 = vrot.lane.b32.xlu0 %v740, 96
    %v810 = vpop.permute.xlu0 %809
    %811 = vrot.lane.b32.xlu0 %v741, 96
    %v812 = vpop.permute.xlu0 %811
    %813 = vrot.lane.b32.xlu0 %v742, 96
    %v814 = vpop.permute.xlu0 %813
    %827 = vrot.lane.b32.xlu0 %v731, 80
    %v828 = vpop.permute.xlu0 %827
    %829 = vrot.lane.b32.xlu0 %v732, 80
    %v830 = vpop.permute.xlu0 %829
    %831 = vrot.lane.b32.xlu0 %v733, 80
    %v832 = vpop.permute.xlu0 %831
    %833 = vrot.lane.b32.xlu0 %v734, 80
    %v834 = vpop.permute.xlu0 %833
    %835 = vrot.lane.b32.xlu0 %v735, 80
    %v836 = vpop.permute.xlu0 %835
    %837 = vrot.lane.b32.xlu0 %v736, 80
    %v838 = vpop.permute.xlu0 %837
    %839 = vrot.lane.b32.xlu0 %v737, 80
    %v840 = vpop.permute.xlu0 %839
    %841 = vrot.lane.b32.xlu0 %v738, 80
    %v842 = vpop.permute.xlu0 %841
    %843 = vrot.lane.b32.xlu0 %v739, 80
    %v844 = vpop.permute.xlu0 %843
    %845 = vrot.lane.b32.xlu0 %v740, 80
    %v846 = vpop.permute.xlu0 %845
    %847 = vrot.lane.b32.xlu0 %v741, 80
    %v848 = vpop.permute.xlu0 %847
    %849 = vrot.lane.b32.xlu0 %v742, 80
    %v850 = vpop.permute.xlu0 %849
    %v863 = vcombine.low %v731, %v792
    %v864 = vcombine.high %v731, %v792
    %v866 = vunpack.c.l.s4 1983009808
    %v867 = vunpack.c.0.s8 %v866
    %v868 = vlaneseq
    %v869 = vshrl.u32 %v868, 7
    %v870 = vsub.s32 %v867, %v869
    %v871 = vrot.slane %v863, %v870
    %v873 = vunpack.c.l.s4 1983009808
    %v874 = vunpack.c.0.s8 %v873
    %v875 = vlaneseq
    %v876 = vshrl.u32 %v875, 7
    %v877 = vsub.s32 %v874, %v876
    %v878 = vrot.slane %v864, %v877
    %v879 = vcombine.low %v756, %v828
    %v880 = vcombine.high %v756, %v828
    %v882 = vunpack.c.l.s4 1983009808
    %v883 = vunpack.c.0.s8 %v882
    %v884 = vlaneseq
    %v885 = vshrl.u32 %v884, 7
    %v886 = vsub.s32 %v883, %v885
    %v887 = vrot.slane %v879, %v886
    %v889 = vunpack.c.l.s4 1983009808
    %v890 = vunpack.c.0.s8 %v889
    %v891 = vlaneseq
    %v892 = vshrl.u32 %v891, 7
    %v893 = vsub.s32 %v890, %v892
    %v894 = vrot.slane %v880, %v893
    %v895 = vcombine.low %v871, %v887
    %v896 = vcombine.high %v871, %v887
    %v898 = vunpack.c.l.s4 1934713408
    %v899 = vunpack.c.0.s8 %v898
    %v900 = vlaneseq
    %v901 = vshrl.u32 %v900, 7
    %v902 = vsub.s32 %v899, %v901
    %v903 = vrot.slane %v895, %v902
    %v905 = vunpack.c.l.s4 1934713408
    %v906 = vunpack.c.0.s8 %v905
    %v907 = vlaneseq
    %v908 = vshrl.u32 %v907, 7
    %v909 = vsub.s32 %v906, %v908
    %v910 = vrot.slane %v896, %v909
    %v911 = vcombine.low %v878, %v894
    %v912 = vcombine.high %v878, %v894
    %v914 = vunpack.c.l.s4 1934713408
    %v915 = vunpack.c.0.s8 %v914
    %v916 = vlaneseq
    %v917 = vshrl.u32 %v916, 7
    %v918 = vsub.s32 %v915, %v917
    %v919 = vrot.slane %v911, %v918
    %v921 = vunpack.c.l.s4 1934713408
    %v922 = vunpack.c.0.s8 %v921
    %v923 = vlaneseq
    %v924 = vshrl.u32 %v923, 7
    %v925 = vsub.s32 %v922, %v924
    %v926 = vrot.slane %v912, %v925
    %v927 = vcombine.high %v903, 0.0
    %v928 = vcombine.high %v910, 0.0
    %v929 = vcombine.high %v919, 0.0
    %v930 = vcombine.high %v926, 0.0
    %v931 = vcombine.low %v732, %v794
    %v932 = vcombine.high %v732, %v794
    %v934 = vunpack.c.l.s4 1983009808
    %v935 = vunpack.c.0.s8 %v934
    %v936 = vlaneseq
    %v937 = vshrl.u32 %v936, 7
    %v938 = vsub.s32 %v935, %v937
    %v939 = vrot.slane %v931, %v938
    %v941 = vunpack.c.l.s4 1983009808
    %v942 = vunpack.c.0.s8 %v941
    %v943 = vlaneseq
    %v944 = vshrl.u32 %v943, 7
    %v945 = vsub.s32 %v942, %v944
    %v946 = vrot.slane %v932, %v945
    %v947 = vcombine.low %v758, %v830
    %v948 = vcombine.high %v758, %v830
    %v950 = vunpack.c.l.s4 1983009808
    %v951 = vunpack.c.0.s8 %v950
    %v952 = vlaneseq
    %v953 = vshrl.u32 %v952, 7
    %v954 = vsub.s32 %v951, %v953
    %v955 = vrot.slane %v947, %v954
    %v957 = vunpack.c.l.s4 1983009808
    %v958 = vunpack.c.0.s8 %v957
    %v959 = vlaneseq
    %v960 = vshrl.u32 %v959, 7
    %v961 = vsub.s32 %v958, %v960
    %v962 = vrot.slane %v948, %v961
    %v963 = vcombine.low %v939, %v955
    %v964 = vcombine.high %v939, %v955
    %v966 = vunpack.c.l.s4 1934713408
    %v967 = vunpack.c.0.s8 %v966
    %v968 = vlaneseq
    %v969 = vshrl.u32 %v968, 7
    %v970 = vsub.s32 %v967, %v969
    %v971 = vrot.slane %v963, %v970
    %v973 = vunpack.c.l.s4 1934713408
    %v974 = vunpack.c.0.s8 %v973
    %v975 = vlaneseq
    %v976 = vshrl.u32 %v975, 7
    %v977 = vsub.s32 %v974, %v976
    %v978 = vrot.slane %v964, %v977
    %v979 = vcombine.low %v946, %v962
    %v980 = vcombine.high %v946, %v962
    %v982 = vunpack.c.l.s4 1934713408
    %v983 = vunpack.c.0.s8 %v982
    %v984 = vlaneseq
    %v985 = vshrl.u32 %v984, 7
    %v986 = vsub.s32 %v983, %v985
    %v987 = vrot.slane %v979, %v986
    %v989 = vunpack.c.l.s4 1934713408
    %v990 = vunpack.c.0.s8 %v989
    %v991 = vlaneseq
    %v992 = vshrl.u32 %v991, 7
    %v993 = vsub.s32 %v990, %v992
    %v994 = vrot.slane %v980, %v993
    %v995 = vcombine.high %v971, 0.0
    %v996 = vcombine.high %v978, 0.0
    %v997 = vcombine.high %v987, 0.0
    %v998 = vcombine.high %v994, 0.0
    %v999 = vcombine.low %v733, %v796
    %v1000 = vcombine.high %v733, %v796
    %v1002 = vunpack.c.l.s4 1983009808
    %v1003 = vunpack.c.0.s8 %v1002
    %v1004 = vlaneseq
    %v1005 = vshrl.u32 %v1004, 7
    %v1006 = vsub.s32 %v1003, %v1005
    %v1007 = vrot.slane %v999, %v1006
    %v1009 = vunpack.c.l.s4 1983009808
    %v1010 = vunpack.c.0.s8 %v1009
    %v1011 = vlaneseq
    %v1012 = vshrl.u32 %v1011, 7
    %v1013 = vsub.s32 %v1010, %v1012
    %v1014 = vrot.slane %v1000, %v1013
    %v1015 = vcombine.low %v760, %v832
    %v1016 = vcombine.high %v760, %v832
    %v1018 = vunpack.c.l.s4 1983009808
    %v1019 = vunpack.c.0.s8 %v1018
    %v1020 = vlaneseq
    %v1021 = vshrl.u32 %v1020, 7
    %v1022 = vsub.s32 %v1019, %v1021
    %v1023 = vrot.slane %v1015, %v1022
    %v1025 = vunpack.c.l.s4 1983009808
    %v1026 = vunpack.c.0.s8 %v1025
    %v1027 = vlaneseq
    %v1028 = vshrl.u32 %v1027, 7
    %v1029 = vsub.s32 %v1026, %v1028
    %v1030 = vrot.slane %v1016, %v1029
    %v1031 = vcombine.low %v1007, %v1023
    %v1032 = vcombine.high %v1007, %v1023
    %v1034 = vunpack.c.l.s4 1934713408
    %v1035 = vunpack.c.0.s8 %v1034
    %v1036 = vlaneseq
    %v1037 = vshrl.u32 %v1036, 7
    %v1038 = vsub.s32 %v1035, %v1037
    %v1039 = vrot.slane %v1031, %v1038
    %v1041 = vunpack.c.l.s4 1934713408
    %v1042 = vunpack.c.0.s8 %v1041
    %v1043 = vlaneseq
    %v1044 = vshrl.u32 %v1043, 7
    %v1045 = vsub.s32 %v1042, %v1044
    %v1046 = vrot.slane %v1032, %v1045
    %v1047 = vcombine.low %v1014, %v1030
    %v1048 = vcombine.high %v1014, %v1030
    %v1050 = vunpack.c.l.s4 1934713408
    %v1051 = vunpack.c.0.s8 %v1050
    %v1052 = vlaneseq
    %v1053 = vshrl.u32 %v1052, 7
    %v1054 = vsub.s32 %v1051, %v1053
    %v1055 = vrot.slane %v1047, %v1054
    %v1057 = vunpack.c.l.s4 1934713408
    %v1058 = vunpack.c.0.s8 %v1057
    %v1059 = vlaneseq
    %v1060 = vshrl.u32 %v1059, 7
    %v1061 = vsub.s32 %v1058, %v1060
    %v1062 = vrot.slane %v1048, %v1061
    %v1063 = vcombine.high %v1039, 0.0
    %v1064 = vcombine.high %v1046, 0.0
    %v1065 = vcombine.high %v1055, 0.0
    %v1066 = vcombine.high %v1062, 0.0
    %v1067 = vcombine.low %v734, %v798
    %v1068 = vcombine.high %v734, %v798
    %v1070 = vunpack.c.l.s4 1983009808
    %v1071 = vunpack.c.0.s8 %v1070
    %v1072 = vlaneseq
    %v1073 = vshrl.u32 %v1072, 7
    %v1074 = vsub.s32 %v1071, %v1073
    %v1075 = vrot.slane %v1067, %v1074
    %v1077 = vunpack.c.l.s4 1983009808
    %v1078 = vunpack.c.0.s8 %v1077
    %v1079 = vlaneseq
    %v1080 = vshrl.u32 %v1079, 7
    %v1081 = vsub.s32 %v1078, %v1080
    %v1082 = vrot.slane %v1068, %v1081
    %v1083 = vcombine.low %v762, %v834
    %v1084 = vcombine.high %v762, %v834
    %v1086 = vunpack.c.l.s4 1983009808
    %v1087 = vunpack.c.0.s8 %v1086
    %v1088 = vlaneseq
    %v1089 = vshrl.u32 %v1088, 7
    %v1090 = vsub.s32 %v1087, %v1089
    %v1091 = vrot.slane %v1083, %v1090
    %v1093 = vunpack.c.l.s4 1983009808
    %v1094 = vunpack.c.0.s8 %v1093
    %v1095 = vlaneseq
    %v1096 = vshrl.u32 %v1095, 7
    %v1097 = vsub.s32 %v1094, %v1096
    %v1098 = vrot.slane %v1084, %v1097
    %v1099 = vcombine.low %v1075, %v1091
    %v1100 = vcombine.high %v1075, %v1091
    %v1102 = vunpack.c.l.s4 1934713408
    %v1103 = vunpack.c.0.s8 %v1102
    %v1104 = vlaneseq
    %v1105 = vshrl.u32 %v1104, 7
    %v1106 = vsub.s32 %v1103, %v1105
    %v1107 = vrot.slane %v1099, %v1106
    %v1109 = vunpack.c.l.s4 1934713408
    %v1110 = vunpack.c.0.s8 %v1109
    %v1111 = vlaneseq
    %v1112 = vshrl.u32 %v1111, 7
    %v1113 = vsub.s32 %v1110, %v1112
    %v1114 = vrot.slane %v1100, %v1113
    %v1115 = vcombine.low %v1082, %v1098
    %v1116 = vcombine.high %v1082, %v1098
    %v1118 = vunpack.c.l.s4 1934713408
    %v1119 = vunpack.c.0.s8 %v1118
    %v1120 = vlaneseq
    %v1121 = vshrl.u32 %v1120, 7
    %v1122 = vsub.s32 %v1119, %v1121
    %v1123 = vrot.slane %v1115, %v1122
    %v1125 = vunpack.c.l.s4 1934713408
    %v1126 = vunpack.c.0.s8 %v1125
    %v1127 = vlaneseq
    %v1128 = vshrl.u32 %v1127, 7
    %v1129 = vsub.s32 %v1126, %v1128
    %v1130 = vrot.slane %v1116, %v1129
    %v1131 = vcombine.high %v1107, 0.0
    %v1132 = vcombine.high %v1114, 0.0
    %v1133 = vcombine.high %v1123, 0.0
    %v1134 = vcombine.high %v1130, 0.0
    %v1135 = vcombine.low %v735, %v800
    %v1136 = vcombine.high %v735, %v800
    %v1138 = vunpack.c.l.s4 1983009808
    %v1139 = vunpack.c.0.s8 %v1138
    %v1140 = vlaneseq
    %v1141 = vshrl.u32 %v1140, 7
    %v1142 = vsub.s32 %v1139, %v1141
    %v1143 = vrot.slane %v1135, %v1142
    %v1145 = vunpack.c.l.s4 1983009808
    %v1146 = vunpack.c.0.s8 %v1145
    %v1147 = vlaneseq
    %v1148 = vshrl.u32 %v1147, 7
    %v1149 = vsub.s32 %v1146, %v1148
    %v1150 = vrot.slane %v1136, %v1149
    %v1151 = vcombine.low %v764, %v836
    %v1152 = vcombine.high %v764, %v836
    %v1154 = vunpack.c.l.s4 1983009808
    %v1155 = vunpack.c.0.s8 %v1154
    %v1156 = vlaneseq
    %v1157 = vshrl.u32 %v1156, 7
    %v1158 = vsub.s32 %v1155, %v1157
    %v1159 = vrot.slane %v1151, %v1158
    %v1161 = vunpack.c.l.s4 1983009808
    %v1162 = vunpack.c.0.s8 %v1161
    %v1163 = vlaneseq
    %v1164 = vshrl.u32 %v1163, 7
    %v1165 = vsub.s32 %v1162, %v1164
    %v1166 = vrot.slane %v1152, %v1165
    %v1167 = vcombine.low %v1143, %v1159
    %v1168 = vcombine.high %v1143, %v1159
    %v1170 = vunpack.c.l.s4 1934713408
    %v1171 = vunpack.c.0.s8 %v1170
    %v1172 = vlaneseq
    %v1173 = vshrl.u32 %v1172, 7
    %v1174 = vsub.s32 %v1171, %v1173
    %v1175 = vrot.slane %v1167, %v1174
    %v1177 = vunpack.c.l.s4 1934713408
    %v1178 = vunpack.c.0.s8 %v1177
    %v1179 = vlaneseq
    %v1180 = vshrl.u32 %v1179, 7
    %v1181 = vsub.s32 %v1178, %v1180
    %v1182 = vrot.slane %v1168, %v1181
    %v1183 = vcombine.low %v1150, %v1166
    %v1184 = vcombine.high %v1150, %v1166
    %v1186 = vunpack.c.l.s4 1934713408
    %v1187 = vunpack.c.0.s8 %v1186
    %v1188 = vlaneseq
    %v1189 = vshrl.u32 %v1188, 7
    %v1190 = vsub.s32 %v1187, %v1189
    %v1191 = vrot.slane %v1183, %v1190
    %v1193 = vunpack.c.l.s4 1934713408
    %v1194 = vunpack.c.0.s8 %v1193
    %v1195 = vlaneseq
    %v1196 = vshrl.u32 %v1195, 7
    %v1197 = vsub.s32 %v1194, %v1196
    %v1198 = vrot.slane %v1184, %v1197
    %v1199 = vcombine.high %v1175, 0.0
    %v1200 = vcombine.high %v1182, 0.0
    %v1201 = vcombine.high %v1191, 0.0
    %v1202 = vcombine.high %v1198, 0.0
    %v1203 = vcombine.low %v736, %v802
    %v1204 = vcombine.high %v736, %v802
    %v1206 = vunpack.c.l.s4 1983009808
    %v1207 = vunpack.c.0.s8 %v1206
    %v1208 = vlaneseq
    %v1209 = vshrl.u32 %v1208, 7
    %v1210 = vsub.s32 %v1207, %v1209
    %v1211 = vrot.slane %v1203, %v1210
    %v1213 = vunpack.c.l.s4 1983009808
    %v1214 = vunpack.c.0.s8 %v1213
    %v1215 = vlaneseq
    %v1216 = vshrl.u32 %v1215, 7
    %v1217 = vsub.s32 %v1214, %v1216
    %v1218 = vrot.slane %v1204, %v1217
    %v1219 = vcombine.low %v766, %v838
    %v1220 = vcombine.high %v766, %v838
    %v1222 = vunpack.c.l.s4 1983009808
    %v1223 = vunpack.c.0.s8 %v1222
    %v1224 = vlaneseq
    %v1225 = vshrl.u32 %v1224, 7
    %v1226 = vsub.s32 %v1223, %v1225
    %v1227 = vrot.slane %v1219, %v1226
    %v1229 = vunpack.c.l.s4 1983009808
    %v1230 = vunpack.c.0.s8 %v1229
    %v1231 = vlaneseq
    %v1232 = vshrl.u32 %v1231, 7
    %v1233 = vsub.s32 %v1230, %v1232
    %v1234 = vrot.slane %v1220, %v1233
    %v1235 = vcombine.low %v1211, %v1227
    %v1236 = vcombine.high %v1211, %v1227
    %v1238 = vunpack.c.l.s4 1934713408
    %v1239 = vunpack.c.0.s8 %v1238
    %v1240 = vlaneseq
    %v1241 = vshrl.u32 %v1240, 7
    %v1242 = vsub.s32 %v1239, %v1241
    %v1243 = vrot.slane %v1235, %v1242
    %v1245 = vunpack.c.l.s4 1934713408
    %v1246 = vunpack.c.0.s8 %v1245
    %v1247 = vlaneseq
    %v1248 = vshrl.u32 %v1247, 7
    %v1249 = vsub.s32 %v1246, %v1248
    %v1250 = vrot.slane %v1236, %v1249
    %v1251 = vcombine.low %v1218, %v1234
    %v1252 = vcombine.high %v1218, %v1234
    %v1254 = vunpack.c.l.s4 1934713408
    %v1255 = vunpack.c.0.s8 %v1254
    %v1256 = vlaneseq
    %v1257 = vshrl.u32 %v1256, 7
    %v1258 = vsub.s32 %v1255, %v1257
    %v1259 = vrot.slane %v1251, %v1258
    %v1261 = vunpack.c.l.s4 1934713408
    %v1262 = vunpack.c.0.s8 %v1261
    %v1263 = vlaneseq
    %v1264 = vshrl.u32 %v1263, 7
    %v1265 = vsub.s32 %v1262, %v1264
    %v1266 = vrot.slane %v1252, %v1265
    %v1267 = vcombine.high %v1243, 0.0
    %v1268 = vcombine.high %v1250, 0.0
    %v1269 = vcombine.high %v1259, 0.0
    %v1270 = vcombine.high %v1266, 0.0
    %v1271 = vcombine.low %v737, %v804
    %v1272 = vcombine.high %v737, %v804
    %v1274 = vunpack.c.l.s4 1983009808
    %v1275 = vunpack.c.0.s8 %v1274
    %v1276 = vlaneseq
    %v1277 = vshrl.u32 %v1276, 7
    %v1278 = vsub.s32 %v1275, %v1277
    %v1279 = vrot.slane %v1271, %v1278
    %v1281 = vunpack.c.l.s4 1983009808
    %v1282 = vunpack.c.0.s8 %v1281
    %v1283 = vlaneseq
    %v1284 = vshrl.u32 %v1283, 7
    %v1285 = vsub.s32 %v1282, %v1284
    %v1286 = vrot.slane %v1272, %v1285
    %v1287 = vcombine.low %v768, %v840
    %v1288 = vcombine.high %v768, %v840
    %v1290 = vunpack.c.l.s4 1983009808
    %v1291 = vunpack.c.0.s8 %v1290
    %v1292 = vlaneseq
    %v1293 = vshrl.u32 %v1292, 7
    %v1294 = vsub.s32 %v1291, %v1293
    %v1295 = vrot.slane %v1287, %v1294
    %v1297 = vunpack.c.l.s4 1983009808
    %v1298 = vunpack.c.0.s8 %v1297
    %v1299 = vlaneseq
    %v1300 = vshrl.u32 %v1299, 7
    %v1301 = vsub.s32 %v1298, %v1300
    %v1302 = vrot.slane %v1288, %v1301
    %v1303 = vcombine.low %v1279, %v1295
    %v1304 = vcombine.high %v1279, %v1295
    %v1306 = vunpack.c.l.s4 1934713408
    %v1307 = vunpack.c.0.s8 %v1306
    %v1308 = vlaneseq
    %v1309 = vshrl.u32 %v1308, 7
    %v1310 = vsub.s32 %v1307, %v1309
    %v1311 = vrot.slane %v1303, %v1310
    %v1313 = vunpack.c.l.s4 1934713408
    %v1314 = vunpack.c.0.s8 %v1313
    %v1315 = vlaneseq
    %v1316 = vshrl.u32 %v1315, 7
    %v1317 = vsub.s32 %v1314, %v1316
    %v1318 = vrot.slane %v1304, %v1317
    %v1319 = vcombine.low %v1286, %v1302
    %v1320 = vcombine.high %v1286, %v1302
    %v1322 = vunpack.c.l.s4 1934713408
    %v1323 = vunpack.c.0.s8 %v1322
    %v1324 = vlaneseq
    %v1325 = vshrl.u32 %v1324, 7
    %v1326 = vsub.s32 %v1323, %v1325
    %v1327 = vrot.slane %v1319, %v1326
    %v1329 = vunpack.c.l.s4 1934713408
    %v1330 = vunpack.c.0.s8 %v1329
    %v1331 = vlaneseq
    %v1332 = vshrl.u32 %v1331, 7
    %v1333 = vsub.s32 %v1330, %v1332
    %v1334 = vrot.slane %v1320, %v1333
    %v1335 = vcombine.high %v1311, 0.0
    %v1336 = vcombine.high %v1318, 0.0
    %v1337 = vcombine.high %v1327, 0.0
    %v1338 = vcombine.high %v1334, 0.0
    %v1339 = vcombine.low %v738, %v806
    %v1340 = vcombine.high %v738, %v806
    %v1342 = vunpack.c.l.s4 1983009808
    %v1343 = vunpack.c.0.s8 %v1342
    %v1344 = vlaneseq
    %v1345 = vshrl.u32 %v1344, 7
    %v1346 = vsub.s32 %v1343, %v1345
    %v1347 = vrot.slane %v1339, %v1346
    %v1349 = vunpack.c.l.s4 1983009808
    %v1350 = vunpack.c.0.s8 %v1349
    %v1351 = vlaneseq
    %v1352 = vshrl.u32 %v1351, 7
    %v1353 = vsub.s32 %v1350, %v1352
    %v1354 = vrot.slane %v1340, %v1353
    %v1355 = vcombine.low %v770, %v842
    %v1356 = vcombine.high %v770, %v842
    %v1358 = vunpack.c.l.s4 1983009808
    %v1359 = vunpack.c.0.s8 %v1358
    %v1360 = vlaneseq
    %v1361 = vshrl.u32 %v1360, 7
    %v1362 = vsub.s32 %v1359, %v1361
    %v1363 = vrot.slane %v1355, %v1362
    %v1365 = vunpack.c.l.s4 1983009808
    %v1366 = vunpack.c.0.s8 %v1365
    %v1367 = vlaneseq
    %v1368 = vshrl.u32 %v1367, 7
    %v1369 = vsub.s32 %v1366, %v1368
    %v1370 = vrot.slane %v1356, %v1369
    %v1371 = vcombine.low %v1347, %v1363
    %v1372 = vcombine.high %v1347, %v1363
    %v1374 = vunpack.c.l.s4 1934713408
    %v1375 = vunpack.c.0.s8 %v1374
    %v1376 = vlaneseq
    %v1377 = vshrl.u32 %v1376, 7
    %v1378 = vsub.s32 %v1375, %v1377
    %v1379 = vrot.slane %v1371, %v1378
    %v1381 = vunpack.c.l.s4 1934713408
    %v1382 = vunpack.c.0.s8 %v1381
    %v1383 = vlaneseq
    %v1384 = vshrl.u32 %v1383, 7
    %v1385 = vsub.s32 %v1382, %v1384
    %v1386 = vrot.slane %v1372, %v1385
    %v1387 = vcombine.low %v1354, %v1370
    %v1388 = vcombine.high %v1354, %v1370
    %v1390 = vunpack.c.l.s4 1934713408
    %v1391 = vunpack.c.0.s8 %v1390
    %v1392 = vlaneseq
    %v1393 = vshrl.u32 %v1392, 7
    %v1394 = vsub.s32 %v1391, %v1393
    %v1395 = vrot.slane %v1387, %v1394
    %v1397 = vunpack.c.l.s4 1934713408
    %v1398 = vunpack.c.0.s8 %v1397
    %v1399 = vlaneseq
    %v1400 = vshrl.u32 %v1399, 7
    %v1401 = vsub.s32 %v1398, %v1400
    %v1402 = vrot.slane %v1388, %v1401
    %v1403 = vcombine.high %v1379, 0.0
    %v1404 = vcombine.high %v1386, 0.0
    %v1405 = vcombine.high %v1395, 0.0
    %v1406 = vcombine.high %v1402, 0.0
    %v1407 = vcombine.low %v739, %v808
    %v1408 = vcombine.high %v739, %v808
    %v1410 = vunpack.c.l.s4 1983009808
    %v1411 = vunpack.c.0.s8 %v1410
    %v1412 = vlaneseq
    %v1413 = vshrl.u32 %v1412, 7
    %v1414 = vsub.s32 %v1411, %v1413
    %v1415 = vrot.slane %v1407, %v1414
    %v1417 = vunpack.c.l.s4 1983009808
    %v1418 = vunpack.c.0.s8 %v1417
    %v1419 = vlaneseq
    %v1420 = vshrl.u32 %v1419, 7
    %v1421 = vsub.s32 %v1418, %v1420
    %v1422 = vrot.slane %v1408, %v1421
    %v1423 = vcombine.low %v772, %v844
    %v1424 = vcombine.high %v772, %v844
    %v1426 = vunpack.c.l.s4 1983009808
    %v1427 = vunpack.c.0.s8 %v1426
    %v1428 = vlaneseq
    %v1429 = vshrl.u32 %v1428, 7
    %v1430 = vsub.s32 %v1427, %v1429
    %v1431 = vrot.slane %v1423, %v1430
    %v1433 = vunpack.c.l.s4 1983009808
    %v1434 = vunpack.c.0.s8 %v1433
    %v1435 = vlaneseq
    %v1436 = vshrl.u32 %v1435, 7
    %v1437 = vsub.s32 %v1434, %v1436
    %v1438 = vrot.slane %v1424, %v1437
    %v1439 = vcombine.low %v1415, %v1431
    %v1440 = vcombine.high %v1415, %v1431
    %v1442 = vunpack.c.l.s4 1934713408
    %v1443 = vunpack.c.0.s8 %v1442
    %v1444 = vlaneseq
    %v1445 = vshrl.u32 %v1444, 7
    %v1446 = vsub.s32 %v1443, %v1445
    %v1447 = vrot.slane %v1439, %v1446
    %v1449 = vunpack.c.l.s4 1934713408
    %v1450 = vunpack.c.0.s8 %v1449
    %v1451 = vlaneseq
    %v1452 = vshrl.u32 %v1451, 7
    %v1453 = vsub.s32 %v1450, %v1452
    %v1454 = vrot.slane %v1440, %v1453
    %v1455 = vcombine.low %v1422, %v1438
    %v1456 = vcombine.high %v1422, %v1438
    %v1458 = vunpack.c.l.s4 1934713408
    %v1459 = vunpack.c.0.s8 %v1458
    %v1460 = vlaneseq
    %v1461 = vshrl.u32 %v1460, 7
    %v1462 = vsub.s32 %v1459, %v1461
    %v1463 = vrot.slane %v1455, %v1462
    %v1465 = vunpack.c.l.s4 1934713408
    %v1466 = vunpack.c.0.s8 %v1465
    %v1467 = vlaneseq
    %v1468 = vshrl.u32 %v1467, 7
    %v1469 = vsub.s32 %v1466, %v1468
    %v1470 = vrot.slane %v1456, %v1469
    %v1471 = vcombine.high %v1447, 0.0
    %v1472 = vcombine.high %v1454, 0.0
    %v1473 = vcombine.high %v1463, 0.0
    %v1474 = vcombine.high %v1470, 0.0
    %v1475 = vcombine.low %v740, %v810
    %v1476 = vcombine.high %v740, %v810
    %v1478 = vunpack.c.l.s4 1983009808
    %v1479 = vunpack.c.0.s8 %v1478
    %v1480 = vlaneseq
    %v1481 = vshrl.u32 %v1480, 7
    %v1482 = vsub.s32 %v1479, %v1481
    %v1483 = vrot.slane %v1475, %v1482
    %v1485 = vunpack.c.l.s4 1983009808
    %v1486 = vunpack.c.0.s8 %v1485
    %v1487 = vlaneseq
    %v1488 = vshrl.u32 %v1487, 7
    %v1489 = vsub.s32 %v1486, %v1488
    %v1490 = vrot.slane %v1476, %v1489
    %v1491 = vcombine.low %v774, %v846
    %v1492 = vcombine.high %v774, %v846
    %v1494 = vunpack.c.l.s4 1983009808
    %v1495 = vunpack.c.0.s8 %v1494
    %v1496 = vlaneseq
    %v1497 = vshrl.u32 %v1496, 7
    %v1498 = vsub.s32 %v1495, %v1497
    %v1499 = vrot.slane %v1491, %v1498
    %v1501 = vunpack.c.l.s4 1983009808
    %v1502 = vunpack.c.0.s8 %v1501
    %v1503 = vlaneseq
    %v1504 = vshrl.u32 %v1503, 7
    %v1505 = vsub.s32 %v1502, %v1504
    %v1506 = vrot.slane %v1492, %v1505
    %v1507 = vcombine.low %v1483, %v1499
    %v1508 = vcombine.high %v1483, %v1499
    %v1510 = vunpack.c.l.s4 1934713408
    %v1511 = vunpack.c.0.s8 %v1510
    %v1512 = vlaneseq
    %v1513 = vshrl.u32 %v1512, 7
    %v1514 = vsub.s32 %v1511, %v1513
    %v1515 = vrot.slane %v1507, %v1514
    %v1517 = vunpack.c.l.s4 1934713408
    %v1518 = vunpack.c.0.s8 %v1517
    %v1519 = vlaneseq
    %v1520 = vshrl.u32 %v1519, 7
    %v1521 = vsub.s32 %v1518, %v1520
    %v1522 = vrot.slane %v1508, %v1521
    %v1523 = vcombine.low %v1490, %v1506
    %v1524 = vcombine.high %v1490, %v1506
    %v1526 = vunpack.c.l.s4 1934713408
    %v1527 = vunpack.c.0.s8 %v1526
    %v1528 = vlaneseq
    %v1529 = vshrl.u32 %v1528, 7
    %v1530 = vsub.s32 %v1527, %v1529
    %v1531 = vrot.slane %v1523, %v1530
    %v1533 = vunpack.c.l.s4 1934713408
    %v1534 = vunpack.c.0.s8 %v1533
    %v1535 = vlaneseq
    %v1536 = vshrl.u32 %v1535, 7
    %v1537 = vsub.s32 %v1534, %v1536
    %v1538 = vrot.slane %v1524, %v1537
    %v1539 = vcombine.high %v1515, 0.0
    %v1540 = vcombine.high %v1522, 0.0
    %v1541 = vcombine.high %v1531, 0.0
    %v1542 = vcombine.high %v1538, 0.0
    %v1543 = vcombine.low %v741, %v812
    %v1544 = vcombine.high %v741, %v812
    %v1546 = vunpack.c.l.s4 1983009808
    %v1547 = vunpack.c.0.s8 %v1546
    %v1548 = vlaneseq
    %v1549 = vshrl.u32 %v1548, 7
    %v1550 = vsub.s32 %v1547, %v1549
    %v1551 = vrot.slane %v1543, %v1550
    %v1553 = vunpack.c.l.s4 1983009808
    %v1554 = vunpack.c.0.s8 %v1553
    %v1555 = vlaneseq
    %v1556 = vshrl.u32 %v1555, 7
    %v1557 = vsub.s32 %v1554, %v1556
    %v1558 = vrot.slane %v1544, %v1557
    %v1559 = vcombine.low %v776, %v848
    %v1560 = vcombine.high %v776, %v848
    %v1562 = vunpack.c.l.s4 1983009808
    %v1563 = vunpack.c.0.s8 %v1562
    %v1564 = vlaneseq
    %v1565 = vshrl.u32 %v1564, 7
    %v1566 = vsub.s32 %v1563, %v1565
    %v1567 = vrot.slane %v1559, %v1566
    %v1569 = vunpack.c.l.s4 1983009808
    %v1570 = vunpack.c.0.s8 %v1569
    %v1571 = vlaneseq
    %v1572 = vshrl.u32 %v1571, 7
    %v1573 = vsub.s32 %v1570, %v1572
    %v1574 = vrot.slane %v1560, %v1573
    %v1575 = vcombine.low %v1551, %v1567
    %v1576 = vcombine.high %v1551, %v1567
    %v1578 = vunpack.c.l.s4 1934713408
    %v1579 = vunpack.c.0.s8 %v1578
    %v1580 = vlaneseq
    %v1581 = vshrl.u32 %v1580, 7
    %v1582 = vsub.s32 %v1579, %v1581
    %v1583 = vrot.slane %v1575, %v1582
    %v1585 = vunpack.c.l.s4 1934713408
    %v1586 = vunpack.c.0.s8 %v1585
    %v1587 = vlaneseq
    %v1588 = vshrl.u32 %v1587, 7
    %v1589 = vsub.s32 %v1586, %v1588
    %v1590 = vrot.slane %v1576, %v1589
    %v1591 = vcombine.low %v1558, %v1574
    %v1592 = vcombine.high %v1558, %v1574
    %v1594 = vunpack.c.l.s4 1934713408
    %v1595 = vunpack.c.0.s8 %v1594
    %v1596 = vlaneseq
    %v1597 = vshrl.u32 %v1596, 7
    %v1598 = vsub.s32 %v1595, %v1597
    %v1599 = vrot.slane %v1591, %v1598
    %v1601 = vunpack.c.l.s4 1934713408
    %v1602 = vunpack.c.0.s8 %v1601
    %v1603 = vlaneseq
    %v1604 = vshrl.u32 %v1603, 7
    %v1605 = vsub.s32 %v1602, %v1604
    %v1606 = vrot.slane %v1592, %v1605
    %v1607 = vcombine.high %v1583, 0.0
    %v1608 = vcombine.high %v1590, 0.0
    %v1609 = vcombine.high %v1599, 0.0
    %v1610 = vcombine.high %v1606, 0.0
    %v1611 = vcombine.low %v742, %v814
    %v1612 = vcombine.high %v742, %v814
    %v1614 = vunpack.c.l.s4 1983009808
    %v1615 = vunpack.c.0.s8 %v1614
    %v1616 = vlaneseq
    %v1617 = vshrl.u32 %v1616, 7
    %v1618 = vsub.s32 %v1615, %v1617
    %v1619 = vrot.slane %v1611, %v1618
    %v1621 = vunpack.c.l.s4 1983009808
    %v1622 = vunpack.c.0.s8 %v1621
    %v1623 = vlaneseq
    %v1624 = vshrl.u32 %v1623, 7
    %v1625 = vsub.s32 %v1622, %v1624
    %v1626 = vrot.slane %v1612, %v1625
    %v1627 = vcombine.low %v778, %v850
    %v1628 = vcombine.high %v778, %v850
    %v1630 = vunpack.c.l.s4 1983009808
    %v1631 = vunpack.c.0.s8 %v1630
    %v1632 = vlaneseq
    %v1633 = vshrl.u32 %v1632, 7
    %v1634 = vsub.s32 %v1631, %v1633
    %v1635 = vrot.slane %v1627, %v1634
    %v1637 = vunpack.c.l.s4 1983009808
    %v1638 = vunpack.c.0.s8 %v1637
    %v1639 = vlaneseq
    %v1640 = vshrl.u32 %v1639, 7
    %v1641 = vsub.s32 %v1638, %v1640
    %v1642 = vrot.slane %v1628, %v1641
    %v1643 = vcombine.low %v1619, %v1635
    %v1644 = vcombine.high %v1619, %v1635
    %v1646 = vunpack.c.l.s4 1934713408
    %v1647 = vunpack.c.0.s8 %v1646
    %v1648 = vlaneseq
    %v1649 = vshrl.u32 %v1648, 7
    %v1650 = vsub.s32 %v1647, %v1649
    %v1651 = vrot.slane %v1643, %v1650
    %v1653 = vunpack.c.l.s4 1934713408
    %v1654 = vunpack.c.0.s8 %v1653
    %v1655 = vlaneseq
    %v1656 = vshrl.u32 %v1655, 7
    %v1657 = vsub.s32 %v1654, %v1656
    %v1658 = vrot.slane %v1644, %v1657
    %v1659 = vcombine.low %v1626, %v1642
    %v1660 = vcombine.high %v1626, %v1642
    %v1662 = vunpack.c.l.s4 1934713408
    %v1663 = vunpack.c.0.s8 %v1662
    %v1664 = vlaneseq
    %v1665 = vshrl.u32 %v1664, 7
    %v1666 = vsub.s32 %v1663, %v1665
    %v1667 = vrot.slane %v1659, %v1666
    %v1669 = vunpack.c.l.s4 1934713408
    %v1670 = vunpack.c.0.s8 %v1669
    %v1671 = vlaneseq
    %v1672 = vshrl.u32 %v1671, 7
    %v1673 = vsub.s32 %v1670, %v1672
    %v1674 = vrot.slane %v1660, %v1673
    %v1675 = vcombine.high %v1651, 0.0
    %v1676 = vcombine.high %v1658, 0.0
    %v1677 = vcombine.high %v1667, 0.0
    %v1678 = vcombine.high %v1674, 0.0
    %v1679 = vld [vmem:[%s2] sm:$0xff]
    %v1680 = vld [vmem:[%s2 + $0x8] sm:$0xff]
    %v1681 = vld [vmem:[%s2 + $0x10] sm:$0xff]
    %v1682 = vld [vmem:[%s2 + $0x18] sm:$0xff]
    %v1683 = vld [vmem:[%s2 + $0x20] sm:$0xff]
    %v1684 = vld [vmem:[%s2 + $0x28] sm:$0xff]
    %v1685 = vld [vmem:[%s2 + $0x30] sm:$0xff]
    %v1686 = vld [vmem:[%s2 + $0x38] sm:$0xff]
    %vm1687 = vcmask 523264
    %v1689 = vsel %vm1687, %v1679, 0
    %v1692 = vsel %vm1687, %v1680, 0
    %v1695 = vsel %vm1687, %v1681, 0
    %v1698 = vsel %vm1687, %v1682, 0
    %v1701 = vsel %vm1687, %v1683, 0
    %v1704 = vsel %vm1687, %v1684, 0
    %v1707 = vsel %vm1687, %v1685, 0
    %v1710 = vsel %vm1687, %v1686, 0
    %1712 = vmatprep.subr.mxu0 0.0
    %1713 = vmatpush1.msra.mxu0 %v18
    %1714 = vmatprep.subr.mxu0 0.0
    %1715 = vmatpush1.msra.mxu0 %v19
    %1716 = vmatprep.subr.mxu0 0.0
    %1717 = vmatpush1.msra.mxu0 %v20
    %1718 = vmatprep.subr.mxu0 0.0
    %1719 = vmatpush1.msra.mxu0 %v21
    %1720 = vmatprep.subr.mxu0 0.0
    %1721 = vmatpush1.msra.mxu0 %v22
    %1722 = vmatprep.subr.mxu0 0.0
    %1723 = vmatpush1.msra.mxu0 %v23
    %1724 = vmatprep.subr.mxu0 0.0
    %1725 = vmatpush1.msra.mxu0 %v24
    %1726 = vmatprep.subr.mxu0 0.0
    %1727 = vmatpush1.msra.mxu0 %v25
    %1728 = vmatprep.subr.mxu0 0.0
    %1729 = vmatpush1.msra.mxu0 0.0
    %1730 = vmatprep.subr.mxu0 0.0
    %1731 = vmatpush1.msra.mxu0 0.0
    %1732 = vmatprep.subr.mxu0 0.0
    %1733 = vmatpush1.msra.mxu0 0.0
    %1734 = vmatprep.subr.mxu0 0.0
    %1735 = vmatpush1.msra.mxu0 0.0
    %1736 = vmatprep.subr.mxu0 0.0
    %1737 = vmatpush1.msra.mxu0 0.0
    %1738 = vmatprep.subr.mxu0 0.0
    %1739 = vmatpush1.msra.mxu0 0.0
    %1740 = vmatprep.subr.mxu0 0.0
    %1741 = vmatpush1.msra.mxu0 0.0
    %1742 = vmatprep.subr.mxu0 0.0
    %1743 = vmatpush1.msra.mxu0 0.0
    %1744 = vmatprep.subr.mxu0 0.0
    %1745 = vmatpush1.msra.mxu0 0.0
    %1746 = vmatprep.subr.mxu0 0.0
    %1747 = vmatpush1.msra.mxu0 0.0
    %1748 = vmatprep.subr.mxu0 0.0
    %1749 = vmatpush1.msra.mxu0 0.0
    %1750 = vmatprep.subr.mxu0 0.0
    %1751 = vmatpush1.msra.mxu0 0.0
    %1752 = vmatprep.subr.mxu0 0.0
    %1753 = vmatpush1.msra.mxu0 0.0
    %1754 = vmatprep.subr.mxu0 0.0
    %1755 = vmatpush1.msra.mxu0 0.0
    %1756 = vmatprep.subr.mxu0 0.0
    %1757 = vmatpush1.msra.mxu0 0.0
    %1758 = vmatprep.subr.mxu0 0.0
    %1759 = vmatpush1.msra.mxu0 0.0
    %1760 = vmatprep.subr.mxu0 0.0
    %1761 = vmatpush1.msra.mxu0 0.0
    %1762 = vmatprep.subr.mxu0 0.0
    %1763 = vmatpush1.msra.mxu0 0.0
    %1764 = vmatprep.subr.mxu0 0.0
    %1765 = vmatpush1.msra.mxu0 0.0
    %1766 = vmatprep.subr.mxu0 0.0
    %1767 = vmatpush1.msra.mxu0 0.0
    %1768 = vmatprep.subr.mxu0 0.0
    %1769 = vmatpush1.msra.mxu0 0.0
    %1770 = vmatprep.subr.mxu0 0.0
    %1771 = vmatpush1.msra.mxu0 0.0
    %1772 = vmatprep.subr.mxu0 0.0
    %1773 = vmatpush1.msra.mxu0 0.0
    %1774 = vmatprep.subr.mxu0 0.0
    %1775 = vmatpush1.msra.mxu0 0.0
    %1776 = vmatprep.mubr.f32.mxu0 0.0
    %1777 = vmatmul.mubr.f32.gmra.mrb[0].mxu0 %v1689
    %v1778 = vpop.f32.mrb[0].mxu0
    %v1779 = vadd.f32 0.0, %v1778
    %v1780 = vpop.f32.mrb[0].mxu0
    %1781 = vmatprep.mubr.f32.mxu0 0.0
    %1782 = vmatmul.mubr.f32.gmra.mrb[0].mxu0 %v1692
    %v1783 = vpop.f32.mrb[0].mxu0
    %v1784 = vadd.f32 0.0, %v1783
    %v1785 = vpop.f32.mrb[0].mxu0
    %1786 = vmatprep.mubr.f32.mxu0 0.0
    %1787 = vmatmul.mubr.f32.gmra.mrb[0].mxu0 %v1695
    %v1788 = vpop.f32.mrb[0].mxu0
    %v1789 = vadd.f32 0.0, %v1788
    %v1790 = vpop.f32.mrb[0].mxu0
    %1791 = vmatprep.mubr.f32.mxu0 0.0
    %1792 = vmatmul.mubr.f32.gmra.mrb[0].mxu0 %v1698
    %v1793 = vpop.f32.mrb[0].mxu0
    %v1794 = vadd.f32 0.0, %v1793
    %v1795 = vpop.f32.mrb[0].mxu0
    %1796 = vmatprep.mubr.f32.mxu0 0.0
    %1797 = vmatmul.mubr.f32.gmra.mrb[0].mxu0 %v1701
    %v1798 = vpop.f32.mrb[0].mxu0
    %v1799 = vadd.f32 0.0, %v1798
    %v1800 = vpop.f32.mrb[0].mxu0
    %1801 = vmatprep.mubr.f32.mxu0 0.0
    %1802 = vmatmul.mubr.f32.gmra.mrb[0].mxu0 %v1704
    %v1803 = vpop.f32.mrb[0].mxu0
    %v1804 = vadd.f32 0.0, %v1803
    %v1805 = vpop.f32.mrb[0].mxu0
    %1806 = vmatprep.mubr.f32.mxu0 0.0
    %1807 = vmatmul.mubr.f32.gmra.mrb[0].mxu0 %v1707
    %v1808 = vpop.f32.mrb[0].mxu0
    %v1809 = vadd.f32 0.0, %v1808
    %v1810 = vpop.f32.mrb[0].mxu0
    %1811 = vmatprep.mubr.f32.mxu0 0.0
    %1812 = vmatmul.mubr.f32.gmra.mrb[0].mxu0 %v1710
    %v1813 = vpop.f32.mrb[0].mxu0
    %v1814 = vadd.f32 0.0, %v1813
    %v1815 = vpop.f32.mrb[0].mxu0
    %1816 = vdwg.mxu0
    %1817 = vmatprep.subr.mxu0 0.0
    %1818 = vmatpush1.msra.mxu0 %v26
    %1819 = vmatprep.subr.mxu0 0.0
    %1820 = vmatpush1.msra.mxu0 %v27
    %1821 = vmatprep.subr.mxu0 0.0
    %1822 = vmatpush1.msra.mxu0 %v28
    %1823 = vmatprep.subr.mxu0 0.0
    %1824 = vmatpush1.msra.mxu0 %v29
    %1825 = vmatprep.subr.mxu0 0.0
    %1826 = vmatpush1.msra.mxu0 %v30
    %1827 = vmatprep.subr.mxu0 0.0
    %1828 = vmatpush1.msra.mxu0 %v31
    %1829 = vmatprep.subr.mxu0 0.0
    %1830 = vmatpush1.msra.mxu0 %v32
    %1831 = vmatprep.subr.mxu0 0.0
    %1832 = vmatpush1.msra.mxu0 %v33
    %1833 = vmatprep.subr.mxu0 0.0
    %1834 = vmatpush1.msra.mxu0 0.0
    %1835 = vmatprep.subr.mxu0 0.0
    %1836 = vmatpush1.msra.mxu0 0.0
    %1837 = vmatprep.subr.mxu0 0.0
    %1838 = vmatpush1.msra.mxu0 0.0
    %1839 = vmatprep.subr.mxu0 0.0
    %1840 = vmatpush1.msra.mxu0 0.0
    %1841 = vmatprep.subr.mxu0 0.0
    %1842 = vmatpush1.msra.mxu0 0.0
    %1843 = vmatprep.subr.mxu0 0.0
    %1844 = vmatpush1.msra.mxu0 0.0
    %1845 = vmatprep.subr.mxu0 0.0
    %1846 = vmatpush1.msra.mxu0 0.0
    %1847 = vmatprep.subr.mxu0 0.0
    %1848 = vmatpush1.msra.mxu0 0.0
    %1849 = vmatprep.subr.mxu0 0.0
    %1850 = vmatpush1.msra.mxu0 0.0
    %1851 = vmatprep.subr.mxu0 0.0
    %1852 = vmatpush1.msra.mxu0 0.0
    %1853 = vmatprep.subr.mxu0 0.0
    %1854 = vmatpush1.msra.mxu0 0.0
    %1855 = vmatprep.subr.mxu0 0.0
    %1856 = vmatpush1.msra.mxu0 0.0
    %1857 = vmatprep.subr.mxu0 0.0
    %1858 = vmatpush1.msra.mxu0 0.0
    %1859 = vmatprep.subr.mxu0 0.0
    %1860 = vmatpush1.msra.mxu0 0.0
    %1861 = vmatprep.subr.mxu0 0.0
    %1862 = vmatpush1.msra.mxu0 0.0
    %1863 = vmatprep.subr.mxu0 0.0
    %1864 = vmatpush1.msra.mxu0 0.0
    %1865 = vmatprep.subr.mxu0 0.0
    %1866 = vmatpush1.msra.mxu0 0.0
    %1867 = vmatprep.subr.mxu0 0.0
    %1868 = vmatpush1.msra.mxu0 0.0
    %1869 = vmatprep.subr.mxu0 0.0
    %1870 = vmatpush1.msra.mxu0 0.0
    %1871 = vmatprep.subr.mxu0 0.0
    %1872 = vmatpush1.msra.mxu0 0.0
    %1873 = vmatprep.subr.mxu0 0.0
    %1874 = vmatpush1.msra.mxu0 0.0
    %1875 = vmatprep.subr.mxu0 0.0
    %1876 = vmatpush1.msra.mxu0 0.0
    %1877 = vmatprep.subr.mxu0 0.0
    %1878 = vmatpush1.msra.mxu0 0.0
    %1879 = vmatprep.subr.mxu0 0.0
    %1880 = vmatpush1.msra.mxu0 0.0
    %1881 = vmatprep.mubr.f32.mxu0 0.0
    %1882 = vmatmul.mubr.f32.gmra.mrb[0].mxu0 %v1689
    %v1883 = vpop.f32.mrb[0].mxu0
    %v1884 = vadd.f32 0.0, %v1883
    %v1885 = vpop.f32.mrb[0].mxu0
    %1886 = vmatprep.mubr.f32.mxu0 0.0
    %1887 = vmatmul.mubr.f32.gmra.mrb[0].mxu0 %v1692
    %v1888 = vpop.f32.mrb[0].mxu0
    %v1889 = vadd.f32 0.0, %v1888
    %v1890 = vpop.f32.mrb[0].mxu0
    %1891 = vmatprep.mubr.f32.mxu0 0.0
    %1892 = vmatmul.mubr.f32.gmra.mrb[0].mxu0 %v1695
    %v1893 = vpop.f32.mrb[0].mxu0
    %v1894 = vadd.f32 0.0, %v1893
    %v1895 = vpop.f32.mrb[0].mxu0
    %1896 = vmatprep.mubr.f32.mxu0 0.0
    %1897 = vmatmul.mubr.f32.gmra.mrb[0].mxu0 %v1698
    %v1898 = vpop.f32.mrb[0].mxu0
    %v1899 = vadd.f32 0.0, %v1898
    %v1900 = vpop.f32.mrb[0].mxu0
    %1901 = vmatprep.mubr.f32.mxu0 0.0
    %1902 = vmatmul.mubr.f32.gmra.mrb[0].mxu0 %v1701
    %v1903 = vpop.f32.mrb[0].mxu0
    %v1904 = vadd.f32 0.0, %v1903
    %v1905 = vpop.f32.mrb[0].mxu0
    %1906 = vmatprep.mubr.f32.mxu0 0.0
    %1907 = vmatmul.mubr.f32.gmra.mrb[0].mxu0 %v1704
    %v1908 = vpop.f32.mrb[0].mxu0
    %v1909 = vadd.f32 0.0, %v1908
    %v1910 = vpop.f32.mrb[0].mxu0
    %1911 = vmatprep.mubr.f32.mxu0 0.0
    %1912 = vmatmul.mubr.f32.gmra.mrb[0].mxu0 %v1707
    %v1913 = vpop.f32.mrb[0].mxu0
    %v1914 = vadd.f32 0.0, %v1913
    %v1915 = vpop.f32.mrb[0].mxu0
    %1916 = vmatprep.mubr.f32.mxu0 0.0
    %1917 = vmatmul.mubr.f32.gmra.mrb[0].mxu0 %v1710
    %v1918 = vpop.f32.mrb[0].mxu0
    %v1919 = vadd.f32 0.0, %v1918
    %v1920 = vpop.f32.mrb[0].mxu0
    %1921 = vdwg.mxu0
    %1922 = vmatprep.subr.mxu0 0.0
    %1923 = vmatpush1.msra.mxu0 %v34
    %1924 = vmatprep.subr.mxu0 0.0
    %1925 = vmatpush1.msra.mxu0 %v35
    %1926 = vmatprep.subr.mxu0 0.0
    %1927 = vmatpush1.msra.mxu0 %v36
    %1928 = vmatprep.subr.mxu0 0.0
    %1929 = vmatpush1.msra.mxu0 %v37
    %1930 = vmatprep.subr.mxu0 0.0
    %1931 = vmatpush1.msra.mxu0 %v38
    %1932 = vmatprep.subr.mxu0 0.0
    %1933 = vmatpush1.msra.mxu0 %v39
    %1934 = vmatprep.subr.mxu0 0.0
    %1935 = vmatpush1.msra.mxu0 %v40
    %1936 = vmatprep.subr.mxu0 0.0
    %1937 = vmatpush1.msra.mxu0 %v41
    %1938 = vmatprep.subr.mxu0 0.0
    %1939 = vmatpush1.msra.mxu0 0.0
    %1940 = vmatprep.subr.mxu0 0.0
    %1941 = vmatpush1.msra.mxu0 0.0
    %1942 = vmatprep.subr.mxu0 0.0
    %1943 = vmatpush1.msra.mxu0 0.0
    %1944 = vmatprep.subr.mxu0 0.0
    %1945 = vmatpush1.msra.mxu0 0.0
    %1946 = vmatprep.subr.mxu0 0.0
    %1947 = vmatpush1.msra.mxu0 0.0
    %1948 = vmatprep.subr.mxu0 0.0
    %1949 = vmatpush1.msra.mxu0 0.0
    %1950 = vmatprep.subr.mxu0 0.0
    %1951 = vmatpush1.msra.mxu0 0.0
    %1952 = vmatprep.subr.mxu0 0.0
    %1953 = vmatpush1.msra.mxu0 0.0
    %1954 = vmatprep.subr.mxu0 0.0
    %1955 = vmatpush1.msra.mxu0 0.0
    %1956 = vmatprep.subr.mxu0 0.0
    %1957 = vmatpush1.msra.mxu0 0.0
    %1958 = vmatprep.subr.mxu0 0.0
    %1959 = vmatpush1.msra.mxu0 0.0
    %1960 = vmatprep.subr.mxu0 0.0
    %1961 = vmatpush1.msra.mxu0 0.0
    %1962 = vmatprep.subr.mxu0 0.0
    %1963 = vmatpush1.msra.mxu0 0.0
    %1964 = vmatprep.subr.mxu0 0.0
    %1965 = vmatpush1.msra.mxu0 0.0
    %1966 = vmatprep.subr.mxu0 0.0
    %1967 = vmatpush1.msra.mxu0 0.0
    %1968 = vmatprep.subr.mxu0 0.0
    %1969 = vmatpush1.msra.mxu0 0.0
    %1970 = vmatprep.subr.mxu0 0.0
    %1971 = vmatpush1.msra.mxu0 0.0
    %1972 = vmatprep.subr.mxu0 0.0
    %1973 = vmatpush1.msra.mxu0 0.0
    %1974 = vmatprep.subr.mxu0 0.0
    %1975 = vmatpush1.msra.mxu0 0.0
    %1976 = vmatprep.subr.mxu0 0.0
    %1977 = vmatpush1.msra.mxu0 0.0
    %1978 = vmatprep.subr.mxu0 0.0
    %1979 = vmatpush1.msra.mxu0 0.0
    %1980 = vmatprep.subr.mxu0 0.0
    %1981 = vmatpush1.msra.mxu0 0.0
    %1982 = vmatprep.subr.mxu0 0.0
    %1983 = vmatpush1.msra.mxu0 0.0
    %1984 = vmatprep.subr.mxu0 0.0
    %1985 = vmatpush1.msra.mxu0 0.0
    %1986 = vmatprep.mubr.f32.mxu0 0.0
    %1987 = vmatmul.mubr.f32.gmra.mrb[0].mxu0 %v1689
    %v1988 = vpop.f32.mrb[0].mxu0
    %v1989 = vadd.f32 0.0, %v1988
    %v1990 = vpop.f32.mrb[0].mxu0
    %1991 = vmatprep.mubr.f32.mxu0 0.0
    %1992 = vmatmul.mubr.f32.gmra.mrb[0].mxu0 %v1692
    %v1993 = vpop.f32.mrb[0].mxu0
    %v1994 = vadd.f32 0.0, %v1993
    %v1995 = vpop.f32.mrb[0].mxu0
    %1996 = vmatprep.mubr.f32.mxu0 0.0
    %1997 = vmatmul.mubr.f32.gmra.mrb[0].mxu0 %v1695
    %v1998 = vpop.f32.mrb[0].mxu0
    %v1999 = vadd.f32 0.0, %v1998
    %v2000 = vpop.f32.mrb[0].mxu0
    %2001 = vmatprep.mubr.f32.mxu0 0.0
    %2002 = vmatmul.mubr.f32.gmra.mrb[0].mxu0 %v1698
    %v2003 = vpop.f32.mrb[0].mxu0
    %v2004 = vadd.f32 0.0, %v2003
    %v2005 = vpop.f32.mrb[0].mxu0
    %2006 = vmatprep.mubr.f32.mxu0 0.0
    %2007 = vmatmul.mubr.f32.gmra.mrb[0].mxu0 %v1701
    %v2008 = vpop.f32.mrb[0].mxu0
    %v2009 = vadd.f32 0.0, %v2008
    %v2010 = vpop.f32.mrb[0].mxu0
    %2011 = vmatprep.mubr.f32.mxu0 0.0
    %2012 = vmatmul.mubr.f32.gmra.mrb[0].mxu0 %v1704
    %v2013 = vpop.f32.mrb[0].mxu0
    %v2014 = vadd.f32 0.0, %v2013
    %v2015 = vpop.f32.mrb[0].mxu0
    %2016 = vmatprep.mubr.f32.mxu0 0.0
    %2017 = vmatmul.mubr.f32.gmra.mrb[0].mxu0 %v1707
    %v2018 = vpop.f32.mrb[0].mxu0
    %v2019 = vadd.f32 0.0, %v2018
    %v2020 = vpop.f32.mrb[0].mxu0
    %2021 = vmatprep.mubr.f32.mxu0 0.0
    %2022 = vmatmul.mubr.f32.gmra.mrb[0].mxu0 %v1710
    %v2023 = vpop.f32.mrb[0].mxu0
    %v2024 = vadd.f32 0.0, %v2023
    %v2025 = vpop.f32.mrb[0].mxu0
    %2026 = vdwg.mxu0
    %2027 = vmatprep.subr.mxu0 0.0
    %2028 = vmatpush1.msra.mxu0 %v42
    %2029 = vmatprep.subr.mxu0 0.0
    %2030 = vmatpush1.msra.mxu0 %v43
    %2031 = vmatprep.subr.mxu0 0.0
    %2032 = vmatpush1.msra.mxu0 %v44
    %2033 = vmatprep.subr.mxu0 0.0
    %2034 = vmatpush1.msra.mxu0 %v45
    %2035 = vmatprep.subr.mxu0 0.0
    %2036 = vmatpush1.msra.mxu0 %v46
    %2037 = vmatprep.subr.mxu0 0.0
    %2038 = vmatpush1.msra.mxu0 %v47
    %2039 = vmatprep.subr.mxu0 0.0
    %2040 = vmatpush1.msra.mxu0 %v48
    %2041 = vmatprep.subr.mxu0 0.0
    %2042 = vmatpush1.msra.mxu0 %v49
    %2043 = vmatprep.subr.mxu0 0.0
    %2044 = vmatpush1.msra.mxu0 0.0
    %2045 = vmatprep.subr.mxu0 0.0
    %2046 = vmatpush1.msra.mxu0 0.0
    %2047 = vmatprep.subr.mxu0 0.0
    %2048 = vmatpush1.msra.mxu0 0.0
    %2049 = vmatprep.subr.mxu0 0.0
    %2050 = vmatpush1.msra.mxu0 0.0
    %2051 = vmatprep.subr.mxu0 0.0
    %2052 = vmatpush1.msra.mxu0 0.0
    %2053 = vmatprep.subr.mxu0 0.0
    %2054 = vmatpush1.msra.mxu0 0.0
    %2055 = vmatprep.subr.mxu0 0.0
    %2056 = vmatpush1.msra.mxu0 0.0
    %2057 = vmatprep.subr.mxu0 0.0
    %2058 = vmatpush1.msra.mxu0 0.0
    %2059 = vmatprep.subr.mxu0 0.0
    %2060 = vmatpush1.msra.mxu0 0.0
    %2061 = vmatprep.subr.mxu0 0.0
    %2062 = vmatpush1.msra.mxu0 0.0
    %2063 = vmatprep.subr.mxu0 0.0
    %2064 = vmatpush1.msra.mxu0 0.0
    %2065 = vmatprep.subr.mxu0 0.0
    %2066 = vmatpush1.msra.mxu0 0.0
    %2067 = vmatprep.subr.mxu0 0.0
    %2068 = vmatpush1.msra.mxu0 0.0
    %2069 = vmatprep.subr.mxu0 0.0
    %2070 = vmatpush1.msra.mxu0 0.0
    %2071 = vmatprep.subr.mxu0 0.0
    %2072 = vmatpush1.msra.mxu0 0.0
    %2073 = vmatprep.subr.mxu0 0.0
    %2074 = vmatpush1.msra.mxu0 0.0
    %2075 = vmatprep.subr.mxu0 0.0
    %2076 = vmatpush1.msra.mxu0 0.0
    %2077 = vmatprep.subr.mxu0 0.0
    %2078 = vmatpush1.msra.mxu0 0.0
    %2079 = vmatprep.subr.mxu0 0.0
    %2080 = vmatpush1.msra.mxu0 0.0
    %2081 = vmatprep.subr.mxu0 0.0
    %2082 = vmatpush1.msra.mxu0 0.0
    %2083 = vmatprep.subr.mxu0 0.0
    %2084 = vmatpush1.msra.mxu0 0.0
    %2085 = vmatprep.subr.mxu0 0.0
    %2086 = vmatpush1.msra.mxu0 0.0
    %2087 = vmatprep.subr.mxu0 0.0
    %2088 = vmatpush1.msra.mxu0 0.0
    %2089 = vmatprep.subr.mxu0 0.0
    %2090 = vmatpush1.msra.mxu0 0.0
    %2091 = vmatprep.mubr.f32.mxu0 0.0
    %2092 = vmatmul.mubr.f32.gmra.mrb[0].mxu0 %v1689
    %v2093 = vpop.f32.mrb[0].mxu0
    %v2094 = vadd.f32 0.0, %v2093
    %v2095 = vpop.f32.mrb[0].mxu0
    %2096 = vmatprep.mubr.f32.mxu0 0.0
    %2097 = vmatmul.mubr.f32.gmra.mrb[0].mxu0 %v1692
    %v2098 = vpop.f32.mrb[0].mxu0
    %v2099 = vadd.f32 0.0, %v2098
    %v2100 = vpop.f32.mrb[0].mxu0
    %2101 = vmatprep.mubr.f32.mxu0 0.0
    %2102 = vmatmul.mubr.f32.gmra.mrb[0].mxu0 %v1695
    %v2103 = vpop.f32.mrb[0].mxu0
    %v2104 = vadd.f32 0.0, %v2103
    %v2105 = vpop.f32.mrb[0].mxu0
    %2106 = vmatprep.mubr.f32.mxu0 0.0
    %2107 = vmatmul.mubr.f32.gmra.mrb[0].mxu0 %v1698
    %v2108 = vpop.f32.mrb[0].mxu0
    %v2109 = vadd.f32 0.0, %v2108
    %v2110 = vpop.f32.mrb[0].mxu0
    %2111 = vmatprep.mubr.f32.mxu0 0.0
    %2112 = vmatmul.mubr.f32.gmra.mrb[0].mxu0 %v1701
    %v2113 = vpop.f32.mrb[0].mxu0
    %v2114 = vadd.f32 0.0, %v2113
    %v2115 = vpop.f32.mrb[0].mxu0
    %2116 = vmatprep.mubr.f32.mxu0 0.0
    %2117 = vmatmul.mubr.f32.gmra.mrb[0].mxu0 %v1704
    %v2118 = vpop.f32.mrb[0].mxu0
    %v2119 = vadd.f32 0.0, %v2118
    %v2120 = vpop.f32.mrb[0].mxu0
    %2121 = vmatprep.mubr.f32.mxu0 0.0
    %2122 = vmatmul.mubr.f32.gmra.mrb[0].mxu0 %v1707
    %v2123 = vpop.f32.mrb[0].mxu0
    %v2124 = vadd.f32 0.0, %v2123
    %v2125 = vpop.f32.mrb[0].mxu0
    %2126 = vmatprep.mubr.f32.mxu0 0.0
    %2127 = vmatmul.mubr.f32.gmra.mrb[0].mxu0 %v1710
    %v2128 = vpop.f32.mrb[0].mxu0
    %v2129 = vadd.f32 0.0, %v2128
    %v2130 = vpop.f32.mrb[0].mxu0
    %2131 = vdwg.mxu0
    %2132 = vmatprep.subr.mxu0 0.0
    %2133 = vmatpush1.msra.mxu0 %v50
    %2134 = vmatprep.subr.mxu0 0.0
    %2135 = vmatpush1.msra.mxu0 %v51
    %2136 = vmatprep.subr.mxu0 0.0
    %2137 = vmatpush1.msra.mxu0 %v52
    %2138 = vmatprep.subr.mxu0 0.0
    %2139 = vmatpush1.msra.mxu0 %v53
    %2140 = vmatprep.subr.mxu0 0.0
    %2141 = vmatpush1.msra.mxu0 %v54
    %2142 = vmatprep.subr.mxu0 0.0
    %2143 = vmatpush1.msra.mxu0 %v55
    %2144 = vmatprep.subr.mxu0 0.0
    %2145 = vmatpush1.msra.mxu0 %v56
    %2146 = vmatprep.subr.mxu0 0.0
    %2147 = vmatpush1.msra.mxu0 %v57
    %2148 = vmatprep.subr.mxu0 0.0
    %2149 = vmatpush1.msra.mxu0 0.0
    %2150 = vmatprep.subr.mxu0 0.0
    %2151 = vmatpush1.msra.mxu0 0.0
    %2152 = vmatprep.subr.mxu0 0.0
    %2153 = vmatpush1.msra.mxu0 0.0
    %2154 = vmatprep.subr.mxu0 0.0
    %2155 = vmatpush1.msra.mxu0 0.0
    %2156 = vmatprep.subr.mxu0 0.0
    %2157 = vmatpush1.msra.mxu0 0.0
    %2158 = vmatprep.subr.mxu0 0.0
    %2159 = vmatpush1.msra.mxu0 0.0
    %2160 = vmatprep.subr.mxu0 0.0
    %2161 = vmatpush1.msra.mxu0 0.0
    %2162 = vmatprep.subr.mxu0 0.0
    %2163 = vmatpush1.msra.mxu0 0.0
    %2164 = vmatprep.subr.mxu0 0.0
    %2165 = vmatpush1.msra.mxu0 0.0
    %2166 = vmatprep.subr.mxu0 0.0
    %2167 = vmatpush1.msra.mxu0 0.0
    %2168 = vmatprep.subr.mxu0 0.0
    %2169 = vmatpush1.msra.mxu0 0.0
    %2170 = vmatprep.subr.mxu0 0.0
    %2171 = vmatpush1.msra.mxu0 0.0
    %2172 = vmatprep.subr.mxu0 0.0
    %2173 = vmatpush1.msra.mxu0 0.0
    %2174 = vmatprep.subr.mxu0 0.0
    %2175 = vmatpush1.msra.mxu0 0.0
    %2176 = vmatprep.subr.mxu0 0.0
    %2177 = vmatpush1.msra.mxu0 0.0
    %2178 = vmatprep.subr.mxu0 0.0
    %2179 = vmatpush1.msra.mxu0 0.0
    %2180 = vmatprep.subr.mxu0 0.0
    %2181 = vmatpush1.msra.mxu0 0.0
    %2182 = vmatprep.subr.mxu0 0.0
    %2183 = vmatpush1.msra.mxu0 0.0
    %2184 = vmatprep.subr.mxu0 0.0
    %2185 = vmatpush1.msra.mxu0 0.0
    %2186 = vmatprep.subr.mxu0 0.0
    %2187 = vmatpush1.msra.mxu0 0.0
    %2188 = vmatprep.subr.mxu0 0.0
    %2189 = vmatpush1.msra.mxu0 0.0
    %2190 = vmatprep.subr.mxu0 0.0
    %2191 = vmatpush1.msra.mxu0 0.0
    %2192 = vmatprep.subr.mxu0 0.0
    %2193 = vmatpush1.msra.mxu0 0.0
    %2194 = vmatprep.subr.mxu0 0.0
    %2195 = vmatpush1.msra.mxu0 0.0
    %2196 = vmatprep.mubr.f32.mxu0 0.0
    %2197 = vmatmul.mubr.f32.gmra.mrb[0].mxu0 %v1689
    %v2198 = vpop.f32.mrb[0].mxu0
    %v2199 = vadd.f32 0.0, %v2198
    %v2200 = vpop.f32.mrb[0].mxu0
    %2201 = vmatprep.mubr.f32.mxu0 0.0
    %2202 = vmatmul.mubr.f32.gmra.mrb[0].mxu0 %v1692
    %v2203 = vpop.f32.mrb[0].mxu0
    %v2204 = vadd.f32 0.0, %v2203
    %v2205 = vpop.f32.mrb[0].mxu0
    %2206 = vmatprep.mubr.f32.mxu0 0.0
    %2207 = vmatmul.mubr.f32.gmra.mrb[0].mxu0 %v1695
    %v2208 = vpop.f32.mrb[0].mxu0
    %v2209 = vadd.f32 0.0, %v2208
    %v2210 = vpop.f32.mrb[0].mxu0
    %2211 = vmatprep.mubr.f32.mxu0 0.0
    %2212 = vmatmul.mubr.f32.gmra.mrb[0].mxu0 %v1698
    %v2213 = vpop.f32.mrb[0].mxu0
    %v2214 = vadd.f32 0.0, %v2213
    %v2215 = vpop.f32.mrb[0].mxu0
    %2216 = vmatprep.mubr.f32.mxu0 0.0
    %2217 = vmatmul.mubr.f32.gmra.mrb[0].mxu0 %v1701
    %v2218 = vpop.f32.mrb[0].mxu0
    %v2219 = vadd.f32 0.0, %v2218
    %v2220 = vpop.f32.mrb[0].mxu0
    %2221 = vmatprep.mubr.f32.mxu0 0.0
    %2222 = vmatmul.mubr.f32.gmra.mrb[0].mxu0 %v1704
    %v2223 = vpop.f32.mrb[0].mxu0
    %v2224 = vadd.f32 0.0, %v2223
    %v2225 = vpop.f32.mrb[0].mxu0
    %2226 = vmatprep.mubr.f32.mxu0 0.0
    %2227 = vmatmul.mubr.f32.gmra.mrb[0].mxu0 %v1707
    %v2228 = vpop.f32.mrb[0].mxu0
    %v2229 = vadd.f32 0.0, %v2228
    %v2230 = vpop.f32.mrb[0].mxu0
    %2231 = vmatprep.mubr.f32.mxu0 0.0
    %2232 = vmatmul.mubr.f32.gmra.mrb[0].mxu0 %v1710
    %v2233 = vpop.f32.mrb[0].mxu0
    %v2234 = vadd.f32 0.0, %v2233
    %v2235 = vpop.f32.mrb[0].mxu0
    %2236 = vdwg.mxu0
    %2237 = vmatprep.subr.mxu0 0.0
    %2238 = vmatpush1.msra.mxu0 %v58
    %2239 = vmatprep.subr.mxu0 0.0
    %2240 = vmatpush1.msra.mxu0 %v59
    %2241 = vmatprep.subr.mxu0 0.0
    %2242 = vmatpush1.msra.mxu0 %v60
    %2243 = vmatprep.subr.mxu0 0.0
    %2244 = vmatpush1.msra.mxu0 %v61
    %2245 = vmatprep.subr.mxu0 0.0
    %2246 = vmatpush1.msra.mxu0 %v62
    %2247 = vmatprep.subr.mxu0 0.0
    %2248 = vmatpush1.msra.mxu0 %v63
    %2249 = vmatprep.subr.mxu0 0.0
    %2250 = vmatpush1.msra.mxu0 %v64
    %2251 = vmatprep.subr.mxu0 0.0
    %2252 = vmatpush1.msra.mxu0 %v65
    %2253 = vmatprep.subr.mxu0 0.0
    %2254 = vmatpush1.msra.mxu0 0.0
    %2255 = vmatprep.subr.mxu0 0.0
    %2256 = vmatpush1.msra.mxu0 0.0
    %2257 = vmatprep.subr.mxu0 0.0
    %2258 = vmatpush1.msra.mxu0 0.0
    %2259 = vmatprep.subr.mxu0 0.0
    %2260 = vmatpush1.msra.mxu0 0.0
    %2261 = vmatprep.subr.mxu0 0.0
    %2262 = vmatpush1.msra.mxu0 0.0
    %2263 = vmatprep.subr.mxu0 0.0
    %2264 = vmatpush1.msra.mxu0 0.0
    %2265 = vmatprep.subr.mxu0 0.0
    %2266 = vmatpush1.msra.mxu0 0.0
    %2267 = vmatprep.subr.mxu0 0.0
    %2268 = vmatpush1.msra.mxu0 0.0
    %2269 = vmatprep.subr.mxu0 0.0
    %2270 = vmatpush1.msra.mxu0 0.0
    %2271 = vmatprep.subr.mxu0 0.0
    %2272 = vmatpush1.msra.mxu0 0.0
    %2273 = vmatprep.subr.mxu0 0.0
    %2274 = vmatpush1.msra.mxu0 0.0
    %2275 = vmatprep.subr.mxu0 0.0
    %2276 = vmatpush1.msra.mxu0 0.0
    %2277 = vmatprep.subr.mxu0 0.0
    %2278 = vmatpush1.msra.mxu0 0.0
    %2279 = vmatprep.subr.mxu0 0.0
    %2280 = vmatpush1.msra.mxu0 0.0
    %2281 = vmatprep.subr.mxu0 0.0
    %2282 = vmatpush1.msra.mxu0 0.0
    %2283 = vmatprep.subr.mxu0 0.0
    %2284 = vmatpush1.msra.mxu0 0.0
    %2285 = vmatprep.subr.mxu0 0.0
    %2286 = vmatpush1.msra.mxu0 0.0
    %2287 = vmatprep.subr.mxu0 0.0
    %2288 = vmatpush1.msra.mxu0 0.0
    %2289 = vmatprep.subr.mxu0 0.0
    %2290 = vmatpush1.msra.mxu0 0.0
    %2291 = vmatprep.subr.mxu0 0.0
    %2292 = vmatpush1.msra.mxu0 0.0
    %2293 = vmatprep.subr.mxu0 0.0
    %2294 = vmatpush1.msra.mxu0 0.0
    %2295 = vmatprep.subr.mxu0 0.0
    %2296 = vmatpush1.msra.mxu0 0.0
    %2297 = vmatprep.subr.mxu0 0.0
    %2298 = vmatpush1.msra.mxu0 0.0
    %2299 = vmatprep.subr.mxu0 0.0
    %2300 = vmatpush1.msra.mxu0 0.0
    %2301 = vmatprep.mubr.f32.mxu0 0.0
    %2302 = vmatmul.mubr.f32.gmra.mrb[0].mxu0 %v1689
    %v2303 = vpop.f32.mrb[0].mxu0
    %v2304 = vadd.f32 0.0, %v2303
    %v2305 = vpop.f32.mrb[0].mxu0
    %2306 = vmatprep.mubr.f32.mxu0 0.0
    %2307 = vmatmul.mubr.f32.gmra.mrb[0].mxu0 %v1692
    %v2308 = vpop.f32.mrb[0].mxu0
    %v2309 = vadd.f32 0.0, %v2308
    %v2310 = vpop.f32.mrb[0].mxu0
    %2311 = vmatprep.mubr.f32.mxu0 0.0
    %2312 = vmatmul.mubr.f32.gmra.mrb[0].mxu0 %v1695
    %v2313 = vpop.f32.mrb[0].mxu0
    %v2314 = vadd.f32 0.0, %v2313
    %v2315 = vpop.f32.mrb[0].mxu0
    %2316 = vmatprep.mubr.f32.mxu0 0.0
    %2317 = vmatmul.mubr.f32.gmra.mrb[0].mxu0 %v1698
    %v2318 = vpop.f32.mrb[0].mxu0
    %v2319 = vadd.f32 0.0, %v2318
    %v2320 = vpop.f32.mrb[0].mxu0
    %2321 = vmatprep.mubr.f32.mxu0 0.0
    %2322 = vmatmul.mubr.f32.gmra.mrb[0].mxu0 %v1701
    %v2323 = vpop.f32.mrb[0].mxu0
    %v2324 = vadd.f32 0.0, %v2323
    %v2325 = vpop.f32.mrb[0].mxu0
    %2326 = vmatprep.mubr.f32.mxu0 0.0
    %2327 = vmatmul.mubr.f32.gmra.mrb[0].mxu0 %v1704
    %v2328 = vpop.f32.mrb[0].mxu0
    %v2329 = vadd.f32 0.0, %v2328
    %v2330 = vpop.f32.mrb[0].mxu0
    %2331 = vmatprep.mubr.f32.mxu0 0.0
    %2332 = vmatmul.mubr.f32.gmra.mrb[0].mxu0 %v1707
    %v2333 = vpop.f32.mrb[0].mxu0
    %v2334 = vadd.f32 0.0, %v2333
    %v2335 = vpop.f32.mrb[0].mxu0
    %2336 = vmatprep.mubr.f32.mxu0 0.0
    %2337 = vmatmul.mubr.f32.gmra.mrb[0].mxu0 %v1710
    %v2338 = vpop.f32.mrb[0].mxu0
    %v2339 = vadd.f32 0.0, %v2338
    %v2340 = vpop.f32.mrb[0].mxu0
    %2341 = vdwg.mxu0
    %v2342 = vld [vmem:[%s3] sm:$0xff]
    %v2343 = vld [vmem:[%s3 + $0x8] sm:$0xff]
    %v2344 = vld [vmem:[%s3 + $0x10] sm:$0xff]
    %v2345 = vld [vmem:[%s3 + $0x18] sm:$0xff]
    %v2346 = vld [vmem:[%s3 + $0x20] sm:$0xff]
    %v2347 = vld [vmem:[%s3 + $0x28] sm:$0xff]
    %v2348 = vld [vmem:[%s3 + $0x30] sm:$0xff]
    %v2349 = vld [vmem:[%s3 + $0x38] sm:$0xff]
    %v2362 = vrot.slane %v1779, 1
    %v2363 = vrot.slane %v1779, 2
    %v2364 = vrot.slane %v1779, 3
    %v2365 = vrot.slane %v1779, 4
    %v2366 = vrot.slane %v1779, 5
    %v2367 = vrot.slane %v1779, 6
    %v2368 = vrot.slane %v1779, 7
    %v2369 = vrot.slane %v1784, 1
    %v2370 = vrot.slane %v1784, 2
    %v2371 = vrot.slane %v1784, 3
    %v2372 = vrot.slane %v1784, 4
    %v2373 = vrot.slane %v1784, 5
    %v2374 = vrot.slane %v1784, 6
    %v2375 = vrot.slane %v1784, 7
    %v2376 = vrot.slane %v1884, 1
    %v2377 = vrot.slane %v1884, 2
    %v2378 = vrot.slane %v1884, 3
    %v2379 = vrot.slane %v1884, 4
    %v2380 = vrot.slane %v1884, 5
    %v2381 = vrot.slane %v1884, 6
    %v2382 = vrot.slane %v1884, 7
    %v2383 = vrot.slane %v1889, 1
    %v2384 = vrot.slane %v1889, 2
    %v2385 = vrot.slane %v1889, 3
    %v2386 = vrot.slane %v1889, 4
    %v2387 = vrot.slane %v1889, 5
    %v2388 = vrot.slane %v1889, 6
    %v2389 = vrot.slane %v1889, 7
    %v2390 = vrot.slane %v1989, 1
    %v2391 = vrot.slane %v1989, 2
    %v2392 = vrot.slane %v1989, 3
    %v2393 = vrot.slane %v1989, 4
    %v2394 = vrot.slane %v1989, 5
    %v2395 = vrot.slane %v1989, 6
    %v2396 = vrot.slane %v1989, 7
    %v2397 = vrot.slane %v1994, 1
    %v2398 = vrot.slane %v1994, 2
    %v2399 = vrot.slane %v1994, 3
    %v2400 = vrot.slane %v1994, 4
    %v2401 = vrot.slane %v1994, 5
    %v2402 = vrot.slane %v1994, 6
    %v2403 = vrot.slane %v1994, 7
    %v2404 = vrot.slane %v2094, 1
    %v2405 = vrot.slane %v2094, 2
    %v2406 = vrot.slane %v2094, 3
    %v2407 = vrot.slane %v2094, 4
    %v2408 = vrot.slane %v2094, 5
    %v2409 = vrot.slane %v2094, 6
    %v2410 = vrot.slane %v2094, 7
    %v2411 = vrot.slane %v2099, 1
    %v2412 = vrot.slane %v2099, 2
    %v2413 = vrot.slane %v2099, 3
    %v2414 = vrot.slane %v2099, 4
    %v2415 = vrot.slane %v2099, 5
    %v2416 = vrot.slane %v2099, 6
    %v2417 = vrot.slane %v2099, 7
    %v2418 = vrot.slane %v2199, 1
    %v2419 = vrot.slane %v2199, 2
    %v2420 = vrot.slane %v2199, 3
    %v2421 = vrot.slane %v2199, 4
    %v2422 = vrot.slane %v2199, 5
    %v2423 = vrot.slane %v2199, 6
    %v2424 = vrot.slane %v2199, 7
    %v2425 = vrot.slane %v2204, 1
    %v2426 = vrot.slane %v2204, 2
    %v2427 = vrot.slane %v2204, 3
    %v2428 = vrot.slane %v2204, 4
    %v2429 = vrot.slane %v2204, 5
    %v2430 = vrot.slane %v2204, 6
    %v2431 = vrot.slane %v2204, 7
    %v2432 = vrot.slane %v2304, 1
    %v2433 = vrot.slane %v2304, 2
    %v2434 = vrot.slane %v2304, 3
    %v2435 = vrot.slane %v2304, 4
    %v2436 = vrot.slane %v2304, 5
    %v2437 = vrot.slane %v2304, 6
    %v2438 = vrot.slane %v2304, 7
    %v2439 = vrot.slane %v2309, 1
    %v2440 = vrot.slane %v2309, 2
    %v2441 = vrot.slane %v2309, 3
    %v2442 = vrot.slane %v2309, 4
    %v2443 = vrot.slane %v2309, 5
    %v2444 = vrot.slane %v2309, 6
    %v2445 = vrot.slane %v2309, 7
    %v2542 = vadd.f32 %v903, %v1779
    %v2543 = vadd.f32 %v927, %v2362
    %v2544 = vadd.f32 %v910, %v2363
    %v2545 = vadd.f32 %v928, %v2364
    %v2546 = vadd.f32 %v919, %v2365
    %v2547 = vadd.f32 %v929, %v2366
    %v2548 = vadd.f32 %v926, %v2367
    %v2549 = vadd.f32 %v930, %v2368
    %v2550 = vadd.f32 %v971, %v1784
    %v2551 = vadd.f32 %v995, %v2369
    %v2552 = vadd.f32 %v978, %v2370
    %v2553 = vadd.f32 %v996, %v2371
    %v2554 = vadd.f32 %v987, %v2372
    %v2555 = vadd.f32 %v997, %v2373
    %v2556 = vadd.f32 %v994, %v2374
    %v2557 = vadd.f32 %v998, %v2375
    %v2558 = vadd.f32 %v1039, %v1884
    %v2559 = vadd.f32 %v1063, %v2376
    %v2560 = vadd.f32 %v1046, %v2377
    %v2561 = vadd.f32 %v1064, %v2378
    %v2562 = vadd.f32 %v1055, %v2379
    %v2563 = vadd.f32 %v1065, %v2380
    %v2564 = vadd.f32 %v1062, %v2381
    %v2565 = vadd.f32 %v1066, %v2382
    %v2566 = vadd.f32 %v1107, %v1889
    %v2567 = vadd.f32 %v1131, %v2383
    %v2568 = vadd.f32 %v1114, %v2384
    %v2569 = vadd.f32 %v1132, %v2385
    %v2570 = vadd.f32 %v1123, %v2386
    %v2571 = vadd.f32 %v1133, %v2387
    %v2572 = vadd.f32 %v1130, %v2388
    %v2573 = vadd.f32 %v1134, %v2389
    %v2574 = vadd.f32 %v1175, %v1989
    %v2575 = vadd.f32 %v1199, %v2390
    %v2576 = vadd.f32 %v1182, %v2391
    %v2577 = vadd.f32 %v1200, %v2392
    %v2578 = vadd.f32 %v1191, %v2393
    %v2579 = vadd.f32 %v1201, %v2394
    %v2580 = vadd.f32 %v1198, %v2395
    %v2581 = vadd.f32 %v1202, %v2396
    %v2582 = vadd.f32 %v1243, %v1994
    %v2583 = vadd.f32 %v1267, %v2397
    %v2584 = vadd.f32 %v1250, %v2398
    %v2585 = vadd.f32 %v1268, %v2399
    %v2586 = vadd.f32 %v1259, %v2400
    %v2587 = vadd.f32 %v1269, %v2401
    %v2588 = vadd.f32 %v1266, %v2402
    %v2589 = vadd.f32 %v1270, %v2403
    %v2590 = vadd.f32 %v1311, %v2094
    %v2591 = vadd.f32 %v1335, %v2404
    %v2592 = vadd.f32 %v1318, %v2405
    %v2593 = vadd.f32 %v1336, %v2406
    %v2594 = vadd.f32 %v1327, %v2407
    %v2595 = vadd.f32 %v1337, %v2408
    %v2596 = vadd.f32 %v1334, %v2409
    %v2597 = vadd.f32 %v1338, %v2410
    %v2598 = vadd.f32 %v1379, %v2099
    %v2599 = vadd.f32 %v1403, %v2411
    %v2600 = vadd.f32 %v1386, %v2412
    %v2601 = vadd.f32 %v1404, %v2413
    %v2602 = vadd.f32 %v1395, %v2414
    %v2603 = vadd.f32 %v1405, %v2415
    %v2604 = vadd.f32 %v1402, %v2416
    %v2605 = vadd.f32 %v1406, %v2417
    %v2606 = vadd.f32 %v1447, %v2199
    %v2607 = vadd.f32 %v1471, %v2418
    %v2608 = vadd.f32 %v1454, %v2419
    %v2609 = vadd.f32 %v1472, %v2420
    %v2610 = vadd.f32 %v1463, %v2421
    %v2611 = vadd.f32 %v1473, %v2422
    %v2612 = vadd.f32 %v1470, %v2423
    %v2613 = vadd.f32 %v1474, %v2424
    %v2614 = vadd.f32 %v1515, %v2204
    %v2615 = vadd.f32 %v1539, %v2425
    %v2616 = vadd.f32 %v1522, %v2426
    %v2617 = vadd.f32 %v1540, %v2427
    %v2618 = vadd.f32 %v1531, %v2428
    %v2619 = vadd.f32 %v1541, %v2429
    %v2620 = vadd.f32 %v1538, %v2430
    %v2621 = vadd.f32 %v1542, %v2431
    %v2622 = vadd.f32 %v1583, %v2304
    %v2623 = vadd.f32 %v1607, %v2432
    %v2624 = vadd.f32 %v1590, %v2433
    %v2625 = vadd.f32 %v1608, %v2434
    %v2626 = vadd.f32 %v1599, %v2435
    %v2627 = vadd.f32 %v1609, %v2436
    %v2628 = vadd.f32 %v1606, %v2437
    %v2629 = vadd.f32 %v1610, %v2438
    %v2630 = vadd.f32 %v1651, %v2309
    %v2631 = vadd.f32 %v1675, %v2439
    %v2632 = vadd.f32 %v1658, %v2440
    %v2633 = vadd.f32 %v1676, %v2441
    %v2634 = vadd.f32 %v1667, %v2442
    %v2635 = vadd.f32 %v1677, %v2443
    %v2636 = vadd.f32 %v1674, %v2444
    %v2637 = vadd.f32 %v1678, %v2445
    %v2640 = vrot.slane %v2342, 1
    %v2641 = vrot.slane %v2342, 2
    %v2642 = vrot.slane %v2342, 3
    %v2643 = vrot.slane %v2342, 4
    %v2644 = vrot.slane %v2342, 5
    %v2645 = vrot.slane %v2342, 6
    %v2646 = vrot.slane %v2342, 7
    %v2647 = vrot.slane %v2343, 1
    %v2648 = vrot.slane %v2343, 2
    %v2649 = vrot.slane %v2343, 3
    %v2650 = vrot.slane %v2343, 4
    %v2651 = vrot.slane %v2343, 5
    %v2652 = vrot.slane %v2343, 6
    %v2653 = vrot.slane %v2343, 7
    %v2670 = vadd.f32 %v2542, %v2342
    %v2671 = vadd.f32 %v2543, %v2640
    %v2672 = vadd.f32 %v2544, %v2641
    %v2673 = vadd.f32 %v2545, %v2642
    %v2674 = vadd.f32 %v2546, %v2643
    %v2675 = vadd.f32 %v2547, %v2644
    %v2676 = vadd.f32 %v2548, %v2645
    %v2677 = vadd.f32 %v2549, %v2646
    %v2678 = vadd.f32 %v2550, %v2343
    %v2679 = vadd.f32 %v2551, %v2647
    %v2680 = vadd.f32 %v2552, %v2648
    %v2681 = vadd.f32 %v2553, %v2649
    %v2682 = vadd.f32 %v2554, %v2650
    %v2683 = vadd.f32 %v2555, %v2651
    %v2684 = vadd.f32 %v2556, %v2652
    %v2685 = vadd.f32 %v2557, %v2653
    %v2686 = vadd.f32 %v2558, %v2342
    %v2687 = vadd.f32 %v2559, %v2640
    %v2688 = vadd.f32 %v2560, %v2641
    %v2689 = vadd.f32 %v2561, %v2642
    %v2690 = vadd.f32 %v2562, %v2643
    %v2691 = vadd.f32 %v2563, %v2644
    %v2692 = vadd.f32 %v2564, %v2645
    %v2693 = vadd.f32 %v2565, %v2646
    %v2694 = vadd.f32 %v2566, %v2343
    %v2695 = vadd.f32 %v2567, %v2647
    %v2696 = vadd.f32 %v2568, %v2648
    %v2697 = vadd.f32 %v2569, %v2649
    %v2698 = vadd.f32 %v2570, %v2650
    %v2699 = vadd.f32 %v2571, %v2651
    %v2700 = vadd.f32 %v2572, %v2652
    %v2701 = vadd.f32 %v2573, %v2653
    %v2702 = vadd.f32 %v2574, %v2342
    %v2703 = vadd.f32 %v2575, %v2640
    %v2704 = vadd.f32 %v2576, %v2641
    %v2705 = vadd.f32 %v2577, %v2642
    %v2706 = vadd.f32 %v2578, %v2643
    %v2707 = vadd.f32 %v2579, %v2644
    %v2708 = vadd.f32 %v2580, %v2645
    %v2709 = vadd.f32 %v2581, %v2646
    %v2710 = vadd.f32 %v2582, %v2343
    %v2711 = vadd.f32 %v2583, %v2647
    %v2712 = vadd.f32 %v2584, %v2648
    %v2713 = vadd.f32 %v2585, %v2649
    %v2714 = vadd.f32 %v2586, %v2650
    %v2715 = vadd.f32 %v2587, %v2651
    %v2716 = vadd.f32 %v2588, %v2652
    %v2717 = vadd.f32 %v2589, %v2653
    %v2718 = vadd.f32 %v2590, %v2342
    %v2719 = vadd.f32 %v2591, %v2640
    %v2720 = vadd.f32 %v2592, %v2641
    %v2721 = vadd.f32 %v2593, %v2642
    %v2722 = vadd.f32 %v2594, %v2643
    %v2723 = vadd.f32 %v2595, %v2644
    %v2724 = vadd.f32 %v2596, %v2645
    %v2725 = vadd.f32 %v2597, %v2646
    %v2726 = vadd.f32 %v2598, %v2343
    %v2727 = vadd.f32 %v2599, %v2647
    %v2728 = vadd.f32 %v2600, %v2648
    %v2729 = vadd.f32 %v2601, %v2649
    %v2730 = vadd.f32 %v2602, %v2650
    %v2731 = vadd.f32 %v2603, %v2651
    %v2732 = vadd.f32 %v2604, %v2652
    %v2733 = vadd.f32 %v2605, %v2653
    %v2734 = vadd.f32 %v2606, %v2342
    %v2735 = vadd.f32 %v2607, %v2640
    %v2736 = vadd.f32 %v2608, %v2641
    %v2737 = vadd.f32 %v2609, %v2642
    %v2738 = vadd.f32 %v2610, %v2643
    %v2739 = vadd.f32 %v2611, %v2644
    %v2740 = vadd.f32 %v2612, %v2645
    %v2741 = vadd.f32 %v2613, %v2646
    %v2742 = vadd.f32 %v2614, %v2343
    %v2743 = vadd.f32 %v2615, %v2647
    %v2744 = vadd.f32 %v2616, %v2648
    %v2745 = vadd.f32 %v2617, %v2649
    %v2746 = vadd.f32 %v2618, %v2650
    %v2747 = vadd.f32 %v2619, %v2651
    %v2748 = vadd.f32 %v2620, %v2652
    %v2749 = vadd.f32 %v2621, %v2653
    %v2750 = vadd.f32 %v2622, %v2342
    %v2751 = vadd.f32 %v2623, %v2640
    %v2752 = vadd.f32 %v2624, %v2641
    %v2753 = vadd.f32 %v2625, %v2642
    %v2754 = vadd.f32 %v2626, %v2643
    %v2755 = vadd.f32 %v2627, %v2644
    %v2756 = vadd.f32 %v2628, %v2645
    %v2757 = vadd.f32 %v2629, %v2646
    %v2758 = vadd.f32 %v2630, %v2343
    %v2759 = vadd.f32 %v2631, %v2647
    %v2760 = vadd.f32 %v2632, %v2648
    %v2761 = vadd.f32 %v2633, %v2649
    %v2762 = vadd.f32 %v2634, %v2650
    %v2763 = vadd.f32 %v2635, %v2651
    %v2764 = vadd.f32 %v2636, %v2652
    %v2765 = vadd.f32 %v2637, %v2653
    %v2862 = vrot.slane %v2671, 7
    %vm2863 = vcmask 1041409
    %v2864 = vsel %vm2863, %v2862, %v2670
    %v2865 = vrot.slane %v2672, 6
    %vm2866 = vcmask 1042434
    %v2867 = vsel %vm2866, %v2865, %v2864
    %v2868 = vrot.slane %v2673, 5
    %vm2869 = vcmask 1043459
    %v2870 = vsel %vm2869, %v2868, %v2867
    %v2871 = vrot.slane %v2674, 4
    %vm2872 = vcmask 1044484
    %v2873 = vsel %vm2872, %v2871, %v2870
    %v2874 = vrot.slane %v2675, 3
    %vm2875 = vcmask 1045509
    %v2876 = vsel %vm2875, %v2874, %v2873
    %v2877 = vrot.slane %v2676, 2
    %vm2878 = vcmask 1046534
    %v2879 = vsel %vm2878, %v2877, %v2876
    %v2880 = vrot.slane %v2677, 1
    %vm2881 = vcmask 1047559
    %v2882 = vsel %vm2881, %v2880, %v2879
    %v2883 = vrot.slane %v2679, 7
    %v2884 = vsel %vm2863, %v2883, %v2678
    %v2885 = vrot.slane %v2680, 6
    %v2886 = vsel %vm2866, %v2885, %v2884
    %v2887 = vrot.slane %v2681, 5
    %v2888 = vsel %vm2869, %v2887, %v2886
    %v2889 = vrot.slane %v2682, 4
    %v2890 = vsel %vm2872, %v2889, %v2888
    %v2891 = vrot.slane %v2683, 3
    %v2892 = vsel %vm2875, %v2891, %v2890
    %v2893 = vrot.slane %v2684, 2
    %v2894 = vsel %vm2878, %v2893, %v2892
    %v2895 = vrot.slane %v2685, 1
    %v2896 = vsel %vm2881, %v2895, %v2894
    %v2897 = vrot.slane %v2687, 7
    %v2898 = vsel %vm2863, %v2897, %v2686
    %v2899 = vrot.slane %v2688, 6
    %v2900 = vsel %vm2866, %v2899, %v2898
    %v2901 = vrot.slane %v2689, 5
    %v2902 = vsel %vm2869, %v2901, %v2900
    %v2903 = vrot.slane %v2690, 4
    %v2904 = vsel %vm2872, %v2903, %v2902
    %v2905 = vrot.slane %v2691, 3
    %v2906 = vsel %vm2875, %v2905, %v2904
    %v2907 = vrot.slane %v2692, 2
    %v2908 = vsel %vm2878, %v2907, %v2906
    %v2909 = vrot.slane %v2693, 1
    %v2910 = vsel %vm2881, %v2909, %v2908
    %v2911 = vrot.slane %v2695, 7
    %v2912 = vsel %vm2863, %v2911, %v2694
    %v2913 = vrot.slane %v2696, 6
    %v2914 = vsel %vm2866, %v2913, %v2912
    %v2915 = vrot.slane %v2697, 5
    %v2916 = vsel %vm2869, %v2915, %v2914
    %v2917 = vrot.slane %v2698, 4
    %v2918 = vsel %vm2872, %v2917, %v2916
    %v2919 = vrot.slane %v2699, 3
    %v2920 = vsel %vm2875, %v2919, %v2918
    %v2921 = vrot.slane %v2700, 2
    %v2922 = vsel %vm2878, %v2921, %v2920
    %v2923 = vrot.slane %v2701, 1
    %v2924 = vsel %vm2881, %v2923, %v2922
    %v2925 = vrot.slane %v2703, 7
    %v2926 = vsel %vm2863, %v2925, %v2702
    %v2927 = vrot.slane %v2704, 6
    %v2928 = vsel %vm2866, %v2927, %v2926
    %v2929 = vrot.slane %v2705, 5
    %v2930 = vsel %vm2869, %v2929, %v2928
    %v2931 = vrot.slane %v2706, 4
    %v2932 = vsel %vm2872, %v2931, %v2930
    %v2933 = vrot.slane %v2707, 3
    %v2934 = vsel %vm2875, %v2933, %v2932
    %v2935 = vrot.slane %v2708, 2
    %v2936 = vsel %vm2878, %v2935, %v2934
    %v2937 = vrot.slane %v2709, 1
    %v2938 = vsel %vm2881, %v2937, %v2936
    %v2939 = vrot.slane %v2711, 7
    %v2940 = vsel %vm2863, %v2939, %v2710
    %v2941 = vrot.slane %v2712, 6
    %v2942 = vsel %vm2866, %v2941, %v2940
    %v2943 = vrot.slane %v2713, 5
    %v2944 = vsel %vm2869, %v2943, %v2942
    %v2945 = vrot.slane %v2714, 4
    %v2946 = vsel %vm2872, %v2945, %v2944
    %v2947 = vrot.slane %v2715, 3
    %v2948 = vsel %vm2875, %v2947, %v2946
    %v2949 = vrot.slane %v2716, 2
    %v2950 = vsel %vm2878, %v2949, %v2948
    %v2951 = vrot.slane %v2717, 1
    %v2952 = vsel %vm2881, %v2951, %v2950
    %v2953 = vrot.slane %v2719, 7
    %v2954 = vsel %vm2863, %v2953, %v2718
    %v2955 = vrot.slane %v2720, 6
    %v2956 = vsel %vm2866, %v2955, %v2954
    %v2957 = vrot.slane %v2721, 5
    %v2958 = vsel %vm2869, %v2957, %v2956
    %v2959 = vrot.slane %v2722, 4
    %v2960 = vsel %vm2872, %v2959, %v2958
    %v2961 = vrot.slane %v2723, 3
    %v2962 = vsel %vm2875, %v2961, %v2960
    %v2963 = vrot.slane %v2724, 2
    %v2964 = vsel %vm2878, %v2963, %v2962
    %v2965 = vrot.slane %v2725, 1
    %v2966 = vsel %vm2881, %v2965, %v2964
    %v2967 = vrot.slane %v2727, 7
    %v2968 = vsel %vm2863, %v2967, %v2726
    %v2969 = vrot.slane %v2728, 6
    %v2970 = vsel %vm2866, %v2969, %v2968
    %v2971 = vrot.slane %v2729, 5
    %v2972 = vsel %vm2869, %v2971, %v2970
    %v2973 = vrot.slane %v2730, 4
    %v2974 = vsel %vm2872, %v2973, %v2972
    %v2975 = vrot.slane %v2731, 3
    %v2976 = vsel %vm2875, %v2975, %v2974
    %v2977 = vrot.slane %v2732, 2
    %v2978 = vsel %vm2878, %v2977, %v2976
    %v2979 = vrot.slane %v2733, 1
    %v2980 = vsel %vm2881, %v2979, %v2978
    %v2981 = vrot.slane %v2735, 7
    %v2982 = vsel %vm2863, %v2981, %v2734
    %v2983 = vrot.slane %v2736, 6
    %v2984 = vsel %vm2866, %v2983, %v2982
    %v2985 = vrot.slane %v2737, 5
    %v2986 = vsel %vm2869, %v2985, %v2984
    %v2987 = vrot.slane %v2738, 4
    %v2988 = vsel %vm2872, %v2987, %v2986
    %v2989 = vrot.slane %v2739, 3
    %v2990 = vsel %vm2875, %v2989, %v2988
    %v2991 = vrot.slane %v2740, 2
    %v2992 = vsel %vm2878, %v2991, %v2990
    %v2993 = vrot.slane %v2741, 1
    %v2994 = vsel %vm2881, %v2993, %v2992
    %v2995 = vrot.slane %v2743, 7
    %v2996 = vsel %vm2863, %v2995, %v2742
    %v2997 = vrot.slane %v2744, 6
    %v2998 = vsel %vm2866, %v2997, %v2996
    %v2999 = vrot.slane %v2745, 5
    %v3000 = vsel %vm2869, %v2999, %v2998
    %v3001 = vrot.slane %v2746, 4
    %v3002 = vsel %vm2872, %v3001, %v3000
    %v3003 = vrot.slane %v2747, 3
    %v3004 = vsel %vm2875, %v3003, %v3002
    %v3005 = vrot.slane %v2748, 2
    %v3006 = vsel %vm2878, %v3005, %v3004
    %v3007 = vrot.slane %v2749, 1
    %v3008 = vsel %vm2881, %v3007, %v3006
    %v3009 = vrot.slane %v2751, 7
    %v3010 = vsel %vm2863, %v3009, %v2750
    %v3011 = vrot.slane %v2752, 6
    %v3012 = vsel %vm2866, %v3011, %v3010
    %v3013 = vrot.slane %v2753, 5
    %v3014 = vsel %vm2869, %v3013, %v3012
    %v3015 = vrot.slane %v2754, 4
    %v3016 = vsel %vm2872, %v3015, %v3014
    %v3017 = vrot.slane %v2755, 3
    %v3018 = vsel %vm2875, %v3017, %v3016
    %v3019 = vrot.slane %v2756, 2
    %v3020 = vsel %vm2878, %v3019, %v3018
    %v3021 = vrot.slane %v2757, 1
    %v3022 = vsel %vm2881, %v3021, %v3020
    %v3023 = vrot.slane %v2759, 7
    %v3024 = vsel %vm2863, %v3023, %v2758
    %v3025 = vrot.slane %v2760, 6
    %v3026 = vsel %vm2866, %v3025, %v3024
    %v3027 = vrot.slane %v2761, 5
    %v3028 = vsel %vm2869, %v3027, %v3026
    %v3029 = vrot.slane %v2762, 4
    %v3030 = vsel %vm2872, %v3029, %v3028
    %v3031 = vrot.slane %v2763, 3
    %v3032 = vsel %vm2875, %v3031, %v3030
    %v3033 = vrot.slane %v2764, 2
    %v3034 = vsel %vm2878, %v3033, %v3032
    %v3035 = vrot.slane %v2765, 1
    %v3036 = vsel %vm2881, %v3035, %v3034
    %3049 = vst.msk [vmem:[#allocation2] sm:$0xff] %vm74, %v2882
    %3050 = vst.msk [vmem:[#allocation2 + $0x8] sm:$0xff] %vm74, %v2896
    %3051 = vst.msk [vmem:[#allocation2 + $0x40] sm:$0xff] %vm74, %v2910
    %3052 = vst.msk [vmem:[#allocation2 + $0x48] sm:$0xff] %vm74, %v2924
    %3053 = vst.msk [vmem:[#allocation2 + $0x80] sm:$0xff] %vm74, %v2938
    %3054 = vst.msk [vmem:[#allocation2 + $0x88] sm:$0xff] %vm74, %v2952
    %3055 = vst.msk [vmem:[#allocation2 + $0xc0] sm:$0xff] %vm74, %v2966
    %3056 = vst.msk [vmem:[#allocation2 + $0xc8] sm:$0xff] %vm74, %v2980
    %3057 = vst.msk [vmem:[#allocation2 + $0x100] sm:$0xff] %vm74, %v2994
    %3058 = vst.msk [vmem:[#allocation2 + $0x108] sm:$0xff] %vm74, %v3008
    %3059 = vst.msk [vmem:[#allocation2 + $0x140] sm:$0xff] %vm74, %v3022
    %3060 = vst.msk [vmem:[#allocation2 + $0x148] sm:$0xff] %vm74, %v3036
    %v3073 = vrot.slane %v1789, 7
    %v3074 = vrot.slane %v1789, 1
    %v3075 = vrot.slane %v1789, 2
    %v3076 = vrot.slane %v1789, 3
    %v3077 = vrot.slane %v1789, 4
    %v3078 = vrot.slane %v1789, 5
    %v3079 = vrot.slane %v1789, 6
    %v3080 = vrot.slane %v1794, 7
    %v3081 = vrot.slane %v1794, 1
    %v3082 = vrot.slane %v1794, 2
    %v3083 = vrot.slane %v1794, 3
    %v3084 = vrot.slane %v1794, 4
    %v3085 = vrot.slane %v1794, 5
    %v3086 = vrot.slane %v1794, 6
    %v3087 = vrot.slane %v1894, 7
    %v3088 = vrot.slane %v1894, 1
    %v3089 = vrot.slane %v1894, 2
    %v3090 = vrot.slane %v1894, 3
    %v3091 = vrot.slane %v1894, 4
    %v3092 = vrot.slane %v1894, 5
    %v3093 = vrot.slane %v1894, 6
    %v3094 = vrot.slane %v1899, 7
    %v3095 = vrot.slane %v1899, 1
    %v3096 = vrot.slane %v1899, 2
    %v3097 = vrot.slane %v1899, 3
    %v3098 = vrot.slane %v1899, 4
    %v3099 = vrot.slane %v1899, 5
    %v3100 = vrot.slane %v1899, 6
    %v3101 = vrot.slane %v1999, 7
    %v3102 = vrot.slane %v1999, 1
    %v3103 = vrot.slane %v1999, 2
    %v3104 = vrot.slane %v1999, 3
    %v3105 = vrot.slane %v1999, 4
    %v3106 = vrot.slane %v1999, 5
    %v3107 = vrot.slane %v1999, 6
    %v3108 = vrot.slane %v2004, 7
    %v3109 = vrot.slane %v2004, 1
    %v3110 = vrot.slane %v2004, 2
    %v3111 = vrot.slane %v2004, 3
    %v3112 = vrot.slane %v2004, 4
    %v3113 = vrot.slane %v2004, 5
    %v3114 = vrot.slane %v2004, 6
    %v3115 = vrot.slane %v2104, 7
    %v3116 = vrot.slane %v2104, 1
    %v3117 = vrot.slane %v2104, 2
    %v3118 = vrot.slane %v2104, 3
    %v3119 = vrot.slane %v2104, 4
    %v3120 = vrot.slane %v2104, 5
    %v3121 = vrot.slane %v2104, 6
    %v3122 = vrot.slane %v2109, 7
    %v3123 = vrot.slane %v2109, 1
    %v3124 = vrot.slane %v2109, 2
    %v3125 = vrot.slane %v2109, 3
    %v3126 = vrot.slane %v2109, 4
    %v3127 = vrot.slane %v2109, 5
    %v3128 = vrot.slane %v2109, 6
    %v3129 = vrot.slane %v2209, 7
    %v3130 = vrot.slane %v2209, 1
    %v3131 = vrot.slane %v2209, 2
    %v3132 = vrot.slane %v2209, 3
    %v3133 = vrot.slane %v2209, 4
    %v3134 = vrot.slane %v2209, 5
    %v3135 = vrot.slane %v2209, 6
    %v3136 = vrot.slane %v2214, 7
    %v3137 = vrot.slane %v2214, 1
    %v3138 = vrot.slane %v2214, 2
    %v3139 = vrot.slane %v2214, 3
    %v3140 = vrot.slane %v2214, 4
    %v3141 = vrot.slane %v2214, 5
    %v3142 = vrot.slane %v2214, 6
    %v3143 = vrot.slane %v2314, 7
    %v3144 = vrot.slane %v2314, 1
    %v3145 = vrot.slane %v2314, 2
    %v3146 = vrot.slane %v2314, 3
    %v3147 = vrot.slane %v2314, 4
    %v3148 = vrot.slane %v2314, 5
    %v3149 = vrot.slane %v2314, 6
    %v3150 = vrot.slane %v2319, 7
    %v3151 = vrot.slane %v2319, 1
    %v3152 = vrot.slane %v2319, 2
    %v3153 = vrot.slane %v2319, 3
    %v3154 = vrot.slane %v2319, 4
    %v3155 = vrot.slane %v2319, 5
    %v3156 = vrot.slane %v2319, 6
    %v3253 = vadd.f32 %v903, %v3073
    %v3254 = vadd.f32 %v927, %v1789
    %v3255 = vadd.f32 %v910, %v3074
    %v3256 = vadd.f32 %v928, %v3075
    %v3257 = vadd.f32 %v919, %v3076
    %v3258 = vadd.f32 %v929, %v3077
    %v3259 = vadd.f32 %v926, %v3078
    %v3260 = vadd.f32 %v930, %v3079
    %v3261 = vadd.f32 %v971, %v3080
    %v3262 = vadd.f32 %v995, %v1794
    %v3263 = vadd.f32 %v978, %v3081
    %v3264 = vadd.f32 %v996, %v3082
    %v3265 = vadd.f32 %v987, %v3083
    %v3266 = vadd.f32 %v997, %v3084
    %v3267 = vadd.f32 %v994, %v3085
    %v3268 = vadd.f32 %v998, %v3086
    %v3269 = vadd.f32 %v1039, %v3087
    %v3270 = vadd.f32 %v1063, %v1894
    %v3271 = vadd.f32 %v1046, %v3088
    %v3272 = vadd.f32 %v1064, %v3089
    %v3273 = vadd.f32 %v1055, %v3090
    %v3274 = vadd.f32 %v1065, %v3091
    %v3275 = vadd.f32 %v1062, %v3092
    %v3276 = vadd.f32 %v1066, %v3093
    %v3277 = vadd.f32 %v1107, %v3094
    %v3278 = vadd.f32 %v1131, %v1899
    %v3279 = vadd.f32 %v1114, %v3095
    %v3280 = vadd.f32 %v1132, %v3096
    %v3281 = vadd.f32 %v1123, %v3097
    %v3282 = vadd.f32 %v1133, %v3098
    %v3283 = vadd.f32 %v1130, %v3099
    %v3284 = vadd.f32 %v1134, %v3100
    %v3285 = vadd.f32 %v1175, %v3101
    %v3286 = vadd.f32 %v1199, %v1999
    %v3287 = vadd.f32 %v1182, %v3102
    %v3288 = vadd.f32 %v1200, %v3103
    %v3289 = vadd.f32 %v1191, %v3104
    %v3290 = vadd.f32 %v1201, %v3105
    %v3291 = vadd.f32 %v1198, %v3106
    %v3292 = vadd.f32 %v1202, %v3107
    %v3293 = vadd.f32 %v1243, %v3108
    %v3294 = vadd.f32 %v1267, %v2004
    %v3295 = vadd.f32 %v1250, %v3109
    %v3296 = vadd.f32 %v1268, %v3110
    %v3297 = vadd.f32 %v1259, %v3111
    %v3298 = vadd.f32 %v1269, %v3112
    %v3299 = vadd.f32 %v1266, %v3113
    %v3300 = vadd.f32 %v1270, %v3114
    %v3301 = vadd.f32 %v1311, %v3115
    %v3302 = vadd.f32 %v1335, %v2104
    %v3303 = vadd.f32 %v1318, %v3116
    %v3304 = vadd.f32 %v1336, %v3117
    %v3305 = vadd.f32 %v1327, %v3118
    %v3306 = vadd.f32 %v1337, %v3119
    %v3307 = vadd.f32 %v1334, %v3120
    %v3308 = vadd.f32 %v1338, %v3121
    %v3309 = vadd.f32 %v1379, %v3122
    %v3310 = vadd.f32 %v1403, %v2109
    %v3311 = vadd.f32 %v1386, %v3123
    %v3312 = vadd.f32 %v1404, %v3124
    %v3313 = vadd.f32 %v1395, %v3125
    %v3314 = vadd.f32 %v1405, %v3126
    %v3315 = vadd.f32 %v1402, %v3127
    %v3316 = vadd.f32 %v1406, %v3128
    %v3317 = vadd.f32 %v1447, %v3129
    %v3318 = vadd.f32 %v1471, %v2209
    %v3319 = vadd.f32 %v1454, %v3130
    %v3320 = vadd.f32 %v1472, %v3131
    %v3321 = vadd.f32 %v1463, %v3132
    %v3322 = vadd.f32 %v1473, %v3133
    %v3323 = vadd.f32 %v1470, %v3134
    %v3324 = vadd.f32 %v1474, %v3135
    %v3325 = vadd.f32 %v1515, %v3136
    %v3326 = vadd.f32 %v1539, %v2214
    %v3327 = vadd.f32 %v1522, %v3137
    %v3328 = vadd.f32 %v1540, %v3138
    %v3329 = vadd.f32 %v1531, %v3139
    %v3330 = vadd.f32 %v1541, %v3140
    %v3331 = vadd.f32 %v1538, %v3141
    %v3332 = vadd.f32 %v1542, %v3142
    %v3333 = vadd.f32 %v1583, %v3143
    %v3334 = vadd.f32 %v1607, %v2314
    %v3335 = vadd.f32 %v1590, %v3144
    %v3336 = vadd.f32 %v1608, %v3145
    %v3337 = vadd.f32 %v1599, %v3146
    %v3338 = vadd.f32 %v1609, %v3147
    %v3339 = vadd.f32 %v1606, %v3148
    %v3340 = vadd.f32 %v1610, %v3149
    %v3341 = vadd.f32 %v1651, %v3150
    %v3342 = vadd.f32 %v1675, %v2319
    %v3343 = vadd.f32 %v1658, %v3151
    %v3344 = vadd.f32 %v1676, %v3152
    %v3345 = vadd.f32 %v1667, %v3153
    %v3346 = vadd.f32 %v1677, %v3154
    %v3347 = vadd.f32 %v1674, %v3155
    %v3348 = vadd.f32 %v1678, %v3156
    %v3351 = vrot.slane %v2344, 7
    %v3352 = vrot.slane %v2344, 1
    %v3353 = vrot.slane %v2344, 2
    %v3354 = vrot.slane %v2344, 3
    %v3355 = vrot.slane %v2344, 4
    %v3356 = vrot.slane %v2344, 5
    %v3357 = vrot.slane %v2344, 6
    %v3358 = vrot.slane %v2345, 7
    %v3359 = vrot.slane %v2345, 1
    %v3360 = vrot.slane %v2345, 2
    %v3361 = vrot.slane %v2345, 3
    %v3362 = vrot.slane %v2345, 4
    %v3363 = vrot.slane %v2345, 5
    %v3364 = vrot.slane %v2345, 6
    %v3381 = vadd.f32 %v3253, %v3351
    %v3382 = vadd.f32 %v3254, %v2344
    %v3383 = vadd.f32 %v3255, %v3352
    %v3384 = vadd.f32 %v3256, %v3353
    %v3385 = vadd.f32 %v3257, %v3354
    %v3386 = vadd.f32 %v3258, %v3355
    %v3387 = vadd.f32 %v3259, %v3356
    %v3388 = vadd.f32 %v3260, %v3357
    %v3389 = vadd.f32 %v3261, %v3358
    %v3390 = vadd.f32 %v3262, %v2345
    %v3391 = vadd.f32 %v3263, %v3359
    %v3392 = vadd.f32 %v3264, %v3360
    %v3393 = vadd.f32 %v3265, %v3361
    %v3394 = vadd.f32 %v3266, %v3362
    %v3395 = vadd.f32 %v3267, %v3363
    %v3396 = vadd.f32 %v3268, %v3364
    %v3397 = vadd.f32 %v3269, %v3351
    %v3398 = vadd.f32 %v3270, %v2344
    %v3399 = vadd.f32 %v3271, %v3352
    %v3400 = vadd.f32 %v3272, %v3353
    %v3401 = vadd.f32 %v3273, %v3354
    %v3402 = vadd.f32 %v3274, %v3355
    %v3403 = vadd.f32 %v3275, %v3356
    %v3404 = vadd.f32 %v3276, %v3357
    %v3405 = vadd.f32 %v3277, %v3358
    %v3406 = vadd.f32 %v3278, %v2345
    %v3407 = vadd.f32 %v3279, %v3359
    %v3408 = vadd.f32 %v3280, %v3360
    %v3409 = vadd.f32 %v3281, %v3361
    %v3410 = vadd.f32 %v3282, %v3362
    %v3411 = vadd.f32 %v3283, %v3363
    %v3412 = vadd.f32 %v3284, %v3364
    %v3413 = vadd.f32 %v3285, %v3351
    %v3414 = vadd.f32 %v3286, %v2344
    %v3415 = vadd.f32 %v3287, %v3352
    %v3416 = vadd.f32 %v3288, %v3353
    %v3417 = vadd.f32 %v3289, %v3354
    %v3418 = vadd.f32 %v3290, %v3355
    %v3419 = vadd.f32 %v3291, %v3356
    %v3420 = vadd.f32 %v3292, %v3357
    %v3421 = vadd.f32 %v3293, %v3358
    %v3422 = vadd.f32 %v3294, %v2345
    %v3423 = vadd.f32 %v3295, %v3359
    %v3424 = vadd.f32 %v3296, %v3360
    %v3425 = vadd.f32 %v3297, %v3361
    %v3426 = vadd.f32 %v3298, %v3362
    %v3427 = vadd.f32 %v3299, %v3363
    %v3428 = vadd.f32 %v3300, %v3364
    %v3429 = vadd.f32 %v3301, %v3351
    %v3430 = vadd.f32 %v3302, %v2344
    %v3431 = vadd.f32 %v3303, %v3352
    %v3432 = vadd.f32 %v3304, %v3353
    %v3433 = vadd.f32 %v3305, %v3354
    %v3434 = vadd.f32 %v3306, %v3355
    %v3435 = vadd.f32 %v3307, %v3356
    %v3436 = vadd.f32 %v3308, %v3357
    %v3437 = vadd.f32 %v3309, %v3358
    %v3438 = vadd.f32 %v3310, %v2345
    %v3439 = vadd.f32 %v3311, %v3359
    %v3440 = vadd.f32 %v3312, %v3360
    %v3441 = vadd.f32 %v3313, %v3361
    %v3442 = vadd.f32 %v3314, %v3362
    %v3443 = vadd.f32 %v3315, %v3363
    %v3444 = vadd.f32 %v3316, %v3364
    %v3445 = vadd.f32 %v3317, %v3351
    %v3446 = vadd.f32 %v3318, %v2344
    %v3447 = vadd.f32 %v3319, %v3352
    %v3448 = vadd.f32 %v3320, %v3353
    %v3449 = vadd.f32 %v3321, %v3354
    %v3450 = vadd.f32 %v3322, %v3355
    %v3451 = vadd.f32 %v3323, %v3356
    %v3452 = vadd.f32 %v3324, %v3357
    %v3453 = vadd.f32 %v3325, %v3358
    %v3454 = vadd.f32 %v3326, %v2345
    %v3455 = vadd.f32 %v3327, %v3359
    %v3456 = vadd.f32 %v3328, %v3360
    %v3457 = vadd.f32 %v3329, %v3361
    %v3458 = vadd.f32 %v3330, %v3362
    %v3459 = vadd.f32 %v3331, %v3363
    %v3460 = vadd.f32 %v3332, %v3364
    %v3461 = vadd.f32 %v3333, %v3351
    %v3462 = vadd.f32 %v3334, %v2344
    %v3463 = vadd.f32 %v3335, %v3352
    %v3464 = vadd.f32 %v3336, %v3353
    %v3465 = vadd.f32 %v3337, %v3354
    %v3466 = vadd.f32 %v3338, %v3355
    %v3467 = vadd.f32 %v3339, %v3356
    %v3468 = vadd.f32 %v3340, %v3357
    %v3469 = vadd.f32 %v3341, %v3358
    %v3470 = vadd.f32 %v3342, %v2345
    %v3471 = vadd.f32 %v3343, %v3359
    %v3472 = vadd.f32 %v3344, %v3360
    %v3473 = vadd.f32 %v3345, %v3361
    %v3474 = vadd.f32 %v3346, %v3362
    %v3475 = vadd.f32 %v3347, %v3363
    %v3476 = vadd.f32 %v3348, %v3364
    %v3573 = vrot.slane %v3382, 7
    %v3574 = vsel %vm2866, %v3573, %v3381
    %v3575 = vrot.slane %v3383, 6
    %v3576 = vsel %vm2869, %v3575, %v3574
    %v3577 = vrot.slane %v3384, 5
    %v3578 = vsel %vm2872, %v3577, %v3576
    %v3579 = vrot.slane %v3385, 4
    %v3580 = vsel %vm2875, %v3579, %v3578
    %v3581 = vrot.slane %v3386, 3
    %v3582 = vsel %vm2878, %v3581, %v3580
    %v3583 = vrot.slane %v3387, 2
    %v3584 = vsel %vm2881, %v3583, %v3582
    %v3585 = vrot.slane %v3388, 1
    %v3586 = vsel %vm2863, %v3389, %v3585
    %v3587 = vrot.slane %v3390, 7
    %v3588 = vsel %vm2866, %v3587, %v3586
    %v3589 = vrot.slane %v3391, 6
    %v3590 = vsel %vm2869, %v3589, %v3588
    %v3591 = vrot.slane %v3392, 5
    %v3592 = vsel %vm2872, %v3591, %v3590
    %v3593 = vrot.slane %v3393, 4
    %v3594 = vsel %vm2875, %v3593, %v3592
    %v3595 = vrot.slane %v3394, 3
    %v3596 = vsel %vm2878, %v3595, %v3594
    %v3597 = vrot.slane %v3395, 2
    %v3598 = vsel %vm2881, %v3597, %v3596
    %v3599 = vrot.slane %v3396, 1
    %v3600 = vrot.slane %v3398, 7
    %v3601 = vsel %vm2866, %v3600, %v3397
    %v3602 = vrot.slane %v3399, 6
    %v3603 = vsel %vm2869, %v3602, %v3601
    %v3604 = vrot.slane %v3400, 5
    %v3605 = vsel %vm2872, %v3604, %v3603
    %v3606 = vrot.slane %v3401, 4
    %v3607 = vsel %vm2875, %v3606, %v3605
    %v3608 = vrot.slane %v3402, 3
    %v3609 = vsel %vm2878, %v3608, %v3607
    %v3610 = vrot.slane %v3403, 2
    %v3611 = vsel %vm2881, %v3610, %v3609
    %v3612 = vrot.slane %v3404, 1
    %v3613 = vsel %vm2863, %v3405, %v3612
    %v3614 = vrot.slane %v3406, 7
    %v3615 = vsel %vm2866, %v3614, %v3613
    %v3616 = vrot.slane %v3407, 6
    %v3617 = vsel %vm2869, %v3616, %v3615
    %v3618 = vrot.slane %v3408, 5
    %v3619 = vsel %vm2872, %v3618, %v3617
    %v3620 = vrot.slane %v3409, 4
    %v3621 = vsel %vm2875, %v3620, %v3619
    %v3622 = vrot.slane %v3410, 3
    %v3623 = vsel %vm2878, %v3622, %v3621
    %v3624 = vrot.slane %v3411, 2
    %v3625 = vsel %vm2881, %v3624, %v3623
    %v3626 = vrot.slane %v3412, 1
    %v3627 = vrot.slane %v3414, 7
    %v3628 = vsel %vm2866, %v3627, %v3413
    %v3629 = vrot.slane %v3415, 6
    %v3630 = vsel %vm2869, %v3629, %v3628
    %v3631 = vrot.slane %v3416, 5
    %v3632 = vsel %vm2872, %v3631, %v3630
    %v3633 = vrot.slane %v3417, 4
    %v3634 = vsel %vm2875, %v3633, %v3632
    %v3635 = vrot.slane %v3418, 3
    %v3636 = vsel %vm2878, %v3635, %v3634
    %v3637 = vrot.slane %v3419, 2
    %v3638 = vsel %vm2881, %v3637, %v3636
    %v3639 = vrot.slane %v3420, 1
    %v3640 = vsel %vm2863, %v3421, %v3639
    %v3641 = vrot.slane %v3422, 7
    %v3642 = vsel %vm2866, %v3641, %v3640
    %v3643 = vrot.slane %v3423, 6
    %v3644 = vsel %vm2869, %v3643, %v3642
    %v3645 = vrot.slane %v3424, 5
    %v3646 = vsel %vm2872, %v3645, %v3644
    %v3647 = vrot.slane %v3425, 4
    %v3648 = vsel %vm2875, %v3647, %v3646
    %v3649 = vrot.slane %v3426, 3
    %v3650 = vsel %vm2878, %v3649, %v3648
    %v3651 = vrot.slane %v3427, 2
    %v3652 = vsel %vm2881, %v3651, %v3650
    %v3653 = vrot.slane %v3428, 1
    %v3654 = vrot.slane %v3430, 7
    %v3655 = vsel %vm2866, %v3654, %v3429
    %v3656 = vrot.slane %v3431, 6
    %v3657 = vsel %vm2869, %v3656, %v3655
    %v3658 = vrot.slane %v3432, 5
    %v3659 = vsel %vm2872, %v3658, %v3657
    %v3660 = vrot.slane %v3433, 4
    %v3661 = vsel %vm2875, %v3660, %v3659
    %v3662 = vrot.slane %v3434, 3
    %v3663 = vsel %vm2878, %v3662, %v3661
    %v3664 = vrot.slane %v3435, 2
    %v3665 = vsel %vm2881, %v3664, %v3663
    %v3666 = vrot.slane %v3436, 1
    %v3667 = vsel %vm2863, %v3437, %v3666
    %v3668 = vrot.slane %v3438, 7
    %v3669 = vsel %vm2866, %v3668, %v3667
    %v3670 = vrot.slane %v3439, 6
    %v3671 = vsel %vm2869, %v3670, %v3669
    %v3672 = vrot.slane %v3440, 5
    %v3673 = vsel %vm2872, %v3672, %v3671
    %v3674 = vrot.slane %v3441, 4
    %v3675 = vsel %vm2875, %v3674, %v3673
    %v3676 = vrot.slane %v3442, 3
    %v3677 = vsel %vm2878, %v3676, %v3675
    %v3678 = vrot.slane %v3443, 2
    %v3679 = vsel %vm2881, %v3678, %v3677
    %v3680 = vrot.slane %v3444, 1
    %v3681 = vrot.slane %v3446, 7
    %v3682 = vsel %vm2866, %v3681, %v3445
    %v3683 = vrot.slane %v3447, 6
    %v3684 = vsel %vm2869, %v3683, %v3682
    %v3685 = vrot.slane %v3448, 5
    %v3686 = vsel %vm2872, %v3685, %v3684
    %v3687 = vrot.slane %v3449, 4
    %v3688 = vsel %vm2875, %v3687, %v3686
    %v3689 = vrot.slane %v3450, 3
    %v3690 = vsel %vm2878, %v3689, %v3688
    %v3691 = vrot.slane %v3451, 2
    %v3692 = vsel %vm2881, %v3691, %v3690
    %v3693 = vrot.slane %v3452, 1
    %v3694 = vsel %vm2863, %v3453, %v3693
    %v3695 = vrot.slane %v3454, 7
    %v3696 = vsel %vm2866, %v3695, %v3694
    %v3697 = vrot.slane %v3455, 6
    %v3698 = vsel %vm2869, %v3697, %v3696
    %v3699 = vrot.slane %v3456, 5
    %v3700 = vsel %vm2872, %v3699, %v3698
    %v3701 = vrot.slane %v3457, 4
    %v3702 = vsel %vm2875, %v3701, %v3700
    %v3703 = vrot.slane %v3458, 3
    %v3704 = vsel %vm2878, %v3703, %v3702
    %v3705 = vrot.slane %v3459, 2
    %v3706 = vsel %vm2881, %v3705, %v3704
    %v3707 = vrot.slane %v3460, 1
    %v3708 = vrot.slane %v3462, 7
    %v3709 = vsel %vm2866, %v3708, %v3461
    %v3710 = vrot.slane %v3463, 6
    %v3711 = vsel %vm2869, %v3710, %v3709
    %v3712 = vrot.slane %v3464, 5
    %v3713 = vsel %vm2872, %v3712, %v3711
    %v3714 = vrot.slane %v3465, 4
    %v3715 = vsel %vm2875, %v3714, %v3713
    %v3716 = vrot.slane %v3466, 3
    %v3717 = vsel %vm2878, %v3716, %v3715
    %v3718 = vrot.slane %v3467, 2
    %v3719 = vsel %vm2881, %v3718, %v3717
    %v3720 = vrot.slane %v3468, 1
    %v3721 = vsel %vm2863, %v3469, %v3720
    %v3722 = vrot.slane %v3470, 7
    %v3723 = vsel %vm2866, %v3722, %v3721
    %v3724 = vrot.slane %v3471, 6
    %v3725 = vsel %vm2869, %v3724, %v3723
    %v3726 = vrot.slane %v3472, 5
    %v3727 = vsel %vm2872, %v3726, %v3725
    %v3728 = vrot.slane %v3473, 4
    %v3729 = vsel %vm2875, %v3728, %v3727
    %v3730 = vrot.slane %v3474, 3
    %v3731 = vsel %vm2878, %v3730, %v3729
    %v3732 = vrot.slane %v3475, 2
    %v3733 = vsel %vm2881, %v3732, %v3731
    %v3734 = vrot.slane %v3476, 1
    %s3753 = scalar_lea.vmem [#allocation2], 16
    %vm3754 = vcmask 130049
    %3755 = vst.msk [vmem:[%s3753 - $0x1] sm:$0xfe] %vm3754, %v3584
    %3756 = vst.msk [vmem:[%s3753 + $0x7] sm:$0xff] %vm74, %v3598
    %vm3757 = vcmask 122880
    %3758 = vst.msk [vmem:[%s3753 + $0xf] sm:$0x1] %vm3757, %v3599
    %3759 = vst.msk [vmem:[%s3753 + $0x3f] sm:$0xfe] %vm3754, %v3611
    %3760 = vst.msk [vmem:[%s3753 + $0x47] sm:$0xff] %vm74, %v3625
    %3761 = vst.msk [vmem:[%s3753 + $0x4f] sm:$0x1] %vm3757, %v3626
    %3762 = vst.msk [vmem:[%s3753 + $0x7f] sm:$0xfe] %vm3754, %v3638
    %3763 = vst.msk [vmem:[%s3753 + $0x87] sm:$0xff] %vm74, %v3652
    %3764 = vst.msk [vmem:[%s3753 + $0x8f] sm:$0x1] %vm3757, %v3653
    %3765 = vst.msk [vmem:[%s3753 + $0xbf] sm:$0xfe] %vm3754, %v3665
    %3766 = vst.msk [vmem:[%s3753 + $0xc7] sm:$0xff] %vm74, %v3679
    %3767 = vst.msk [vmem:[%s3753 + $0xcf] sm:$0x1] %vm3757, %v3680
    %3768 = vst.msk [vmem:[%s3753 + $0xff] sm:$0xfe] %vm3754, %v3692
    %3769 = vst.msk [vmem:[%s3753 + $0x107] sm:$0xff] %vm74, %v3706
    %3770 = vst.msk [vmem:[%s3753 + $0x10f] sm:$0x1] %vm3757, %v3707
    %3771 = vst.msk [vmem:[%s3753 + $0x13f] sm:$0xfe] %vm3754, %v3719
    %3772 = vst.msk [vmem:[%s3753 + $0x147] sm:$0xff] %vm74, %v3733
    %3773 = vst.msk [vmem:[%s3753 + $0x14f] sm:$0x1] %vm3757, %v3734
    %v3786 = vrot.slane %v1799, 6
    %v3787 = vrot.slane %v1799, 7
    %v3788 = vrot.slane %v1799, 1
    %v3789 = vrot.slane %v1799, 2
    %v3790 = vrot.slane %v1799, 3
    %v3791 = vrot.slane %v1799, 4
    %v3792 = vrot.slane %v1799, 5
    %v3793 = vrot.slane %v1804, 6
    %v3794 = vrot.slane %v1804, 7
    %v3795 = vrot.slane %v1804, 1
    %v3796 = vrot.slane %v1804, 2
    %v3797 = vrot.slane %v1804, 3
    %v3798 = vrot.slane %v1804, 4
    %v3799 = vrot.slane %v1804, 5
    %v3800 = vrot.slane %v1904, 6
    %v3801 = vrot.slane %v1904, 7
    %v3802 = vrot.slane %v1904, 1
    %v3803 = vrot.slane %v1904, 2
    %v3804 = vrot.slane %v1904, 3
    %v3805 = vrot.slane %v1904, 4
    %v3806 = vrot.slane %v1904, 5
    %v3807 = vrot.slane %v1909, 6
    %v3808 = vrot.slane %v1909, 7
    %v3809 = vrot.slane %v1909, 1
    %v3810 = vrot.slane %v1909, 2
    %v3811 = vrot.slane %v1909, 3
    %v3812 = vrot.slane %v1909, 4
    %v3813 = vrot.slane %v1909, 5
    %v3814 = vrot.slane %v2009, 6
    %v3815 = vrot.slane %v2009, 7
    %v3816 = vrot.slane %v2009, 1
    %v3817 = vrot.slane %v2009, 2
    %v3818 = vrot.slane %v2009, 3
    %v3819 = vrot.slane %v2009, 4
    %v3820 = vrot.slane %v2009, 5
    %v3821 = vrot.slane %v2014, 6
    %v3822 = vrot.slane %v2014, 7
    %v3823 = vrot.slane %v2014, 1
    %v3824 = vrot.slane %v2014, 2
    %v3825 = vrot.slane %v2014, 3
    %v3826 = vrot.slane %v2014, 4
    %v3827 = vrot.slane %v2014, 5
    %v3828 = vrot.slane %v2114, 6
    %v3829 = vrot.slane %v2114, 7
    %v3830 = vrot.slane %v2114, 1
    %v3831 = vrot.slane %v2114, 2
    %v3832 = vrot.slane %v2114, 3
    %v3833 = vrot.slane %v2114, 4
    %v3834 = vrot.slane %v2114, 5
    %v3835 = vrot.slane %v2119, 6
    %v3836 = vrot.slane %v2119, 7
    %v3837 = vrot.slane %v2119, 1
    %v3838 = vrot.slane %v2119, 2
    %v3839 = vrot.slane %v2119, 3
    %v3840 = vrot.slane %v2119, 4
    %v3841 = vrot.slane %v2119, 5
    %v3842 = vrot.slane %v2219, 6
    %v3843 = vrot.slane %v2219, 7
    %v3844 = vrot.slane %v2219, 1
    %v3845 = vrot.slane %v2219, 2
    %v3846 = vrot.slane %v2219, 3
    %v3847 = vrot.slane %v2219, 4
    %v3848 = vrot.slane %v2219, 5
    %v3849 = vrot.slane %v2224, 6
    %v3850 = vrot.slane %v2224, 7
    %v3851 = vrot.slane %v2224, 1
    %v3852 = vrot.slane %v2224, 2
    %v3853 = vrot.slane %v2224, 3
    %v3854 = vrot.slane %v2224, 4
    %v3855 = vrot.slane %v2224, 5
    %v3856 = vrot.slane %v2324, 6
    %v3857 = vrot.slane %v2324, 7
    %v3858 = vrot.slane %v2324, 1
    %v3859 = vrot.slane %v2324, 2
    %v3860 = vrot.slane %v2324, 3
    %v3861 = vrot.slane %v2324, 4
    %v3862 = vrot.slane %v2324, 5
    %v3863 = vrot.slane %v2329, 6
    %v3864 = vrot.slane %v2329, 7
    %v3865 = vrot.slane %v2329, 1
    %v3866 = vrot.slane %v2329, 2
    %v3867 = vrot.slane %v2329, 3
    %v3868 = vrot.slane %v2329, 4
    %v3869 = vrot.slane %v2329, 5
    %v3966 = vadd.f32 %v903, %v3786
    %v3967 = vadd.f32 %v927, %v3787
    %v3968 = vadd.f32 %v910, %v1799
    %v3969 = vadd.f32 %v928, %v3788
    %v3970 = vadd.f32 %v919, %v3789
    %v3971 = vadd.f32 %v929, %v3790
    %v3972 = vadd.f32 %v926, %v3791
    %v3973 = vadd.f32 %v930, %v3792
    %v3974 = vadd.f32 %v971, %v3793
    %v3975 = vadd.f32 %v995, %v3794
    %v3976 = vadd.f32 %v978, %v1804
    %v3977 = vadd.f32 %v996, %v3795
    %v3978 = vadd.f32 %v987, %v3796
    %v3979 = vadd.f32 %v997, %v3797
    %v3980 = vadd.f32 %v994, %v3798
    %v3981 = vadd.f32 %v998, %v3799
    %v3982 = vadd.f32 %v1039, %v3800
    %v3983 = vadd.f32 %v1063, %v3801
    %v3984 = vadd.f32 %v1046, %v1904
    %v3985 = vadd.f32 %v1064, %v3802
    %v3986 = vadd.f32 %v1055, %v3803
    %v3987 = vadd.f32 %v1065, %v3804
    %v3988 = vadd.f32 %v1062, %v3805
    %v3989 = vadd.f32 %v1066, %v3806
    %v3990 = vadd.f32 %v1107, %v3807
    %v3991 = vadd.f32 %v1131, %v3808
    %v3992 = vadd.f32 %v1114, %v1909
    %v3993 = vadd.f32 %v1132, %v3809
    %v3994 = vadd.f32 %v1123, %v3810
    %v3995 = vadd.f32 %v1133, %v3811
    %v3996 = vadd.f32 %v1130, %v3812
    %v3997 = vadd.f32 %v1134, %v3813
    %v3998 = vadd.f32 %v1175, %v3814
    %v3999 = vadd.f32 %v1199, %v3815
    %v4000 = vadd.f32 %v1182, %v2009
    %v4001 = vadd.f32 %v1200, %v3816
    %v4002 = vadd.f32 %v1191, %v3817
    %v4003 = vadd.f32 %v1201, %v3818
    %v4004 = vadd.f32 %v1198, %v3819
    %v4005 = vadd.f32 %v1202, %v3820
    %v4006 = vadd.f32 %v1243, %v3821
    %v4007 = vadd.f32 %v1267, %v3822
    %v4008 = vadd.f32 %v1250, %v2014
    %v4009 = vadd.f32 %v1268, %v3823
    %v4010 = vadd.f32 %v1259, %v3824
    %v4011 = vadd.f32 %v1269, %v3825
    %v4012 = vadd.f32 %v1266, %v3826
    %v4013 = vadd.f32 %v1270, %v3827
    %v4014 = vadd.f32 %v1311, %v3828
    %v4015 = vadd.f32 %v1335, %v3829
    %v4016 = vadd.f32 %v1318, %v2114
    %v4017 = vadd.f32 %v1336, %v3830
    %v4018 = vadd.f32 %v1327, %v3831
    %v4019 = vadd.f32 %v1337, %v3832
    %v4020 = vadd.f32 %v1334, %v3833
    %v4021 = vadd.f32 %v1338, %v3834
    %v4022 = vadd.f32 %v1379, %v3835
    %v4023 = vadd.f32 %v1403, %v3836
    %v4024 = vadd.f32 %v1386, %v2119
    %v4025 = vadd.f32 %v1404, %v3837
    %v4026 = vadd.f32 %v1395, %v3838
    %v4027 = vadd.f32 %v1405, %v3839
    %v4028 = vadd.f32 %v1402, %v3840
    %v4029 = vadd.f32 %v1406, %v3841
    %v4030 = vadd.f32 %v1447, %v3842
    %v4031 = vadd.f32 %v1471, %v3843
    %v4032 = vadd.f32 %v1454, %v2219
    %v4033 = vadd.f32 %v1472, %v3844
    %v4034 = vadd.f32 %v1463, %v3845
    %v4035 = vadd.f32 %v1473, %v3846
    %v4036 = vadd.f32 %v1470, %v3847
    %v4037 = vadd.f32 %v1474, %v3848
    %v4038 = vadd.f32 %v1515, %v3849
    %v4039 = vadd.f32 %v1539, %v3850
    %v4040 = vadd.f32 %v1522, %v2224
    %v4041 = vadd.f32 %v1540, %v3851
    %v4042 = vadd.f32 %v1531, %v3852
    %v4043 = vadd.f32 %v1541, %v3853
    %v4044 = vadd.f32 %v1538, %v3854
    %v4045 = vadd.f32 %v1542, %v3855
    %v4046 = vadd.f32 %v1583, %v3856
    %v4047 = vadd.f32 %v1607, %v3857
    %v4048 = vadd.f32 %v1590, %v2324
    %v4049 = vadd.f32 %v1608, %v3858
    %v4050 = vadd.f32 %v1599, %v3859
    %v4051 = vadd.f32 %v1609, %v3860
    %v4052 = vadd.f32 %v1606, %v3861
    %v4053 = vadd.f32 %v1610, %v3862
    %v4054 = vadd.f32 %v1651, %v3863
    %v4055 = vadd.f32 %v1675, %v3864
    %v4056 = vadd.f32 %v1658, %v2329
    %v4057 = vadd.f32 %v1676, %v3865
    %v4058 = vadd.f32 %v1667, %v3866
    %v4059 = vadd.f32 %v1677, %v3867
    %v4060 = vadd.f32 %v1674, %v3868
    %v4061 = vadd.f32 %v1678, %v3869
    %v4064 = vrot.slane %v2346, 6
    %v4065 = vrot.slane %v2346, 7
    %v4066 = vrot.slane %v2346, 1
    %v4067 = vrot.slane %v2346, 2
    %v4068 = vrot.slane %v2346, 3
    %v4069 = vrot.slane %v2346, 4
    %v4070 = vrot.slane %v2346, 5
    %v4071 = vrot.slane %v2347, 6
    %v4072 = vrot.slane %v2347, 7
    %v4073 = vrot.slane %v2347, 1
    %v4074 = vrot.slane %v2347, 2
    %v4075 = vrot.slane %v2347, 3
    %v4076 = vrot.slane %v2347, 4
    %v4077 = vrot.slane %v2347, 5
    %v4094 = vadd.f32 %v3966, %v4064
    %v4095 = vadd.f32 %v3967, %v4065
    %v4096 = vadd.f32 %v3968, %v2346
    %v4097 = vadd.f32 %v3969, %v4066
    %v4098 = vadd.f32 %v3970, %v4067
    %v4099 = vadd.f32 %v3971, %v4068
    %v4100 = vadd.f32 %v3972, %v4069
    %v4101 = vadd.f32 %v3973, %v4070
    %v4102 = vadd.f32 %v3974, %v4071
    %v4103 = vadd.f32 %v3975, %v4072
    %v4104 = vadd.f32 %v3976, %v2347
    %v4105 = vadd.f32 %v3977, %v4073
    %v4106 = vadd.f32 %v3978, %v4074
    %v4107 = vadd.f32 %v3979, %v4075
    %v4108 = vadd.f32 %v3980, %v4076
    %v4109 = vadd.f32 %v3981, %v4077
    %v4110 = vadd.f32 %v3982, %v4064
    %v4111 = vadd.f32 %v3983, %v4065
    %v4112 = vadd.f32 %v3984, %v2346
    %v4113 = vadd.f32 %v3985, %v4066
    %v4114 = vadd.f32 %v3986, %v4067
    %v4115 = vadd.f32 %v3987, %v4068
    %v4116 = vadd.f32 %v3988, %v4069
    %v4117 = vadd.f32 %v3989, %v4070
    %v4118 = vadd.f32 %v3990, %v4071
    %v4119 = vadd.f32 %v3991, %v4072
    %v4120 = vadd.f32 %v3992, %v2347
    %v4121 = vadd.f32 %v3993, %v4073
    %v4122 = vadd.f32 %v3994, %v4074
    %v4123 = vadd.f32 %v3995, %v4075
    %v4124 = vadd.f32 %v3996, %v4076
    %v4125 = vadd.f32 %v3997, %v4077
    %v4126 = vadd.f32 %v3998, %v4064
    %v4127 = vadd.f32 %v3999, %v4065
    %v4128 = vadd.f32 %v4000, %v2346
    %v4129 = vadd.f32 %v4001, %v4066
    %v4130 = vadd.f32 %v4002, %v4067
    %v4131 = vadd.f32 %v4003, %v4068
    %v4132 = vadd.f32 %v4004, %v4069
    %v4133 = vadd.f32 %v4005, %v4070
    %v4134 = vadd.f32 %v4006, %v4071
    %v4135 = vadd.f32 %v4007, %v4072
    %v4136 = vadd.f32 %v4008, %v2347
    %v4137 = vadd.f32 %v4009, %v4073
    %v4138 = vadd.f32 %v4010, %v4074
    %v4139 = vadd.f32 %v4011, %v4075
    %v4140 = vadd.f32 %v4012, %v4076
    %v4141 = vadd.f32 %v4013, %v4077
    %v4142 = vadd.f32 %v4014, %v4064
    %v4143 = vadd.f32 %v4015, %v4065
    %v4144 = vadd.f32 %v4016, %v2346
    %v4145 = vadd.f32 %v4017, %v4066
    %v4146 = vadd.f32 %v4018, %v4067
    %v4147 = vadd.f32 %v4019, %v4068
    %v4148 = vadd.f32 %v4020, %v4069
    %v4149 = vadd.f32 %v4021, %v4070
    %v4150 = vadd.f32 %v4022, %v4071
    %v4151 = vadd.f32 %v4023, %v4072
    %v4152 = vadd.f32 %v4024, %v2347
    %v4153 = vadd.f32 %v4025, %v4073
    %v4154 = vadd.f32 %v4026, %v4074
    %v4155 = vadd.f32 %v4027, %v4075
    %v4156 = vadd.f32 %v4028, %v4076
    %v4157 = vadd.f32 %v4029, %v4077
    %v4158 = vadd.f32 %v4030, %v4064
    %v4159 = vadd.f32 %v4031, %v4065
    %v4160 = vadd.f32 %v4032, %v2346
    %v4161 = vadd.f32 %v4033, %v4066
    %v4162 = vadd.f32 %v4034, %v4067
    %v4163 = vadd.f32 %v4035, %v4068
    %v4164 = vadd.f32 %v4036, %v4069
    %v4165 = vadd.f32 %v4037, %v4070
    %v4166 = vadd.f32 %v4038, %v4071
    %v4167 = vadd.f32 %v4039, %v4072
    %v4168 = vadd.f32 %v4040, %v2347
    %v4169 = vadd.f32 %v4041, %v4073
    %v4170 = vadd.f32 %v4042, %v4074
    %v4171 = vadd.f32 %v4043, %v4075
    %v4172 = vadd.f32 %v4044, %v4076
    %v4173 = vadd.f32 %v4045, %v4077
    %v4174 = vadd.f32 %v4046, %v4064
    %v4175 = vadd.f32 %v4047, %v4065
    %v4176 = vadd.f32 %v4048, %v2346
    %v4177 = vadd.f32 %v4049, %v4066
    %v4178 = vadd.f32 %v4050, %v4067
    %v4179 = vadd.f32 %v4051, %v4068
    %v4180 = vadd.f32 %v4052, %v4069
    %v4181 = vadd.f32 %v4053, %v4070
    %v4182 = vadd.f32 %v4054, %v4071
    %v4183 = vadd.f32 %v4055, %v4072
    %v4184 = vadd.f32 %v4056, %v2347
    %v4185 = vadd.f32 %v4057, %v4073
    %v4186 = vadd.f32 %v4058, %v4074
    %v4187 = vadd.f32 %v4059, %v4075
    %v4188 = vadd.f32 %v4060, %v4076
    %v4189 = vadd.f32 %v4061, %v4077
    %v4286 = vrot.slane %v4095, 7
    %v4287 = vsel %vm2869, %v4286, %v4094
    %v4288 = vrot.slane %v4096, 6
    %v4289 = vsel %vm2872, %v4288, %v4287
    %v4290 = vrot.slane %v4097, 5
    %v4291 = vsel %vm2875, %v4290, %v4289
    %v4292 = vrot.slane %v4098, 4
    %v4293 = vsel %vm2878, %v4292, %v4291
    %v4294 = vrot.slane %v4099, 3
    %v4295 = vsel %vm2881, %v4294, %v4293
    %v4296 = vrot.slane %v4100, 2
    %v4297 = vrot.slane %v4101, 1
    %v4298 = vsel %vm2863, %v4297, %v4296
    %v4299 = vsel %vm2866, %v4102, %v4298
    %v4300 = vrot.slane %v4103, 7
    %v4301 = vsel %vm2869, %v4300, %v4299
    %v4302 = vrot.slane %v4104, 6
    %v4303 = vsel %vm2872, %v4302, %v4301
    %v4304 = vrot.slane %v4105, 5
    %v4305 = vsel %vm2875, %v4304, %v4303
    %v4306 = vrot.slane %v4106, 4
    %v4307 = vsel %vm2878, %v4306, %v4305
    %v4308 = vrot.slane %v4107, 3
    %v4309 = vsel %vm2881, %v4308, %v4307
    %v4310 = vrot.slane %v4108, 2
    %v4311 = vrot.slane %v4109, 1
    %v4312 = vsel %vm2863, %v4311, %v4310
    %v4313 = vrot.slane %v4111, 7
    %v4314 = vsel %vm2869, %v4313, %v4110
    %v4315 = vrot.slane %v4112, 6
    %v4316 = vsel %vm2872, %v4315, %v4314
    %v4317 = vrot.slane %v4113, 5
    %v4318 = vsel %vm2875, %v4317, %v4316
    %v4319 = vrot.slane %v4114, 4
    %v4320 = vsel %vm2878, %v4319, %v4318
    %v4321 = vrot.slane %v4115, 3
    %v4322 = vsel %vm2881, %v4321, %v4320
    %v4323 = vrot.slane %v4116, 2
    %v4324 = vrot.slane %v4117, 1
    %v4325 = vsel %vm2863, %v4324, %v4323
    %v4326 = vsel %vm2866, %v4118, %v4325
    %v4327 = vrot.slane %v4119, 7
    %v4328 = vsel %vm2869, %v4327, %v4326
    %v4329 = vrot.slane %v4120, 6
    %v4330 = vsel %vm2872, %v4329, %v4328
    %v4331 = vrot.slane %v4121, 5
    %v4332 = vsel %vm2875, %v4331, %v4330
    %v4333 = vrot.slane %v4122, 4
    %v4334 = vsel %vm2878, %v4333, %v4332
    %v4335 = vrot.slane %v4123, 3
    %v4336 = vsel %vm2881, %v4335, %v4334
    %v4337 = vrot.slane %v4124, 2
    %v4338 = vrot.slane %v4125, 1
    %v4339 = vsel %vm2863, %v4338, %v4337
    %v4340 = vrot.slane %v4127, 7
    %v4341 = vsel %vm2869, %v4340, %v4126
    %v4342 = vrot.slane %v4128, 6
    %v4343 = vsel %vm2872, %v4342, %v4341
    %v4344 = vrot.slane %v4129, 5
    %v4345 = vsel %vm2875, %v4344, %v4343
    %v4346 = vrot.slane %v4130, 4
    %v4347 = vsel %vm2878, %v4346, %v4345
    %v4348 = vrot.slane %v4131, 3
    %v4349 = vsel %vm2881, %v4348, %v4347
    %v4350 = vrot.slane %v4132, 2
    %v4351 = vrot.slane %v4133, 1
    %v4352 = vsel %vm2863, %v4351, %v4350
    %v4353 = vsel %vm2866, %v4134, %v4352
    %v4354 = vrot.slane %v4135, 7
    %v4355 = vsel %vm2869, %v4354, %v4353
    %v4356 = vrot.slane %v4136, 6
    %v4357 = vsel %vm2872, %v4356, %v4355
    %v4358 = vrot.slane %v4137, 5
    %v4359 = vsel %vm2875, %v4358, %v4357
    %v4360 = vrot.slane %v4138, 4
    %v4361 = vsel %vm2878, %v4360, %v4359
    %v4362 = vrot.slane %v4139, 3
    %v4363 = vsel %vm2881, %v4362, %v4361
    %v4364 = vrot.slane %v4140, 2
    %v4365 = vrot.slane %v4141, 1
    %v4366 = vsel %vm2863, %v4365, %v4364
    %v4367 = vrot.slane %v4143, 7
    %v4368 = vsel %vm2869, %v4367, %v4142
    %v4369 = vrot.slane %v4144, 6
    %v4370 = vsel %vm2872, %v4369, %v4368
    %v4371 = vrot.slane %v4145, 5
    %v4372 = vsel %vm2875, %v4371, %v4370
    %v4373 = vrot.slane %v4146, 4
    %v4374 = vsel %vm2878, %v4373, %v4372
    %v4375 = vrot.slane %v4147, 3
    %v4376 = vsel %vm2881, %v4375, %v4374
    %v4377 = vrot.slane %v4148, 2
    %v4378 = vrot.slane %v4149, 1
    %v4379 = vsel %vm2863, %v4378, %v4377
    %v4380 = vsel %vm2866, %v4150, %v4379
    %v4381 = vrot.slane %v4151, 7
    %v4382 = vsel %vm2869, %v4381, %v4380
    %v4383 = vrot.slane %v4152, 6
    %v4384 = vsel %vm2872, %v4383, %v4382
    %v4385 = vrot.slane %v4153, 5
    %v4386 = vsel %vm2875, %v4385, %v4384
    %v4387 = vrot.slane %v4154, 4
    %v4388 = vsel %vm2878, %v4387, %v4386
    %v4389 = vrot.slane %v4155, 3
    %v4390 = vsel %vm2881, %v4389, %v4388
    %v4391 = vrot.slane %v4156, 2
    %v4392 = vrot.slane %v4157, 1
    %v4393 = vsel %vm2863, %v4392, %v4391
    %v4394 = vrot.slane %v4159, 7
    %v4395 = vsel %vm2869, %v4394, %v4158
    %v4396 = vrot.slane %v4160, 6
    %v4397 = vsel %vm2872, %v4396, %v4395
    %v4398 = vrot.slane %v4161, 5
    %v4399 = vsel %vm2875, %v4398, %v4397
    %v4400 = vrot.slane %v4162, 4
    %v4401 = vsel %vm2878, %v4400, %v4399
    %v4402 = vrot.slane %v4163, 3
    %v4403 = vsel %vm2881, %v4402, %v4401
    %v4404 = vrot.slane %v4164, 2
    %v4405 = vrot.slane %v4165, 1
    %v4406 = vsel %vm2863, %v4405, %v4404
    %v4407 = vsel %vm2866, %v4166, %v4406
    %v4408 = vrot.slane %v4167, 7
    %v4409 = vsel %vm2869, %v4408, %v4407
    %v4410 = vrot.slane %v4168, 6
    %v4411 = vsel %vm2872, %v4410, %v4409
    %v4412 = vrot.slane %v4169, 5
    %v4413 = vsel %vm2875, %v4412, %v4411
    %v4414 = vrot.slane %v4170, 4
    %v4415 = vsel %vm2878, %v4414, %v4413
    %v4416 = vrot.slane %v4171, 3
    %v4417 = vsel %vm2881, %v4416, %v4415
    %v4418 = vrot.slane %v4172, 2
    %v4419 = vrot.slane %v4173, 1
    %v4420 = vsel %vm2863, %v4419, %v4418
    %v4421 = vrot.slane %v4175, 7
    %v4422 = vsel %vm2869, %v4421, %v4174
    %v4423 = vrot.slane %v4176, 6
    %v4424 = vsel %vm2872, %v4423, %v4422
    %v4425 = vrot.slane %v4177, 5
    %v4426 = vsel %vm2875, %v4425, %v4424
    %v4427 = vrot.slane %v4178, 4
    %v4428 = vsel %vm2878, %v4427, %v4426
    %v4429 = vrot.slane %v4179, 3
    %v4430 = vsel %vm2881, %v4429, %v4428
    %v4431 = vrot.slane %v4180, 2
    %v4432 = vrot.slane %v4181, 1
    %v4433 = vsel %vm2863, %v4432, %v4431
    %v4434 = vsel %vm2866, %v4182, %v4433
    %v4435 = vrot.slane %v4183, 7
    %v4436 = vsel %vm2869, %v4435, %v4434
    %v4437 = vrot.slane %v4184, 6
    %v4438 = vsel %vm2872, %v4437, %v4436
    %v4439 = vrot.slane %v4185, 5
    %v4440 = vsel %vm2875, %v4439, %v4438
    %v4441 = vrot.slane %v4186, 4
    %v4442 = vsel %vm2878, %v4441, %v4440
    %v4443 = vrot.slane %v4187, 3
    %v4444 = vsel %vm2881, %v4443, %v4442
    %v4445 = vrot.slane %v4188, 2
    %v4446 = vrot.slane %v4189, 1
    %v4447 = vsel %vm2863, %v4446, %v4445
    %s4466 = scalar_lea.vmem [#allocation2], 32
    %vm4467 = vcmask 130050
    %4468 = vst.msk [vmem:[%s4466 - $0x2] sm:$0xfc] %vm4467, %v4295
    %4469 = vst.msk [vmem:[%s4466 + $0x6] sm:$0xff] %vm74, %v4309
    %vm4470 = vcmask 123904
    %4471 = vst.msk [vmem:[%s4466 + $0xe] sm:$0x3] %vm4470, %v4312
    %4472 = vst.msk [vmem:[%s4466 + $0x3e] sm:$0xfc] %vm4467, %v4322
    %4473 = vst.msk [vmem:[%s4466 + $0x46] sm:$0xff] %vm74, %v4336
    %4474 = vst.msk [vmem:[%s4466 + $0x4e] sm:$0x3] %vm4470, %v4339
    %4475 = vst.msk [vmem:[%s4466 + $0x7e] sm:$0xfc] %vm4467, %v4349
    %4476 = vst.msk [vmem:[%s4466 + $0x86] sm:$0xff] %vm74, %v4363
    %4477 = vst.msk [vmem:[%s4466 + $0x8e] sm:$0x3] %vm4470, %v4366
    %4478 = vst.msk [vmem:[%s4466 + $0xbe] sm:$0xfc] %vm4467, %v4376
    %4479 = vst.msk [vmem:[%s4466 + $0xc6] sm:$0xff] %vm74, %v4390
    %4480 = vst.msk [vmem:[%s4466 + $0xce] sm:$0x3] %vm4470, %v4393
    %4481 = vst.msk [vmem:[%s4466 + $0xfe] sm:$0xfc] %vm4467, %v4403
    %4482 = vst.msk [vmem:[%s4466 + $0x106] sm:$0xff] %vm74, %v4417
    %4483 = vst.msk [vmem:[%s4466 + $0x10e] sm:$0x3] %vm4470, %v4420
    %4484 = vst.msk [vmem:[%s4466 + $0x13e] sm:$0xfc] %vm4467, %v4430
    %4485 = vst.msk [vmem:[%s4466 + $0x146] sm:$0xff] %vm74, %v4444
    %4486 = vst.msk [vmem:[%s4466 + $0x14e] sm:$0x3] %vm4470, %v4447
    %v4499 = vrot.slane %v1809, 5
    %v4500 = vrot.slane %v1809, 6
    %v4501 = vrot.slane %v1809, 7
    %v4502 = vrot.slane %v1809, 1
    %v4503 = vrot.slane %v1809, 2
    %v4504 = vrot.slane %v1809, 3
    %v4505 = vrot.slane %v1809, 4
    %v4506 = vrot.slane %v1814, 5
    %v4507 = vrot.slane %v1814, 6
    %v4508 = vrot.slane %v1814, 7
    %v4509 = vrot.slane %v1814, 1
    %v4510 = vrot.slane %v1814, 2
    %v4511 = vrot.slane %v1814, 3
    %v4512 = vrot.slane %v1814, 4
    %v4513 = vrot.slane %v1914, 5
    %v4514 = vrot.slane %v1914, 6
    %v4515 = vrot.slane %v1914, 7
    %v4516 = vrot.slane %v1914, 1
    %v4517 = vrot.slane %v1914, 2
    %v4518 = vrot.slane %v1914, 3
    %v4519 = vrot.slane %v1914, 4
    %v4520 = vrot.slane %v1919, 5
    %v4521 = vrot.slane %v1919, 6
    %v4522 = vrot.slane %v1919, 7
    %v4523 = vrot.slane %v1919, 1
    %v4524 = vrot.slane %v1919, 2
    %v4525 = vrot.slane %v1919, 3
    %v4526 = vrot.slane %v1919, 4
    %v4527 = vrot.slane %v2019, 5
    %v4528 = vrot.slane %v2019, 6
    %v4529 = vrot.slane %v2019, 7
    %v4530 = vrot.slane %v2019, 1
    %v4531 = vrot.slane %v2019, 2
    %v4532 = vrot.slane %v2019, 3
    %v4533 = vrot.slane %v2019, 4
    %v4534 = vrot.slane %v2024, 5
    %v4535 = vrot.slane %v2024, 6
    %v4536 = vrot.slane %v2024, 7
    %v4537 = vrot.slane %v2024, 1
    %v4538 = vrot.slane %v2024, 2
    %v4539 = vrot.slane %v2024, 3
    %v4540 = vrot.slane %v2024, 4
    %v4541 = vrot.slane %v2124, 5
    %v4542 = vrot.slane %v2124, 6
    %v4543 = vrot.slane %v2124, 7
    %v4544 = vrot.slane %v2124, 1
    %v4545 = vrot.slane %v2124, 2
    %v4546 = vrot.slane %v2124, 3
    %v4547 = vrot.slane %v2124, 4
    %v4548 = vrot.slane %v2129, 5
    %v4549 = vrot.slane %v2129, 6
    %v4550 = vrot.slane %v2129, 7
    %v4551 = vrot.slane %v2129, 1
    %v4552 = vrot.slane %v2129, 2
    %v4553 = vrot.slane %v2129, 3
    %v4554 = vrot.slane %v2129, 4
    %v4555 = vrot.slane %v2229, 5
    %v4556 = vrot.slane %v2229, 6
    %v4557 = vrot.slane %v2229, 7
    %v4558 = vrot.slane %v2229, 1
    %v4559 = vrot.slane %v2229, 2
    %v4560 = vrot.slane %v2229, 3
    %v4561 = vrot.slane %v2229, 4
    %v4562 = vrot.slane %v2234, 5
    %v4563 = vrot.slane %v2234, 6
    %v4564 = vrot.slane %v2234, 7
    %v4565 = vrot.slane %v2234, 1
    %v4566 = vrot.slane %v2234, 2
    %v4567 = vrot.slane %v2234, 3
    %v4568 = vrot.slane %v2234, 4
    %v4569 = vrot.slane %v2334, 5
    %v4570 = vrot.slane %v2334, 6
    %v4571 = vrot.slane %v2334, 7
    %v4572 = vrot.slane %v2334, 1
    %v4573 = vrot.slane %v2334, 2
    %v4574 = vrot.slane %v2334, 3
    %v4575 = vrot.slane %v2334, 4
    %v4576 = vrot.slane %v2339, 5
    %v4577 = vrot.slane %v2339, 6
    %v4578 = vrot.slane %v2339, 7
    %v4579 = vrot.slane %v2339, 1
    %v4580 = vrot.slane %v2339, 2
    %v4581 = vrot.slane %v2339, 3
    %v4582 = vrot.slane %v2339, 4
    %v4679 = vadd.f32 %v903, %v4499
    %v4680 = vadd.f32 %v927, %v4500
    %v4681 = vadd.f32 %v910, %v4501
    %v4682 = vadd.f32 %v928, %v1809
    %v4683 = vadd.f32 %v919, %v4502
    %v4684 = vadd.f32 %v929, %v4503
    %v4685 = vadd.f32 %v926, %v4504
    %v4686 = vadd.f32 %v930, %v4505
    %v4687 = vadd.f32 %v971, %v4506
    %v4688 = vadd.f32 %v995, %v4507
    %v4689 = vadd.f32 %v978, %v4508
    %v4690 = vadd.f32 %v996, %v1814
    %v4691 = vadd.f32 %v987, %v4509
    %v4692 = vadd.f32 %v997, %v4510
    %v4693 = vadd.f32 %v994, %v4511
    %v4694 = vadd.f32 %v998, %v4512
    %v4695 = vadd.f32 %v1039, %v4513
    %v4696 = vadd.f32 %v1063, %v4514
    %v4697 = vadd.f32 %v1046, %v4515
    %v4698 = vadd.f32 %v1064, %v1914
    %v4699 = vadd.f32 %v1055, %v4516
    %v4700 = vadd.f32 %v1065, %v4517
    %v4701 = vadd.f32 %v1062, %v4518
    %v4702 = vadd.f32 %v1066, %v4519
    %v4703 = vadd.f32 %v1107, %v4520
    %v4704 = vadd.f32 %v1131, %v4521
    %v4705 = vadd.f32 %v1114, %v4522
    %v4706 = vadd.f32 %v1132, %v1919
    %v4707 = vadd.f32 %v1123, %v4523
    %v4708 = vadd.f32 %v1133, %v4524
    %v4709 = vadd.f32 %v1130, %v4525
    %v4710 = vadd.f32 %v1134, %v4526
    %v4711 = vadd.f32 %v1175, %v4527
    %v4712 = vadd.f32 %v1199, %v4528
    %v4713 = vadd.f32 %v1182, %v4529
    %v4714 = vadd.f32 %v1200, %v2019
    %v4715 = vadd.f32 %v1191, %v4530
    %v4716 = vadd.f32 %v1201, %v4531
    %v4717 = vadd.f32 %v1198, %v4532
    %v4718 = vadd.f32 %v1202, %v4533
    %v4719 = vadd.f32 %v1243, %v4534
    %v4720 = vadd.f32 %v1267, %v4535
    %v4721 = vadd.f32 %v1250, %v4536
    %v4722 = vadd.f32 %v1268, %v2024
    %v4723 = vadd.f32 %v1259, %v4537
    %v4724 = vadd.f32 %v1269, %v4538
    %v4725 = vadd.f32 %v1266, %v4539
    %v4726 = vadd.f32 %v1270, %v4540
    %v4727 = vadd.f32 %v1311, %v4541
    %v4728 = vadd.f32 %v1335, %v4542
    %v4729 = vadd.f32 %v1318, %v4543
    %v4730 = vadd.f32 %v1336, %v2124
    %v4731 = vadd.f32 %v1327, %v4544
    %v4732 = vadd.f32 %v1337, %v4545
    %v4733 = vadd.f32 %v1334, %v4546
    %v4734 = vadd.f32 %v1338, %v4547
    %v4735 = vadd.f32 %v1379, %v4548
    %v4736 = vadd.f32 %v1403, %v4549
    %v4737 = vadd.f32 %v1386, %v4550
    %v4738 = vadd.f32 %v1404, %v2129
    %v4739 = vadd.f32 %v1395, %v4551
    %v4740 = vadd.f32 %v1405, %v4552
    %v4741 = vadd.f32 %v1402, %v4553
    %v4742 = vadd.f32 %v1406, %v4554
    %v4743 = vadd.f32 %v1447, %v4555
    %v4744 = vadd.f32 %v1471, %v4556
    %v4745 = vadd.f32 %v1454, %v4557
    %v4746 = vadd.f32 %v1472, %v2229
    %v4747 = vadd.f32 %v1463, %v4558
    %v4748 = vadd.f32 %v1473, %v4559
    %v4749 = vadd.f32 %v1470, %v4560
    %v4750 = vadd.f32 %v1474, %v4561
    %v4751 = vadd.f32 %v1515, %v4562
    %v4752 = vadd.f32 %v1539, %v4563
    %v4753 = vadd.f32 %v1522, %v4564
    %v4754 = vadd.f32 %v1540, %v2234
    %v4755 = vadd.f32 %v1531, %v4565
    %v4756 = vadd.f32 %v1541, %v4566
    %v4757 = vadd.f32 %v1538, %v4567
    %v4758 = vadd.f32 %v1542, %v4568
    %v4759 = vadd.f32 %v1583, %v4569
    %v4760 = vadd.f32 %v1607, %v4570
    %v4761 = vadd.f32 %v1590, %v4571
    %v4762 = vadd.f32 %v1608, %v2334
    %v4763 = vadd.f32 %v1599, %v4572
    %v4764 = vadd.f32 %v1609, %v4573
    %v4765 = vadd.f32 %v1606, %v4574
    %v4766 = vadd.f32 %v1610, %v4575
    %v4767 = vadd.f32 %v1651, %v4576
    %v4768 = vadd.f32 %v1675, %v4577
    %v4769 = vadd.f32 %v1658, %v4578
    %v4770 = vadd.f32 %v1676, %v2339
    %v4771 = vadd.f32 %v1667, %v4579
    %v4772 = vadd.f32 %v1677, %v4580
    %v4773 = vadd.f32 %v1674, %v4581
    %v4774 = vadd.f32 %v1678, %v4582
    %v4777 = vrot.slane %v2348, 5
    %v4778 = vrot.slane %v2348, 6
    %v4779 = vrot.slane %v2348, 7
    %v4780 = vrot.slane %v2348, 1
    %v4781 = vrot.slane %v2348, 2
    %v4782 = vrot.slane %v2348, 3
    %v4783 = vrot.slane %v2348, 4
    %v4784 = vrot.slane %v2349, 5
    %v4785 = vrot.slane %v2349, 6
    %v4786 = vrot.slane %v2349, 7
    %v4787 = vrot.slane %v2349, 1
    %v4788 = vrot.slane %v2349, 2
    %v4789 = vrot.slane %v2349, 3
    %v4790 = vrot.slane %v2349, 4
    %v4807 = vadd.f32 %v4679, %v4777
    %v4808 = vadd.f32 %v4680, %v4778
    %v4809 = vadd.f32 %v4681, %v4779
    %v4810 = vadd.f32 %v4682, %v2348
    %v4811 = vadd.f32 %v4683, %v4780
    %v4812 = vadd.f32 %v4684, %v4781
    %v4813 = vadd.f32 %v4685, %v4782
    %v4814 = vadd.f32 %v4686, %v4783
    %v4815 = vadd.f32 %v4687, %v4784
    %v4816 = vadd.f32 %v4688, %v4785
    %v4817 = vadd.f32 %v4689, %v4786
    %v4818 = vadd.f32 %v4690, %v2349
    %v4819 = vadd.f32 %v4691, %v4787
    %v4820 = vadd.f32 %v4692, %v4788
    %v4821 = vadd.f32 %v4693, %v4789
    %v4822 = vadd.f32 %v4694, %v4790
    %v4823 = vadd.f32 %v4695, %v4777
    %v4824 = vadd.f32 %v4696, %v4778
    %v4825 = vadd.f32 %v4697, %v4779
    %v4826 = vadd.f32 %v4698, %v2348
    %v4827 = vadd.f32 %v4699, %v4780
    %v4828 = vadd.f32 %v4700, %v4781
    %v4829 = vadd.f32 %v4701, %v4782
    %v4830 = vadd.f32 %v4702, %v4783
    %v4831 = vadd.f32 %v4703, %v4784
    %v4832 = vadd.f32 %v4704, %v4785
    %v4833 = vadd.f32 %v4705, %v4786
    %v4834 = vadd.f32 %v4706, %v2349
    %v4835 = vadd.f32 %v4707, %v4787
    %v4836 = vadd.f32 %v4708, %v4788
    %v4837 = vadd.f32 %v4709, %v4789
    %v4838 = vadd.f32 %v4710, %v4790
    %v4839 = vadd.f32 %v4711, %v4777
    %v4840 = vadd.f32 %v4712, %v4778
    %v4841 = vadd.f32 %v4713, %v4779
    %v4842 = vadd.f32 %v4714, %v2348
    %v4843 = vadd.f32 %v4715, %v4780
    %v4844 = vadd.f32 %v4716, %v4781
    %v4845 = vadd.f32 %v4717, %v4782
    %v4846 = vadd.f32 %v4718, %v4783
    %v4847 = vadd.f32 %v4719, %v4784
    %v4848 = vadd.f32 %v4720, %v4785
    %v4849 = vadd.f32 %v4721, %v4786
    %v4850 = vadd.f32 %v4722, %v2349
    %v4851 = vadd.f32 %v4723, %v4787
    %v4852 = vadd.f32 %v4724, %v4788
    %v4853 = vadd.f32 %v4725, %v4789
    %v4854 = vadd.f32 %v4726, %v4790
    %v4855 = vadd.f32 %v4727, %v4777
    %v4856 = vadd.f32 %v4728, %v4778
    %v4857 = vadd.f32 %v4729, %v4779
    %v4858 = vadd.f32 %v4730, %v2348
    %v4859 = vadd.f32 %v4731, %v4780
    %v4860 = vadd.f32 %v4732, %v4781
    %v4861 = vadd.f32 %v4733, %v4782
    %v4862 = vadd.f32 %v4734, %v4783
    %v4863 = vadd.f32 %v4735, %v4784
    %v4864 = vadd.f32 %v4736, %v4785
    %v4865 = vadd.f32 %v4737, %v4786
    %v4866 = vadd.f32 %v4738, %v2349
    %v4867 = vadd.f32 %v4739, %v4787
    %v4868 = vadd.f32 %v4740, %v4788
    %v4869 = vadd.f32 %v4741, %v4789
    %v4870 = vadd.f32 %v4742, %v4790
    %v4871 = vadd.f32 %v4743, %v4777
    %v4872 = vadd.f32 %v4744, %v4778
    %v4873 = vadd.f32 %v4745, %v4779
    %v4874 = vadd.f32 %v4746, %v2348
    %v4875 = vadd.f32 %v4747, %v4780
    %v4876 = vadd.f32 %v4748, %v4781
    %v4877 = vadd.f32 %v4749, %v4782
    %v4878 = vadd.f32 %v4750, %v4783
    %v4879 = vadd.f32 %v4751, %v4784
    %v4880 = vadd.f32 %v4752, %v4785
    %v4881 = vadd.f32 %v4753, %v4786
    %v4882 = vadd.f32 %v4754, %v2349
    %v4883 = vadd.f32 %v4755, %v4787
    %v4884 = vadd.f32 %v4756, %v4788
    %v4885 = vadd.f32 %v4757, %v4789
    %v4886 = vadd.f32 %v4758, %v4790
    %v4887 = vadd.f32 %v4759, %v4777
    %v4888 = vadd.f32 %v4760, %v4778
    %v4889 = vadd.f32 %v4761, %v4779
    %v4890 = vadd.f32 %v4762, %v2348
    %v4891 = vadd.f32 %v4763, %v4780
    %v4892 = vadd.f32 %v4764, %v4781
    %v4893 = vadd.f32 %v4765, %v4782
    %v4894 = vadd.f32 %v4766, %v4783
    %v4895 = vadd.f32 %v4767, %v4784
    %v4896 = vadd.f32 %v4768, %v4785
    %v4897 = vadd.f32 %v4769, %v4786
    %v4898 = vadd.f32 %v4770, %v2349
    %v4899 = vadd.f32 %v4771, %v4787
    %v4900 = vadd.f32 %v4772, %v4788
    %v4901 = vadd.f32 %v4773, %v4789
    %v4902 = vadd.f32 %v4774, %v4790
    %v4999 = vrot.slane %v4808, 7
    %v5000 = vsel %vm2872, %v4999, %v4807
    %v5001 = vrot.slane %v4809, 6
    %v5002 = vsel %vm2875, %v5001, %v5000
    %v5003 = vrot.slane %v4810, 5
    %v5004 = vsel %vm2878, %v5003, %v5002
    %v5005 = vrot.slane %v4811, 4
    %v5006 = vsel %vm2881, %v5005, %v5004
    %v5007 = vrot.slane %v4812, 3
    %v5008 = vrot.slane %v4813, 2
    %v5009 = vsel %vm2863, %v5008, %v5007
    %v5010 = vrot.slane %v4814, 1
    %v5011 = vsel %vm2866, %v5010, %v5009
    %v5012 = vsel %vm2869, %v4815, %v5011
    %v5013 = vrot.slane %v4816, 7
    %v5014 = vsel %vm2872, %v5013, %v5012
    %v5015 = vrot.slane %v4817, 6
    %v5016 = vsel %vm2875, %v5015, %v5014
    %v5017 = vrot.slane %v4818, 5
    %v5018 = vsel %vm2878, %v5017, %v5016
    %v5019 = vrot.slane %v4819, 4
    %v5020 = vsel %vm2881, %v5019, %v5018
    %v5021 = vrot.slane %v4820, 3
    %v5022 = vrot.slane %v4821, 2
    %v5023 = vsel %vm2863, %v5022, %v5021
    %v5024 = vrot.slane %v4822, 1
    %v5025 = vsel %vm2866, %v5024, %v5023
    %v5026 = vrot.slane %v4824, 7
    %v5027 = vsel %vm2872, %v5026, %v4823
    %v5028 = vrot.slane %v4825, 6
    %v5029 = vsel %vm2875, %v5028, %v5027
    %v5030 = vrot.slane %v4826, 5
    %v5031 = vsel %vm2878, %v5030, %v5029
    %v5032 = vrot.slane %v4827, 4
    %v5033 = vsel %vm2881, %v5032, %v5031
    %v5034 = vrot.slane %v4828, 3
    %v5035 = vrot.slane %v4829, 2
    %v5036 = vsel %vm2863, %v5035, %v5034
    %v5037 = vrot.slane %v4830, 1
    %v5038 = vsel %vm2866, %v5037, %v5036
    %v5039 = vsel %vm2869, %v4831, %v5038
    %v5040 = vrot.slane %v4832, 7
    %v5041 = vsel %vm2872, %v5040, %v5039
    %v5042 = vrot.slane %v4833, 6
    %v5043 = vsel %vm2875, %v5042, %v5041
    %v5044 = vrot.slane %v4834, 5
    %v5045 = vsel %vm2878, %v5044, %v5043
    %v5046 = vrot.slane %v4835, 4
    %v5047 = vsel %vm2881, %v5046, %v5045
    %v5048 = vrot.slane %v4836, 3
    %v5049 = vrot.slane %v4837, 2
    %v5050 = vsel %vm2863, %v5049, %v5048
    %v5051 = vrot.slane %v4838, 1
    %v5052 = vsel %vm2866, %v5051, %v5050
    %v5053 = vrot.slane %v4840, 7
    %v5054 = vsel %vm2872, %v5053, %v4839
    %v5055 = vrot.slane %v4841, 6
    %v5056 = vsel %vm2875, %v5055, %v5054
    %v5057 = vrot.slane %v4842, 5
    %v5058 = vsel %vm2878, %v5057, %v5056
    %v5059 = vrot.slane %v4843, 4
    %v5060 = vsel %vm2881, %v5059, %v5058
    %v5061 = vrot.slane %v4844, 3
    %v5062 = vrot.slane %v4845, 2
    %v5063 = vsel %vm2863, %v5062, %v5061
    %v5064 = vrot.slane %v4846, 1
    %v5065 = vsel %vm2866, %v5064, %v5063
    %v5066 = vsel %vm2869, %v4847, %v5065
    %v5067 = vrot.slane %v4848, 7
    %v5068 = vsel %vm2872, %v5067, %v5066
    %v5069 = vrot.slane %v4849, 6
    %v5070 = vsel %vm2875, %v5069, %v5068
    %v5071 = vrot.slane %v4850, 5
    %v5072 = vsel %vm2878, %v5071, %v5070
    %v5073 = vrot.slane %v4851, 4
    %v5074 = vsel %vm2881, %v5073, %v5072
    %v5075 = vrot.slane %v4852, 3
    %v5076 = vrot.slane %v4853, 2
    %v5077 = vsel %vm2863, %v5076, %v5075
    %v5078 = vrot.slane %v4854, 1
    %v5079 = vsel %vm2866, %v5078, %v5077
    %v5080 = vrot.slane %v4856, 7
    %v5081 = vsel %vm2872, %v5080, %v4855
    %v5082 = vrot.slane %v4857, 6
    %v5083 = vsel %vm2875, %v5082, %v5081
    %v5084 = vrot.slane %v4858, 5
    %v5085 = vsel %vm2878, %v5084, %v5083
    %v5086 = vrot.slane %v4859, 4
    %v5087 = vsel %vm2881, %v5086, %v5085
    %v5088 = vrot.slane %v4860, 3
    %v5089 = vrot.slane %v4861, 2
    %v5090 = vsel %vm2863, %v5089, %v5088
    %v5091 = vrot.slane %v4862, 1
    %v5092 = vsel %vm2866, %v5091, %v5090
    %v5093 = vsel %vm2869, %v4863, %v5092
    %v5094 = vrot.slane %v4864, 7
    %v5095 = vsel %vm2872, %v5094, %v5093
    %v5096 = vrot.slane %v4865, 6
    %v5097 = vsel %vm2875, %v5096, %v5095
    %v5098 = vrot.slane %v4866, 5
    %v5099 = vsel %vm2878, %v5098, %v5097
    %v5100 = vrot.slane %v4867, 4
    %v5101 = vsel %vm2881, %v5100, %v5099
    %v5102 = vrot.slane %v4868, 3
    %v5103 = vrot.slane %v4869, 2
    %v5104 = vsel %vm2863, %v5103, %v5102
    %v5105 = vrot.slane %v4870, 1
    %v5106 = vsel %vm2866, %v5105, %v5104
    %v5107 = vrot.slane %v4872, 7
    %v5108 = vsel %vm2872, %v5107, %v4871
    %v5109 = vrot.slane %v4873, 6
    %v5110 = vsel %vm2875, %v5109, %v5108
    %v5111 = vrot.slane %v4874, 5
    %v5112 = vsel %vm2878, %v5111, %v5110
    %v5113 = vrot.slane %v4875, 4
    %v5114 = vsel %vm2881, %v5113, %v5112
    %v5115 = vrot.slane %v4876, 3
    %v5116 = vrot.slane %v4877, 2
    %v5117 = vsel %vm2863, %v5116, %v5115
    %v5118 = vrot.slane %v4878, 1
    %v5119 = vsel %vm2866, %v5118, %v5117
    %v5120 = vsel %vm2869, %v4879, %v5119
    %v5121 = vrot.slane %v4880, 7
    %v5122 = vsel %vm2872, %v5121, %v5120
    %v5123 = vrot.slane %v4881, 6
    %v5124 = vsel %vm2875, %v5123, %v5122
    %v5125 = vrot.slane %v4882, 5
    %v5126 = vsel %vm2878, %v5125, %v5124
    %v5127 = vrot.slane %v4883, 4
    %v5128 = vsel %vm2881, %v5127, %v5126
    %v5129 = vrot.slane %v4884, 3
    %v5130 = vrot.slane %v4885, 2
    %v5131 = vsel %vm2863, %v5130, %v5129
    %v5132 = vrot.slane %v4886, 1
    %v5133 = vsel %vm2866, %v5132, %v5131
    %v5134 = vrot.slane %v4888, 7
    %v5135 = vsel %vm2872, %v5134, %v4887
    %v5136 = vrot.slane %v4889, 6
    %v5137 = vsel %vm2875, %v5136, %v5135
    %v5138 = vrot.slane %v4890, 5
    %v5139 = vsel %vm2878, %v5138, %v5137
    %v5140 = vrot.slane %v4891, 4
    %v5141 = vsel %vm2881, %v5140, %v5139
    %v5142 = vrot.slane %v4892, 3
    %v5143 = vrot.slane %v4893, 2
    %v5144 = vsel %vm2863, %v5143, %v5142
    %v5145 = vrot.slane %v4894, 1
    %v5146 = vsel %vm2866, %v5145, %v5144
    %v5147 = vsel %vm2869, %v4895, %v5146
    %v5148 = vrot.slane %v4896, 7
    %v5149 = vsel %vm2872, %v5148, %v5147
    %v5150 = vrot.slane %v4897, 6
    %v5151 = vsel %vm2875, %v5150, %v5149
    %v5152 = vrot.slane %v4898, 5
    %v5153 = vsel %vm2878, %v5152, %v5151
    %v5154 = vrot.slane %v4899, 4
    %v5155 = vsel %vm2881, %v5154, %v5153
    %v5156 = vrot.slane %v4900, 3
    %v5157 = vrot.slane %v4901, 2
    %v5158 = vsel %vm2863, %v5157, %v5156
    %v5159 = vrot.slane %v4902, 1
    %v5160 = vsel %vm2866, %v5159, %v5158
    %s5179 = scalar_lea.vmem [#allocation2], 48
    %vm5180 = vcmask 130051
    %5181 = vst.msk [vmem:[%s5179 - $0x3] sm:$0xf8] %vm5180, %v5006
    %5182 = vst.msk [vmem:[%s5179 + $0x5] sm:$0xff] %vm74, %v5020
    %vm5183 = vcmask 124928
    %5184 = vst.msk [vmem:[%s5179 + $0xd] sm:$0x7] %vm5183, %v5025
    %5185 = vst.msk [vmem:[%s5179 + $0x3d] sm:$0xf8] %vm5180, %v5033
    %5186 = vst.msk [vmem:[%s5179 + $0x45] sm:$0xff] %vm74, %v5047
    %5187 = vst.msk [vmem:[%s5179 + $0x4d] sm:$0x7] %vm5183, %v5052
    %5188 = vst.msk [vmem:[%s5179 + $0x7d] sm:$0xf8] %vm5180, %v5060
    %5189 = vst.msk [vmem:[%s5179 + $0x85] sm:$0xff] %vm74, %v5074
    %5190 = vst.msk [vmem:[%s5179 + $0x8d] sm:$0x7] %vm5183, %v5079
    %5191 = vst.msk [vmem:[%s5179 + $0xbd] sm:$0xf8] %vm5180, %v5087
    %5192 = vst.msk [vmem:[%s5179 + $0xc5] sm:$0xff] %vm74, %v5101
    %5193 = vst.msk [vmem:[%s5179 + $0xcd] sm:$0x7] %vm5183, %v5106
    %5194 = vst.msk [vmem:[%s5179 + $0xfd] sm:$0xf8] %vm5180, %v5114
    %5195 = vst.msk [vmem:[%s5179 + $0x105] sm:$0xff] %vm74, %v5128
    %5196 = vst.msk [vmem:[%s5179 + $0x10d] sm:$0x7] %vm5183, %v5133
    %5197 = vst.msk [vmem:[%s5179 + $0x13d] sm:$0xf8] %vm5180, %v5141
    %5198 = vst.msk [vmem:[%s5179 + $0x145] sm:$0xff] %vm74, %v5155
    %5199 = vst.msk [vmem:[%s5179 + $0x14d] sm:$0x7] %vm5183, %v5160
    // Predicated region
    $region18: #{simple_spectral_conv2d.1} parent=1 // pred_check
      _
    $region19: #{simple_spectral_conv2d.1} parent=1 // pred_check_branch
      %5201 = sbr.rel (0) target = $region21
    $region20: #{simple_spectral_conv2d.1} parent=1 // pred_region
      %s5203 = ssub.s32 6144, 6144
      %5204 = vsyncadd [#allocation3], %s5203
      %s5205 = sshll.u32 [#allocation2], 4
      %s5206 = int_to_ptr.vmem [resolvable:$true] %s5205
      %5211 = dma.vmem_to_hbm [thread:$0]  %s5206, 6144, %s4, [#allocation3], 128, 128, 8
    $region21: #{simple_spectral_conv2d.1} parent=1 // pred_fallthru
      _
    // Predicated region
    $region22: #{simple_spectral_conv2d.1} parent=1 // pred_check
      _
    $region23: #{simple_spectral_conv2d.1} parent=1 // pred_check_branch
      %5213 = sbr.rel (0) target = $region25
    $region24: #{simple_spectral_conv2d.1} parent=1 // pred_region
      %5214 = dma.done [#allocation3], 6144
    $region25: #{simple_spectral_conv2d.1} parent=1 // pred_fallthru
      _
    %5215 = vsyncpa [#allocation3], 1

</llo_original>
